<compile_context>
chip_gen: v5e
topology: v5e:2x2
jax: 0.10.0
libtpu: 0.0.40
codegen_flags: <defaults>
</compile_context>

<pallas_src>
import functools

import jax
import jax.numpy as jnp
from jax.experimental import pallas as pl
from jax.experimental.pallas import tpu as pltpu


def _round_up(x, m):
    return (x + m - 1) // m * m


def _mlp_kernel(x_ref,
                w1_ref, b1_ref,
                w2_ref, b2_ref,
                w3_ref, b3_ref,
                w4_ref, b4_ref,
                w5_ref, b5_ref,
                out_ref):
    """Fused 5-layer MLP: 4x (bf16 matmul + f32 bias + ReLU) then matmul + bias."""
    hidden_layers = ((w1_ref, b1_ref), (w2_ref, b2_ref),
                     (w3_ref, b3_ref), (w4_ref, b4_ref))

    h = x_ref[...]  # (bt, din_p) bf16, already lane-dense
    for w_ref, b_ref in hidden_layers:
        acc = jnp.dot(h, w_ref[...], preferred_element_type=jnp.float32)
        acc = acc + b_ref[...]                       # f32 bias add
        h = jnp.maximum(acc, 0.0).astype(w_ref.dtype)  # ReLU in f32, bf16 for next MXU pass

    acc = jnp.dot(h, w5_ref[...], preferred_element_type=jnp.float32)
    out_ref[...] = (acc + b5_ref[...]).astype(out_ref.dtype)


@functools.partial(jax.jit, static_argnames=("batch_tile",))
def qnet_forward(state, params, *, batch_tile=256):
    """Run the fused MLP kernel.

    state : (B, input_dims) float32
    params: dict with w1..w5 stored as (in, out) [nn.Linear weight transposed]
            and b1..b5 of shape (out,) or (1, out).
    """
    assert batch_tile % 8 == 0, "batch_tile must be a multiple of 8 (sublane)"
    B, input_dims = state.shape
    n_actions = params["w5"].shape[1]

    lane = 128
    din_p = _round_up(input_dims, lane)     # lane-dense fc1 input
    dout_p = _round_up(n_actions, lane)     # lane-dense (unmasked) output stores

    # Clamp the tile for small batches, then pad B to a tile multiple.
    bt = min(batch_tile, _round_up(B, lane))
    Bp = _round_up(B, bt)

    # --- prepare operands (bf16 matmul operands, f32 biases) -------------
    x = state.astype(jnp.bfloat16)
    x = jnp.pad(x, ((0, Bp - B), (0, din_p - input_dims)))

    weights = []
    biases = []
    for k in range(1, 6):
        w = params[f"w{k}"].astype(jnp.bfloat16)
        b = params[f"b{k}"].reshape(1, -1).astype(jnp.float32)
        if k == 1:  # fold the input padding into fc1's rows
            w = jnp.pad(w, ((0, din_p - input_dims), (0, 0)))
        if k == 5:  # fold the output padding into fc5's columns / bias
            w = jnp.pad(w, ((0, 0), (0, dout_p - n_actions)))
            b = jnp.pad(b, ((0, 0), (0, dout_p - n_actions)))
        weights.append(w)
        biases.append(b)

    # --- specs ------------------------------------------------------------
    in_specs = [pl.BlockSpec((bt, din_p), lambda i: (i, 0))]
    args = [x]
    for w, b in zip(weights, biases):
        in_specs.append(pl.BlockSpec(w.shape, lambda i: (0, 0)))  # resident weight
        in_specs.append(pl.BlockSpec(b.shape, lambda i: (0, 0)))  # resident bias
        args += [w, b]

    out_spec = pl.BlockSpec((bt, dout_p), lambda i: (i, 0))

    out_padded = pl.pallas_call(
        _mlp_kernel,
        out_shape=jax.ShapeDtypeStruct((Bp, dout_p), jnp.float32),
        grid_spec=pl.GridSpec(
            grid=(Bp // bt,),
            in_specs=in_specs,
            out_specs=out_spec,
        ),
        compiler_params=pltpu.CompilerParams(
            dimension_semantics=("parallel",),
            vmem_limit_bytes=32 * 1024 * 1024,
        ),
    )(*args)

    return out_padded[:B, :n_actions]


def init_params(key, input_dims, n_actions):
    """Deterministic parameter init matching nn.Linear (stored transposed)."""
    sizes = [(input_dims, 512), (512, 512), (512, 512), (512, 256),
             (256, n_actions)]
    params = {}
    for idx, (fan_in, fan_out) in enumerate(sizes, start=1):
        key, kw, kb = jax.random.split(key, 3)
        bound = 1.0 / jnp.sqrt(fan_in)  # PyTorch default uniform init bound
        params[f"w{idx}"] = jax.random.uniform(
            kw, (fan_in, fan_out), jnp.float32, -bound, bound)
        params[f"b{idx}"] = jax.random.uniform(
            kb, (1, fan_out), jnp.float32, -bound, bound)
    return params


def reference_forward(state, params):
    """Plain-JAX reference mirroring the kernel's numerics
    (bf16 matmul operands, f32 accumulation / bias / ReLU)."""
    h = state.astype(jnp.bfloat16)
    for k in range(1, 5):
        w = params[f"w{k}"].astype(jnp.bfloat16)
        b = params[f"b{k}"].reshape(1, -1).astype(jnp.float32)
        h = jnp.maximum(jnp.dot(h, w, preferred_element_type=jnp.float32) + b, 0.0)
        h = h.astype(jnp.bfloat16)
    w = params["w5"].astype(jnp.bfloat16)
    b = params["b5"].reshape(1, -1).astype(jnp.float32)
    return jnp.dot(h, w, preferred_element_type=jnp.float32) + b


# TODO(synk): optimizer (Adam), nn.L1Loss and device placement from the module
# are training-time components; only the forward pass is implemented here.

if __name__ == "__main__":
    key = jax.random.PRNGKey(0)
    input_dims = 32
    n_actions = 8
    batch = 8

    kp, kx = jax.random.split(key)
    params = init_params(kp, input_dims, n_actions)
    state = jax.random.normal(kx, (batch, input_dims), jnp.float32)

    actions = qnet_forward(state, params)          # batch_tile clamps to 128 here
    actions = jax.block_until_ready(actions)

    ref = reference_forward(state, params)
    assert actions.shape == (batch, n_actions)
    assert jnp.allclose(actions, ref, atol=1e-2, rtol=1e-2), "mismatch vs reference"

    print("KERNEL_OK")
</pallas_src>

<mosaic_0001>
module attributes {stable_mosaic.version = 11 : i64} {
  func.func @_mlp_kernel(%arg0: i32, %arg1: memref<128x128xbf16, #tpu.memory_space<vmem>>, %arg2: memref<128x512xbf16, #tpu.memory_space<vmem>>, %arg3: memref<1x512xf32, #tpu.memory_space<vmem>>, %arg4: memref<512x512xbf16, #tpu.memory_space<vmem>>, %arg5: memref<1x512xf32, #tpu.memory_space<vmem>>, %arg6: memref<512x512xbf16, #tpu.memory_space<vmem>>, %arg7: memref<1x512xf32, #tpu.memory_space<vmem>>, %arg8: memref<512x256xbf16, #tpu.memory_space<vmem>>, %arg9: memref<1x256xf32, #tpu.memory_space<vmem>>, %arg10: memref<256x128xbf16, #tpu.memory_space<vmem>>, %arg11: memref<1x128xf32, #tpu.memory_space<vmem>>, %arg12: memref<128x128xf32, #tpu.memory_space<vmem>>) attributes {dimension_semantics = [#tpu.dimension_semantics<parallel>], iteration_bounds = array<i64: 1>, scalar_prefetch = 0 : i64, scratch_operands = 0 : i64, tpu.core_type = #tpu.core_type<tc>, window_params = [{transform_indices = @transform_0, window_bounds = array<i64: 128, 128>}, {pipeline_mode = #tpu.pipeline_mode<synchronous>, transform_indices = @transform_1, window_bounds = array<i64: 128, 512>}, {pipeline_mode = #tpu.pipeline_mode<synchronous>, transform_indices = @transform_2, window_bounds = array<i64: 1, 512>}, {pipeline_mode = #tpu.pipeline_mode<synchronous>, transform_indices = @transform_3, window_bounds = array<i64: 512, 512>}, {pipeline_mode = #tpu.pipeline_mode<synchronous>, transform_indices = @transform_4, window_bounds = array<i64: 1, 512>}, {pipeline_mode = #tpu.pipeline_mode<synchronous>, transform_indices = @transform_5, window_bounds = array<i64: 512, 512>}, {pipeline_mode = #tpu.pipeline_mode<synchronous>, transform_indices = @transform_6, window_bounds = array<i64: 1, 512>}, {pipeline_mode = #tpu.pipeline_mode<synchronous>, transform_indices = @transform_7, window_bounds = array<i64: 512, 256>}, {pipeline_mode = #tpu.pipeline_mode<synchronous>, transform_indices = @transform_8, window_bounds = array<i64: 1, 256>}, {pipeline_mode = #tpu.pipeline_mode<synchronous>, transform_indices = @transform_9, window_bounds = array<i64: 256, 128>}, {pipeline_mode = #tpu.pipeline_mode<synchronous>, transform_indices = @transform_10, window_bounds = array<i64: 1, 128>}, {transform_indices = @transform_11, window_bounds = array<i64: 128, 128>}]} {
    %c0 = arith.constant 0 : index
    %c0_0 = arith.constant 0 : index
    %0 = vector.load %arg1[%c0, %c0_0] : memref<128x128xbf16, #tpu.memory_space<vmem>>, vector<128x128xbf16>
    %c0_1 = arith.constant 0 : index
    %c0_2 = arith.constant 0 : index
    %1 = vector.load %arg2[%c0_1, %c0_2] : memref<128x512xbf16, #tpu.memory_space<vmem>>, vector<128x512xbf16>
    %cst = arith.constant dense<0.000000e+00> : vector<128x512xf32>
    %2 = tpu.matmul %0, %1, %cst {dimension_numbers = #tpu.dot_dimension_numbers<[1], [0], [0], [1], [0, 0, 1, 1], [], []>} : vector<128x128xbf16>, vector<128x512xbf16>, vector<128x512xf32> -> vector<128x512xf32>
    %c0_3 = arith.constant 0 : index
    %c0_4 = arith.constant 0 : index
    %3 = vector.load %arg3[%c0_3, %c0_4] : memref<1x512xf32, #tpu.memory_space<vmem>>, vector<1x512xf32>
    %4 = vector.broadcast %3 : vector<1x512xf32> to vector<128x512xf32>
    %5 = arith.addf %2, %4 : vector<128x512xf32>
    %cst_5 = arith.constant 0.000000e+00 : f32
    %6 = vector.broadcast %cst_5 : f32 to vector<128x512xf32>
    %7 = arith.maximumf %5, %6 : vector<128x512xf32>
    %8 = arith.truncf %7 : vector<128x512xf32> to vector<128x512xbf16>
    %c0_6 = arith.constant 0 : index
    %c0_7 = arith.constant 0 : index
    %9 = vector.load %arg4[%c0_6, %c0_7] : memref<512x512xbf16, #tpu.memory_space<vmem>>, vector<512x512xbf16>
    %cst_8 = arith.constant dense<0.000000e+00> : vector<128x512xf32>
    %10 = tpu.matmul %8, %9, %cst_8 {dimension_numbers = #tpu.dot_dimension_numbers<[1], [0], [0], [1], [0, 0, 1, 1], [], []>} : vector<128x512xbf16>, vector<512x512xbf16>, vector<128x512xf32> -> vector<128x512xf32>
    %c0_9 = arith.constant 0 : index
    %c0_10 = arith.constant 0 : index
    %11 = vector.load %arg5[%c0_9, %c0_10] : memref<1x512xf32, #tpu.memory_space<vmem>>, vector<1x512xf32>
    %12 = vector.broadcast %11 : vector<1x512xf32> to vector<128x512xf32>
    %13 = arith.addf %10, %12 : vector<128x512xf32>
    %cst_11 = arith.constant 0.000000e+00 : f32
    %14 = vector.broadcast %cst_11 : f32 to vector<128x512xf32>
    %15 = arith.maximumf %13, %14 : vector<128x512xf32>
    %16 = arith.truncf %15 : vector<128x512xf32> to vector<128x512xbf16>
    %c0_12 = arith.constant 0 : index
    %c0_13 = arith.constant 0 : index
    %17 = vector.load %arg6[%c0_12, %c0_13] : memref<512x512xbf16, #tpu.memory_space<vmem>>, vector<512x512xbf16>
    %cst_14 = arith.constant dense<0.000000e+00> : vector<128x512xf32>
    %18 = tpu.matmul %16, %17, %cst_14 {dimension_numbers = #tpu.dot_dimension_numbers<[1], [0], [0], [1], [0, 0, 1, 1], [], []>} : vector<128x512xbf16>, vector<512x512xbf16>, vector<128x512xf32> -> vector<128x512xf32>
    %c0_15 = arith.constant 0 : index
    %c0_16 = arith.constant 0 : index
    %19 = vector.load %arg7[%c0_15, %c0_16] : memref<1x512xf32, #tpu.memory_space<vmem>>, vector<1x512xf32>
    %20 = vector.broadcast %19 : vector<1x512xf32> to vector<128x512xf32>
    %21 = arith.addf %18, %20 : vector<128x512xf32>
    %cst_17 = arith.constant 0.000000e+00 : f32
    %22 = vector.broadcast %cst_17 : f32 to vector<128x512xf32>
    %23 = arith.maximumf %21, %22 : vector<128x512xf32>
    %24 = arith.truncf %23 : vector<128x512xf32> to vector<128x512xbf16>
    %c0_18 = arith.constant 0 : index
    %c0_19 = arith.constant 0 : index
    %25 = vector.load %arg8[%c0_18, %c0_19] : memref<512x256xbf16, #tpu.memory_space<vmem>>, vector<512x256xbf16>
    %cst_20 = arith.constant dense<0.000000e+00> : vector<128x256xf32>
    %26 = tpu.matmul %24, %25, %cst_20 {dimension_numbers = #tpu.dot_dimension_numbers<[1], [0], [0], [1], [0, 0, 1, 1], [], []>} : vector<128x512xbf16>, vector<512x256xbf16>, vector<128x256xf32> -> vector<128x256xf32>
    %c0_21 = arith.constant 0 : index
    %c0_22 = arith.constant 0 : index
    %27 = vector.load %arg9[%c0_21, %c0_22] : memref<1x256xf32, #tpu.memory_space<vmem>>, vector<1x256xf32>
    %28 = vector.broadcast %27 : vector<1x256xf32> to vector<128x256xf32>
    %29 = arith.addf %26, %28 : vector<128x256xf32>
    %cst_23 = arith.constant 0.000000e+00 : f32
    %30 = vector.broadcast %cst_23 : f32 to vector<128x256xf32>
    %31 = arith.maximumf %29, %30 : vector<128x256xf32>
    %32 = arith.truncf %31 : vector<128x256xf32> to vector<128x256xbf16>
    %c0_24 = arith.constant 0 : index
    %c0_25 = arith.constant 0 : index
    %33 = vector.load %arg10[%c0_24, %c0_25] : memref<256x128xbf16, #tpu.memory_space<vmem>>, vector<256x128xbf16>
    %cst_26 = arith.constant dense<0.000000e+00> : vector<128x128xf32>
    %34 = tpu.matmul %32, %33, %cst_26 {dimension_numbers = #tpu.dot_dimension_numbers<[1], [0], [0], [1], [0, 0, 1, 1], [], []>} : vector<128x256xbf16>, vector<256x128xbf16>, vector<128x128xf32> -> vector<128x128xf32>
    %c0_27 = arith.constant 0 : index
    %c0_28 = arith.constant 0 : index
    %35 = vector.load %arg11[%c0_27, %c0_28] : memref<1x128xf32, #tpu.memory_space<vmem>>, vector<1x128xf32>
    %36 = vector.broadcast %35 : vector<1x128xf32> to vector<128x128xf32>
    %37 = arith.addf %34, %36 : vector<128x128xf32>
    %c0_29 = arith.constant 0 : index
    %c0_30 = arith.constant 0 : index
    %38 = vector.load %arg12[%c0_29, %c0_30] : memref<128x128xf32, #tpu.memory_space<vmem>>, vector<128x128xf32>
    tpu.vector_store %arg12[%c0_29, %c0_30], %37 {strides = array<i32>} : memref<128x128xf32, #tpu.memory_space<vmem>>, vector<128x128xf32>,
    return
  }
  func.func @transform_0(%arg0: i32) -> (i32, i32) {
    %c0_i32 = arith.constant 0 : i32
    %c0_i32_0 = arith.constant 0 : i32
    return %arg0, %c0_i32 : i32, i32
  }
  func.func @transform_1(%arg0: i32) -> (i32, i32) {
    %c0_i32 = arith.constant 0 : i32
    %c0_i32_0 = arith.constant 0 : i32
    %c0_i32_1 = arith.constant 0 : i32
    return %c0_i32, %c0_i32_0 : i32, i32
  }
  func.func @transform_2(%arg0: i32) -> (i32, i32) {
    %c0_i32 = arith.constant 0 : i32
    %c0_i32_0 = arith.constant 0 : i32
    %c0_i32_1 = arith.constant 0 : i32
    return %c0_i32, %c0_i32_0 : i32, i32
  }
  func.func @transform_3(%arg0: i32) -> (i32, i32) {
    %c0_i32 = arith.constant 0 : i32
    %c0_i32_0 = arith.constant 0 : i32
    %c0_i32_1 = arith.constant 0 : i32
    return %c0_i32, %c0_i32_0 : i32, i32
  }
  func.func @transform_4(%arg0: i32) -> (i32, i32) {
    %c0_i32 = arith.constant 0 : i32
    %c0_i32_0 = arith.constant 0 : i32
    %c0_i32_1 = arith.constant 0 : i32
    return %c0_i32, %c0_i32_0 : i32, i32
  }
  func.func @transform_5(%arg0: i32) -> (i32, i32) {
    %c0_i32 = arith.constant 0 : i32
    %c0_i32_0 = arith.constant 0 : i32
    %c0_i32_1 = arith.constant 0 : i32
    return %c0_i32, %c0_i32_0 : i32, i32
  }
  func.func @transform_6(%arg0: i32) -> (i32, i32) {
    %c0_i32 = arith.constant 0 : i32
    %c0_i32_0 = arith.constant 0 : i32
    %c0_i32_1 = arith.constant 0 : i32
    return %c0_i32, %c0_i32_0 : i32, i32
  }
  func.func @transform_7(%arg0: i32) -> (i32, i32) {
    %c0_i32 = arith.constant 0 : i32
    %c0_i32_0 = arith.constant 0 : i32
    %c0_i32_1 = arith.constant 0 : i32
    return %c0_i32, %c0_i32_0 : i32, i32
  }
  func.func @transform_8(%arg0: i32) -> (i32, i32) {
    %c0_i32 = arith.constant 0 : i32
    %c0_i32_0 = arith.constant 0 : i32
    %c0_i32_1 = arith.constant 0 : i32
    return %c0_i32, %c0_i32_0 : i32, i32
  }
  func.func @transform_9(%arg0: i32) -> (i32, i32) {
    %c0_i32 = arith.constant 0 : i32
    %c0_i32_0 = arith.constant 0 : i32
    %c0_i32_1 = arith.constant 0 : i32
    return %c0_i32, %c0_i32_0 : i32, i32
  }
  func.func @transform_10(%arg0: i32) -> (i32, i32) {
    %c0_i32 = arith.constant 0 : i32
    %c0_i32_0 = arith.constant 0 : i32
    %c0_i32_1 = arith.constant 0 : i32
    return %c0_i32, %c0_i32_0 : i32, i32
  }
  func.func @transform_11(%arg0: i32) -> (i32, i32) {
    %c0_i32 = arith.constant 0 : i32
    %c0_i32_0 = arith.constant 0 : i32
    return %arg0, %c0_i32 : i32, i32
  }
}

</mosaic_0001>

<llo_original>
// kernel: qnet_forward.1
$region0: #{qnet_forward.1}
  #allocation0 [shape = 'u32[]', space=smem, size = 0x4, offset = 0x4, fixed_abs, tag = 'smem constant byte address 0x4 - core index']
  #allocation1 [shape = 'u32[72,128]{1,0:T(1,128)}', space=vmem, size = 0x9000, scoped, tag = 'internal scratch']
  %s0 = inlined_call_operand.vmem [shape: bf16[128,128], index: 0, kind: input, shape index: {}]
  %s1 = inlined_call_operand.vmem [shape: bf16[128,512], index: 1, kind: input, shape index: {}]
  %s2 = inlined_call_operand.vmem [shape: f32[1,512], index: 2, kind: input, shape index: {}]
  %s3 = inlined_call_operand.vmem [shape: bf16[512,512], index: 3, kind: input, shape index: {}]
  %s4 = inlined_call_operand.vmem [shape: f32[1,512], index: 4, kind: input, shape index: {}]
  %s5 = inlined_call_operand.vmem [shape: bf16[512,512], index: 5, kind: input, shape index: {}]
  %s6 = inlined_call_operand.vmem [shape: f32[1,512], index: 6, kind: input, shape index: {}]
  %s7 = inlined_call_operand.vmem [shape: bf16[512,256], index: 7, kind: input, shape index: {}]
  %s8 = inlined_call_operand.vmem [shape: f32[1,256], index: 8, kind: input, shape index: {}]
  %s9 = inlined_call_operand.vmem [shape: bf16[256,128], index: 9, kind: input, shape index: {}]
  %s10 = inlined_call_operand.vmem [shape: f32[1,128], index: 10, kind: input, shape index: {}]
  %s11 = inlined_call_operand.vmem [shape: f32[128,128], index: 11, kind: output, shape index: {}]
  %s12 = sld [smem:[#allocation0]]
  $region54: #{qnet_forward.1} parent=0
    _
  %s14 = ssub.s32 1, %s12
  %s15 = scalar_select 0, %s14, %s12
  // Predicated region
  $region2: #{qnet_forward.1} parent=0 // pred_check
    _
  $region3: #{qnet_forward.1} parent=0 // pred_check_branch
    %17 = sbr.rel (0) target = $region5
  $region4: #{qnet_forward.1} parent=0 // pred_region
    _
  $region5: #{qnet_forward.1} parent=0 // pred_fallthru
    _
  // Predicated region
  $region6: #{qnet_forward.1} parent=0 // pred_check
    _
  $region7: #{qnet_forward.1} parent=0 // pred_check_branch
    %19 = sbr.rel (0) target = $region9
  $region8: #{qnet_forward.1} parent=0 // pred_region
    _
  $region9: #{qnet_forward.1} parent=0 // pred_fallthru
    _
  // Predicated region
  $region10: #{qnet_forward.1} parent=0 // pred_check
    _
  $region11: #{qnet_forward.1} parent=0 // pred_check_branch
    %21 = sbr.rel (0) target = $region13
  $region12: #{qnet_forward.1} parent=0 // pred_region
    _
  $region13: #{qnet_forward.1} parent=0 // pred_fallthru
    _
  // Predicated region
  $region14: #{qnet_forward.1} parent=0 // pred_check
    _
  $region15: #{qnet_forward.1} parent=0 // pred_check_branch
    %23 = sbr.rel (0) target = $region17
  $region16: #{qnet_forward.1} parent=0 // pred_region
    _
  $region17: #{qnet_forward.1} parent=0 // pred_fallthru
    _
  // Predicated region
  $region18: #{qnet_forward.1} parent=0 // pred_check
    _
  $region19: #{qnet_forward.1} parent=0 // pred_check_branch
    %25 = sbr.rel (0) target = $region21
  $region20: #{qnet_forward.1} parent=0 // pred_region
    _
  $region21: #{qnet_forward.1} parent=0 // pred_fallthru
    _
  // Predicated region
  $region22: #{qnet_forward.1} parent=0 // pred_check
    _
  $region23: #{qnet_forward.1} parent=0 // pred_check_branch
    %27 = sbr.rel (0) target = $region25
  $region24: #{qnet_forward.1} parent=0 // pred_region
    _
  $region25: #{qnet_forward.1} parent=0 // pred_fallthru
    _
  // Predicated region
  $region26: #{qnet_forward.1} parent=0 // pred_check
    _
  $region27: #{qnet_forward.1} parent=0 // pred_check_branch
    %29 = sbr.rel (0) target = $region29
  $region28: #{qnet_forward.1} parent=0 // pred_region
    _
  $region29: #{qnet_forward.1} parent=0 // pred_fallthru
    _
  // Predicated region
  $region30: #{qnet_forward.1} parent=0 // pred_check
    _
  $region31: #{qnet_forward.1} parent=0 // pred_check_branch
    %31 = sbr.rel (0) target = $region33
  $region32: #{qnet_forward.1} parent=0 // pred_region
    _
  $region33: #{qnet_forward.1} parent=0 // pred_fallthru
    _
  // Predicated region
  $region34: #{qnet_forward.1} parent=0 // pred_check
    _
  $region35: #{qnet_forward.1} parent=0 // pred_check_branch
    %33 = sbr.rel (0) target = $region37
  $region36: #{qnet_forward.1} parent=0 // pred_region
    _
  $region37: #{qnet_forward.1} parent=0 // pred_fallthru
    _
  // Predicated region
  $region38: #{qnet_forward.1} parent=0 // pred_check
    _
  $region39: #{qnet_forward.1} parent=0 // pred_check_branch
    %35 = sbr.rel (0) target = $region41
  $region40: #{qnet_forward.1} parent=0 // pred_region
    _
  $region41: #{qnet_forward.1} parent=0 // pred_fallthru
    _
  // Predicated region
  $region42: #{qnet_forward.1} parent=0 // pred_check
    _
  $region43: #{qnet_forward.1} parent=0 // pred_check_branch
    %37 = sbr.rel (0) target = $region45
  $region44: #{qnet_forward.1} parent=0 // pred_region
    _
  $region45: #{qnet_forward.1} parent=0 // pred_fallthru
    _
  %v38 = vld [vmem:[%s0] sm:$0xf]
  %v39 = vld [vmem:[%s0 + $0x4] sm:$0xf]
  %v40 = vld [vmem:[%s0 + $0x8] sm:$0xf]
  %v41 = vld [vmem:[%s0 + $0xc] sm:$0xf]
  %v42 = vld [vmem:[%s0 + $0x10] sm:$0xf]
  %v43 = vld [vmem:[%s0 + $0x14] sm:$0xf]
  %v44 = vld [vmem:[%s0 + $0x18] sm:$0xf]
  %v45 = vld [vmem:[%s0 + $0x1c] sm:$0xf]
  %v46 = vld [vmem:[%s0 + $0x20] sm:$0xf]
  %v47 = vld [vmem:[%s0 + $0x24] sm:$0xf]
  %v48 = vld [vmem:[%s0 + $0x28] sm:$0xf]
  %v49 = vld [vmem:[%s0 + $0x2c] sm:$0xf]
  %v50 = vld [vmem:[%s0 + $0x30] sm:$0xf]
  %v51 = vld [vmem:[%s0 + $0x34] sm:$0xf]
  %v52 = vld [vmem:[%s0 + $0x38] sm:$0xf]
  %v53 = vld [vmem:[%s0 + $0x3c] sm:$0xf]
  %v54 = vld [vmem:[%s1] sm:$0xff]
  %v55 = vld [vmem:[%s1 + $0x8] sm:$0xff]
  %v56 = vld [vmem:[%s1 + $0x10] sm:$0xff]
  %v57 = vld [vmem:[%s1 + $0x18] sm:$0xff]
  %v58 = vld [vmem:[%s1 + $0x20] sm:$0xff]
  %v59 = vld [vmem:[%s1 + $0x28] sm:$0xff]
  %v60 = vld [vmem:[%s1 + $0x30] sm:$0xff]
  %v61 = vld [vmem:[%s1 + $0x38] sm:$0xff]
  %v62 = vld [vmem:[%s1 + $0x40] sm:$0xff]
  %v63 = vld [vmem:[%s1 + $0x48] sm:$0xff]
  %v64 = vld [vmem:[%s1 + $0x50] sm:$0xff]
  %v65 = vld [vmem:[%s1 + $0x58] sm:$0xff]
  %v66 = vld [vmem:[%s1 + $0x60] sm:$0xff]
  %v67 = vld [vmem:[%s1 + $0x68] sm:$0xff]
  %v68 = vld [vmem:[%s1 + $0x70] sm:$0xff]
  %v69 = vld [vmem:[%s1 + $0x78] sm:$0xff]
  %v70 = vld [vmem:[%s1 + $0x80] sm:$0xff]
  %v71 = vld [vmem:[%s1 + $0x88] sm:$0xff]
  %v72 = vld [vmem:[%s1 + $0x90] sm:$0xff]
  %v73 = vld [vmem:[%s1 + $0x98] sm:$0xff]
  %v74 = vld [vmem:[%s1 + $0xa0] sm:$0xff]
  %v75 = vld [vmem:[%s1 + $0xa8] sm:$0xff]
  %v76 = vld [vmem:[%s1 + $0xb0] sm:$0xff]
  %v77 = vld [vmem:[%s1 + $0xb8] sm:$0xff]
  %v78 = vld [vmem:[%s1 + $0xc0] sm:$0xff]
  %v79 = vld [vmem:[%s1 + $0xc8] sm:$0xff]
  %v80 = vld [vmem:[%s1 + $0xd0] sm:$0xff]
  %v81 = vld [vmem:[%s1 + $0xd8] sm:$0xff]
  %v82 = vld [vmem:[%s1 + $0xe0] sm:$0xff]
  %v83 = vld [vmem:[%s1 + $0xe8] sm:$0xff]
  %v84 = vld [vmem:[%s1 + $0xf0] sm:$0xff]
  %v85 = vld [vmem:[%s1 + $0xf8] sm:$0xff]
  %v86 = vld [vmem:[%s2] sm:$0xf]
  %v88 = vperm.slane %v86, 0
  %v89 = vperm.slane %v86, 1
  %v90 = vperm.slane %v86, 2
  %v91 = vperm.slane %v86, 3
  %v112 = vunpack.c.l.b16 %v38
  %v113 = vunpack.c.l.b16 %v39
  %v114 = vunpack.c.l.b16 %v40
  %v115 = vunpack.c.l.b16 %v41
  %v116 = vunpack.c.l.b16 %v42
  %v117 = vunpack.c.l.b16 %v43
  %v118 = vunpack.c.l.b16 %v44
  %v119 = vunpack.c.l.b16 %v45
  %v120 = vunpack.c.l.b16 %v46
  %v121 = vunpack.c.l.b16 %v47
  %v122 = vunpack.c.l.b16 %v48
  %v123 = vunpack.c.l.b16 %v49
  %v124 = vunpack.c.l.b16 %v50
  %v125 = vunpack.c.l.b16 %v51
  %v126 = vunpack.c.l.b16 %v52
  %v127 = vunpack.c.l.b16 %v53
  %v128 = vpack.c.b16 %v113, %v112
  %v129 = vpack.c.b16 %v115, %v114
  %v130 = vpack.c.b16 %v117, %v116
  %v131 = vpack.c.b16 %v119, %v118
  %v132 = vpack.c.b16 %v121, %v120
  %v133 = vpack.c.b16 %v123, %v122
  %v134 = vpack.c.b16 %v125, %v124
  %v135 = vpack.c.b16 %v127, %v126
  %v176 = vunpack.c.l.b16 %v54
  %v177 = vunpack.c.h.b16 %v54
  %v178 = vunpack.c.l.b16 %v55
  %v179 = vunpack.c.h.b16 %v55
  %v180 = vunpack.c.l.b16 %v56
  %v181 = vunpack.c.h.b16 %v56
  %v182 = vunpack.c.l.b16 %v57
  %v183 = vunpack.c.h.b16 %v57
  %v184 = vunpack.c.l.b16 %v58
  %v185 = vunpack.c.h.b16 %v58
  %v186 = vunpack.c.l.b16 %v59
  %v187 = vunpack.c.h.b16 %v59
  %v188 = vunpack.c.l.b16 %v60
  %v189 = vunpack.c.h.b16 %v60
  %v190 = vunpack.c.l.b16 %v61
  %v191 = vunpack.c.h.b16 %v61
  %v192 = vunpack.c.l.b16 %v62
  %v193 = vunpack.c.h.b16 %v62
  %v194 = vunpack.c.l.b16 %v63
  %v195 = vunpack.c.h.b16 %v63
  %v196 = vunpack.c.l.b16 %v64
  %v197 = vunpack.c.h.b16 %v64
  %v198 = vunpack.c.l.b16 %v65
  %v199 = vunpack.c.h.b16 %v65
  %v200 = vunpack.c.l.b16 %v66
  %v201 = vunpack.c.h.b16 %v66
  %v202 = vunpack.c.l.b16 %v67
  %v203 = vunpack.c.h.b16 %v67
  %v204 = vunpack.c.l.b16 %v68
  %v205 = vunpack.c.h.b16 %v68
  %v206 = vunpack.c.l.b16 %v69
  %v207 = vunpack.c.h.b16 %v69
  %v208 = vunpack.c.l.b16 %v70
  %v209 = vunpack.c.h.b16 %v70
  %v210 = vunpack.c.l.b16 %v71
  %v211 = vunpack.c.h.b16 %v71
  %v212 = vunpack.c.l.b16 %v72
  %v213 = vunpack.c.h.b16 %v72
  %v214 = vunpack.c.l.b16 %v73
  %v215 = vunpack.c.h.b16 %v73
  %v216 = vunpack.c.l.b16 %v74
  %v217 = vunpack.c.h.b16 %v74
  %v218 = vunpack.c.l.b16 %v75
  %v219 = vunpack.c.h.b16 %v75
  %v220 = vunpack.c.l.b16 %v76
  %v221 = vunpack.c.h.b16 %v76
  %v222 = vunpack.c.l.b16 %v77
  %v223 = vunpack.c.h.b16 %v77
  %v224 = vunpack.c.l.b16 %v78
  %v225 = vunpack.c.h.b16 %v78
  %v226 = vunpack.c.l.b16 %v79
  %v227 = vunpack.c.h.b16 %v79
  %v228 = vunpack.c.l.b16 %v80
  %v229 = vunpack.c.h.b16 %v80
  %v230 = vunpack.c.l.b16 %v81
  %v231 = vunpack.c.h.b16 %v81
  %v232 = vunpack.c.l.b16 %v82
  %v233 = vunpack.c.h.b16 %v82
  %v234 = vunpack.c.l.b16 %v83
  %v235 = vunpack.c.h.b16 %v83
  %v236 = vunpack.c.l.b16 %v84
  %v237 = vunpack.c.h.b16 %v84
  %v238 = vunpack.c.l.b16 %v85
  %v239 = vunpack.c.h.b16 %v85
  %v240 = vpack.c.b16 %v180, %v176
  %v241 = vpack.c.b16 %v181, %v177
  %v242 = vpack.c.b16 %v182, %v178
  %v243 = vpack.c.b16 %v183, %v179
  %v244 = vpack.c.b16 %v188, %v184
  %v245 = vpack.c.b16 %v189, %v185
  %v246 = vpack.c.b16 %v190, %v186
  %v247 = vpack.c.b16 %v191, %v187
  %v248 = vpack.c.b16 %v196, %v192
  %v249 = vpack.c.b16 %v197, %v193
  %v250 = vpack.c.b16 %v198, %v194
  %v251 = vpack.c.b16 %v199, %v195
  %v252 = vpack.c.b16 %v204, %v200
  %v253 = vpack.c.b16 %v205, %v201
  %v254 = vpack.c.b16 %v206, %v202
  %v255 = vpack.c.b16 %v207, %v203
  %v256 = vpack.c.b16 %v212, %v208
  %v257 = vpack.c.b16 %v213, %v209
  %v258 = vpack.c.b16 %v214, %v210
  %v259 = vpack.c.b16 %v215, %v211
  %v260 = vpack.c.b16 %v220, %v216
  %v261 = vpack.c.b16 %v221, %v217
  %v262 = vpack.c.b16 %v222, %v218
  %v263 = vpack.c.b16 %v223, %v219
  %v264 = vpack.c.b16 %v228, %v224
  %v265 = vpack.c.b16 %v229, %v225
  %v266 = vpack.c.b16 %v230, %v226
  %v267 = vpack.c.b16 %v231, %v227
  %v268 = vpack.c.b16 %v236, %v232
  %v269 = vpack.c.b16 %v237, %v233
  %v270 = vpack.c.b16 %v238, %v234
  %v271 = vpack.c.b16 %v239, %v235
  %304 = vmatpush.bf16.msra.mxu0 %v268
  %305 = vmatpush.bf16.msra.mxu0 %v264
  %306 = vmatpush.bf16.msra.mxu0 %v260
  %307 = vmatpush.bf16.msra.mxu0 %v256
  %308 = vmatpush.bf16.msra.mxu0 %v252
  %309 = vmatpush.bf16.msra.mxu0 %v248
  %310 = vmatpush.bf16.msra.mxu0 %v244
  %311 = vmatpush.bf16.msra.mxu0 %v240
  %312 = vmatmul.bf16.gmra.mxu0 %v128
  %v313 = vpop.f32.mrf.mxu0
  %v314 = vadd.f32 %v88, %v313
  %v315 = vpop.f32.mrf.mxu0
  %v316 = vadd.f32 %v88, %v315
  %317 = vmatmul.bf16.gmra.mxu0 %v129
  %v318 = vpop.f32.mrf.mxu0
  %v319 = vadd.f32 %v88, %v318
  %v320 = vpop.f32.mrf.mxu0
  %v321 = vadd.f32 %v88, %v320
  %322 = vmatmul.bf16.gmra.mxu0 %v130
  %v323 = vpop.f32.mrf.mxu0
  %v324 = vadd.f32 %v88, %v323
  %v325 = vpop.f32.mrf.mxu0
  %v326 = vadd.f32 %v88, %v325
  %327 = vmatmul.bf16.gmra.mxu0 %v131
  %v328 = vpop.f32.mrf.mxu0
  %v329 = vadd.f32 %v88, %v328
  %v330 = vpop.f32.mrf.mxu0
  %v331 = vadd.f32 %v88, %v330
  %332 = vmatmul.bf16.gmra.mxu0 %v132
  %v333 = vpop.f32.mrf.mxu0
  %v334 = vadd.f32 %v88, %v333
  %v335 = vpop.f32.mrf.mxu0
  %v336 = vadd.f32 %v88, %v335
  %337 = vmatmul.bf16.gmra.mxu0 %v133
  %v338 = vpop.f32.mrf.mxu0
  %v339 = vadd.f32 %v88, %v338
  %v340 = vpop.f32.mrf.mxu0
  %v341 = vadd.f32 %v88, %v340
  %342 = vmatmul.bf16.gmra.mxu0 %v134
  %v343 = vpop.f32.mrf.mxu0
  %v344 = vadd.f32 %v88, %v343
  %v345 = vpop.f32.mrf.mxu0
  %v346 = vadd.f32 %v88, %v345
  %347 = vmatmul.bf16.gmra.mxu0 %v135
  %v348 = vpop.f32.mrf.mxu0
  %v349 = vadd.f32 %v88, %v348
  %v350 = vpop.f32.mrf.mxu0
  %v351 = vadd.f32 %v88, %v350
  %352 = vdwg.mxu0
  %353 = vmatpush.bf16.msra.mxu0 %v269
  %354 = vmatpush.bf16.msra.mxu0 %v265
  %355 = vmatpush.bf16.msra.mxu0 %v261
  %356 = vmatpush.bf16.msra.mxu0 %v257
  %357 = vmatpush.bf16.msra.mxu0 %v253
  %358 = vmatpush.bf16.msra.mxu0 %v249
  %359 = vmatpush.bf16.msra.mxu0 %v245
  %360 = vmatpush.bf16.msra.mxu0 %v241
  %361 = vmatmul.bf16.gmra.mxu0 %v128
  %v362 = vpop.f32.mrf.mxu0
  %v363 = vadd.f32 %v89, %v362
  %v364 = vpop.f32.mrf.mxu0
  %v365 = vadd.f32 %v89, %v364
  %366 = vmatmul.bf16.gmra.mxu0 %v129
  %v367 = vpop.f32.mrf.mxu0
  %v368 = vadd.f32 %v89, %v367
  %v369 = vpop.f32.mrf.mxu0
  %v370 = vadd.f32 %v89, %v369
  %371 = vmatmul.bf16.gmra.mxu0 %v130
  %v372 = vpop.f32.mrf.mxu0
  %v373 = vadd.f32 %v89, %v372
  %v374 = vpop.f32.mrf.mxu0
  %v375 = vadd.f32 %v89, %v374
  %376 = vmatmul.bf16.gmra.mxu0 %v131
  %v377 = vpop.f32.mrf.mxu0
  %v378 = vadd.f32 %v89, %v377
  %v379 = vpop.f32.mrf.mxu0
  %v380 = vadd.f32 %v89, %v379
  %381 = vmatmul.bf16.gmra.mxu0 %v132
  %v382 = vpop.f32.mrf.mxu0
  %v383 = vadd.f32 %v89, %v382
  %v384 = vpop.f32.mrf.mxu0
  %v385 = vadd.f32 %v89, %v384
  %386 = vmatmul.bf16.gmra.mxu0 %v133
  %v387 = vpop.f32.mrf.mxu0
  %v388 = vadd.f32 %v89, %v387
  %v389 = vpop.f32.mrf.mxu0
  %v390 = vadd.f32 %v89, %v389
  %391 = vmatmul.bf16.gmra.mxu0 %v134
  %v392 = vpop.f32.mrf.mxu0
  %v393 = vadd.f32 %v89, %v392
  %v394 = vpop.f32.mrf.mxu0
  %v395 = vadd.f32 %v89, %v394
  %396 = vmatmul.bf16.gmra.mxu0 %v135
  %v397 = vpop.f32.mrf.mxu0
  %v398 = vadd.f32 %v89, %v397
  %v399 = vpop.f32.mrf.mxu0
  %v400 = vadd.f32 %v89, %v399
  %401 = vdwg.mxu0
  %402 = vmatpush.bf16.msra.mxu0 %v270
  %403 = vmatpush.bf16.msra.mxu0 %v266
  %404 = vmatpush.bf16.msra.mxu0 %v262
  %405 = vmatpush.bf16.msra.mxu0 %v258
  %406 = vmatpush.bf16.msra.mxu0 %v254
  %407 = vmatpush.bf16.msra.mxu0 %v250
  %408 = vmatpush.bf16.msra.mxu0 %v246
  %409 = vmatpush.bf16.msra.mxu0 %v242
  %410 = vmatmul.bf16.gmra.mxu0 %v128
  %v411 = vpop.f32.mrf.mxu0
  %v412 = vadd.f32 %v90, %v411
  %v413 = vpop.f32.mrf.mxu0
  %v414 = vadd.f32 %v90, %v413
  %415 = vmatmul.bf16.gmra.mxu0 %v129
  %v416 = vpop.f32.mrf.mxu0
  %v417 = vadd.f32 %v90, %v416
  %v418 = vpop.f32.mrf.mxu0
  %v419 = vadd.f32 %v90, %v418
  %420 = vmatmul.bf16.gmra.mxu0 %v130
  %v421 = vpop.f32.mrf.mxu0
  %v422 = vadd.f32 %v90, %v421
  %v423 = vpop.f32.mrf.mxu0
  %v424 = vadd.f32 %v90, %v423
  %425 = vmatmul.bf16.gmra.mxu0 %v131
  %v426 = vpop.f32.mrf.mxu0
  %v427 = vadd.f32 %v90, %v426
  %v428 = vpop.f32.mrf.mxu0
  %v429 = vadd.f32 %v90, %v428
  %430 = vmatmul.bf16.gmra.mxu0 %v132
  %v431 = vpop.f32.mrf.mxu0
  %v432 = vadd.f32 %v90, %v431
  %v433 = vpop.f32.mrf.mxu0
  %v434 = vadd.f32 %v90, %v433
  %435 = vmatmul.bf16.gmra.mxu0 %v133
  %v436 = vpop.f32.mrf.mxu0
  %v437 = vadd.f32 %v90, %v436
  %v438 = vpop.f32.mrf.mxu0
  %v439 = vadd.f32 %v90, %v438
  %440 = vmatmul.bf16.gmra.mxu0 %v134
  %v441 = vpop.f32.mrf.mxu0
  %v442 = vadd.f32 %v90, %v441
  %v443 = vpop.f32.mrf.mxu0
  %v444 = vadd.f32 %v90, %v443
  %445 = vmatmul.bf16.gmra.mxu0 %v135
  %v446 = vpop.f32.mrf.mxu0
  %v447 = vadd.f32 %v90, %v446
  %v448 = vpop.f32.mrf.mxu0
  %v449 = vadd.f32 %v90, %v448
  %450 = vdwg.mxu0
  %451 = vmatpush.bf16.msra.mxu0 %v271
  %452 = vmatpush.bf16.msra.mxu0 %v267
  %453 = vmatpush.bf16.msra.mxu0 %v263
  %454 = vmatpush.bf16.msra.mxu0 %v259
  %455 = vmatpush.bf16.msra.mxu0 %v255
  %456 = vmatpush.bf16.msra.mxu0 %v251
  %457 = vmatpush.bf16.msra.mxu0 %v247
  %458 = vmatpush.bf16.msra.mxu0 %v243
  %459 = vmatmul.bf16.gmra.mxu0 %v128
  %v460 = vpop.f32.mrf.mxu0
  %v461 = vadd.f32 %v91, %v460
  %v462 = vpop.f32.mrf.mxu0
  %v463 = vadd.f32 %v91, %v462
  %464 = vmatmul.bf16.gmra.mxu0 %v129
  %v465 = vpop.f32.mrf.mxu0
  %v466 = vadd.f32 %v91, %v465
  %v467 = vpop.f32.mrf.mxu0
  %v468 = vadd.f32 %v91, %v467
  %469 = vmatmul.bf16.gmra.mxu0 %v130
  %v470 = vpop.f32.mrf.mxu0
  %v471 = vadd.f32 %v91, %v470
  %v472 = vpop.f32.mrf.mxu0
  %v473 = vadd.f32 %v91, %v472
  %474 = vmatmul.bf16.gmra.mxu0 %v131
  %v475 = vpop.f32.mrf.mxu0
  %v476 = vadd.f32 %v91, %v475
  %v477 = vpop.f32.mrf.mxu0
  %v478 = vadd.f32 %v91, %v477
  %479 = vmatmul.bf16.gmra.mxu0 %v132
  %v480 = vpop.f32.mrf.mxu0
  %v481 = vadd.f32 %v91, %v480
  %v482 = vpop.f32.mrf.mxu0
  %v483 = vadd.f32 %v91, %v482
  %484 = vmatmul.bf16.gmra.mxu0 %v133
  %v485 = vpop.f32.mrf.mxu0
  %v486 = vadd.f32 %v91, %v485
  %v487 = vpop.f32.mrf.mxu0
  %v488 = vadd.f32 %v91, %v487
  %489 = vmatmul.bf16.gmra.mxu0 %v134
  %v490 = vpop.f32.mrf.mxu0
  %v491 = vadd.f32 %v91, %v490
  %v492 = vpop.f32.mrf.mxu0
  %v493 = vadd.f32 %v91, %v492
  %494 = vmatmul.bf16.gmra.mxu0 %v135
  %v495 = vpop.f32.mrf.mxu0
  %v496 = vadd.f32 %v91, %v495
  %v497 = vpop.f32.mrf.mxu0
  %v498 = vadd.f32 %v91, %v497
  %499 = vdwg.mxu0
  %v500 = vmax.f32 %v314, 0.0
  %v501 = vmax.f32 %v363, 0.0
  %v502 = vmax.f32 %v412, 0.0
  %v503 = vmax.f32 %v461, 0.0
  %v504 = vmax.f32 %v316, 0.0
  %v505 = vmax.f32 %v365, 0.0
  %v506 = vmax.f32 %v414, 0.0
  %v507 = vmax.f32 %v463, 0.0
  %v508 = vmax.f32 %v319, 0.0
  %v509 = vmax.f32 %v368, 0.0
  %v510 = vmax.f32 %v417, 0.0
  %v511 = vmax.f32 %v466, 0.0
  %v512 = vmax.f32 %v321, 0.0
  %v513 = vmax.f32 %v370, 0.0
  %v514 = vmax.f32 %v419, 0.0
  %v515 = vmax.f32 %v468, 0.0
  %v516 = vmax.f32 %v324, 0.0
  %v517 = vmax.f32 %v373, 0.0
  %v518 = vmax.f32 %v422, 0.0
  %v519 = vmax.f32 %v471, 0.0
  %v520 = vmax.f32 %v326, 0.0
  %v521 = vmax.f32 %v375, 0.0
  %v522 = vmax.f32 %v424, 0.0
  %v523 = vmax.f32 %v473, 0.0
  %v524 = vmax.f32 %v329, 0.0
  %v525 = vmax.f32 %v378, 0.0
  %v526 = vmax.f32 %v427, 0.0
  %v527 = vmax.f32 %v476, 0.0
  %v528 = vmax.f32 %v331, 0.0
  %v529 = vmax.f32 %v380, 0.0
  %v530 = vmax.f32 %v429, 0.0
  %v531 = vmax.f32 %v478, 0.0
  %v532 = vmax.f32 %v334, 0.0
  %v533 = vmax.f32 %v383, 0.0
  %v534 = vmax.f32 %v432, 0.0
  %v535 = vmax.f32 %v481, 0.0
  %v536 = vmax.f32 %v336, 0.0
  %v537 = vmax.f32 %v385, 0.0
  %v538 = vmax.f32 %v434, 0.0
  %v539 = vmax.f32 %v483, 0.0
  %v540 = vmax.f32 %v339, 0.0
  %v541 = vmax.f32 %v388, 0.0
  %v542 = vmax.f32 %v437, 0.0
  %v543 = vmax.f32 %v486, 0.0
  %v544 = vmax.f32 %v341, 0.0
  %v545 = vmax.f32 %v390, 0.0
  %v546 = vmax.f32 %v439, 0.0
  %v547 = vmax.f32 %v488, 0.0
  %v548 = vmax.f32 %v344, 0.0
  %v549 = vmax.f32 %v393, 0.0
  %v550 = vmax.f32 %v442, 0.0
  %v551 = vmax.f32 %v491, 0.0
  %v552 = vmax.f32 %v346, 0.0
  %v553 = vmax.f32 %v395, 0.0
  %v554 = vmax.f32 %v444, 0.0
  %v555 = vmax.f32 %v493, 0.0
  %v556 = vmax.f32 %v349, 0.0
  %v557 = vmax.f32 %v398, 0.0
  %v558 = vmax.f32 %v447, 0.0
  %v559 = vmax.f32 %v496, 0.0
  %v560 = vmax.f32 %v351, 0.0
  %v561 = vmax.f32 %v400, 0.0
  %v562 = vmax.f32 %v449, 0.0
  %v563 = vmax.f32 %v498, 0.0
  %v564 = vpack.c.bf16 %v504, %v500
  %v565 = vpack.c.bf16 %v505, %v501
  %v566 = vpack.c.bf16 %v506, %v502
  %v567 = vpack.c.bf16 %v507, %v503
  %v568 = vpack.c.bf16 %v512, %v508
  %v569 = vpack.c.bf16 %v513, %v509
  %v570 = vpack.c.bf16 %v514, %v510
  %v571 = vpack.c.bf16 %v515, %v511
  %v572 = vpack.c.bf16 %v520, %v516
  %v573 = vpack.c.bf16 %v521, %v517
  %v574 = vpack.c.bf16 %v522, %v518
  %v575 = vpack.c.bf16 %v523, %v519
  %v576 = vpack.c.bf16 %v528, %v524
  %v577 = vpack.c.bf16 %v529, %v525
  %v578 = vpack.c.bf16 %v530, %v526
  %v579 = vpack.c.bf16 %v531, %v527
  %v580 = vpack.c.bf16 %v536, %v532
  %v581 = vpack.c.bf16 %v537, %v533
  %v582 = vpack.c.bf16 %v538, %v534
  %v583 = vpack.c.bf16 %v539, %v535
  %v584 = vpack.c.bf16 %v544, %v540
  %v585 = vpack.c.bf16 %v545, %v541
  %v586 = vpack.c.bf16 %v546, %v542
  %v587 = vpack.c.bf16 %v547, %v543
  %v588 = vpack.c.bf16 %v552, %v548
  %v589 = vpack.c.bf16 %v553, %v549
  %v590 = vpack.c.bf16 %v554, %v550
  %v591 = vpack.c.bf16 %v555, %v551
  %v592 = vpack.c.bf16 %v560, %v556
  %v593 = vpack.c.bf16 %v561, %v557
  %v594 = vpack.c.bf16 %v562, %v558
  %v595 = vpack.c.bf16 %v563, %v559
  %v596 = vld [vmem:[%s3] sm:$0xff]
  %v597 = vld [vmem:[%s3 + $0x8] sm:$0xff]
  %v598 = vld [vmem:[%s3 + $0x10] sm:$0xff]
  %v599 = vld [vmem:[%s3 + $0x18] sm:$0xff]
  %v600 = vld [vmem:[%s3 + $0x20] sm:$0xff]
  %v601 = vld [vmem:[%s3 + $0x28] sm:$0xff]
  %v602 = vld [vmem:[%s3 + $0x30] sm:$0xff]
  %v603 = vld [vmem:[%s3 + $0x38] sm:$0xff]
  %v604 = vld [vmem:[%s3 + $0x40] sm:$0xff]
  %v605 = vld [vmem:[%s3 + $0x48] sm:$0xff]
  %v606 = vld [vmem:[%s3 + $0x50] sm:$0xff]
  %v607 = vld [vmem:[%s3 + $0x58] sm:$0xff]
  %v608 = vld [vmem:[%s3 + $0x60] sm:$0xff]
  %v609 = vld [vmem:[%s3 + $0x68] sm:$0xff]
  %v610 = vld [vmem:[%s3 + $0x70] sm:$0xff]
  %v611 = vld [vmem:[%s3 + $0x78] sm:$0xff]
  %v612 = vld [vmem:[%s3 + $0x80] sm:$0xff]
  %v613 = vld [vmem:[%s3 + $0x88] sm:$0xff]
  %v614 = vld [vmem:[%s3 + $0x90] sm:$0xff]
  %v615 = vld [vmem:[%s3 + $0x98] sm:$0xff]
  %v616 = vld [vmem:[%s3 + $0xa0] sm:$0xff]
  %v617 = vld [vmem:[%s3 + $0xa8] sm:$0xff]
  %v618 = vld [vmem:[%s3 + $0xb0] sm:$0xff]
  %v619 = vld [vmem:[%s3 + $0xb8] sm:$0xff]
  %v620 = vld [vmem:[%s3 + $0xc0] sm:$0xff]
  %v621 = vld [vmem:[%s3 + $0xc8] sm:$0xff]
  %v622 = vld [vmem:[%s3 + $0xd0] sm:$0xff]
  %v623 = vld [vmem:[%s3 + $0xd8] sm:$0xff]
  %v624 = vld [vmem:[%s3 + $0xe0] sm:$0xff]
  %v625 = vld [vmem:[%s3 + $0xe8] sm:$0xff]
  %v626 = vld [vmem:[%s3 + $0xf0] sm:$0xff]
  %v627 = vld [vmem:[%s3 + $0xf8] sm:$0xff]
  %v628 = vld [vmem:[%s3 + $0x100] sm:$0xff]
  %v629 = vld [vmem:[%s3 + $0x108] sm:$0xff]
  %v630 = vld [vmem:[%s3 + $0x110] sm:$0xff]
  %v631 = vld [vmem:[%s3 + $0x118] sm:$0xff]
  %v632 = vld [vmem:[%s3 + $0x120] sm:$0xff]
  %v633 = vld [vmem:[%s3 + $0x128] sm:$0xff]
  %v634 = vld [vmem:[%s3 + $0x130] sm:$0xff]
  %v635 = vld [vmem:[%s3 + $0x138] sm:$0xff]
  %v636 = vld [vmem:[%s3 + $0x140] sm:$0xff]
  %v637 = vld [vmem:[%s3 + $0x148] sm:$0xff]
  %v638 = vld [vmem:[%s3 + $0x150] sm:$0xff]
  %v639 = vld [vmem:[%s3 + $0x158] sm:$0xff]
  %v640 = vld [vmem:[%s3 + $0x160] sm:$0xff]
  %v641 = vld [vmem:[%s3 + $0x168] sm:$0xff]
  %v642 = vld [vmem:[%s3 + $0x170] sm:$0xff]
  %v643 = vld [vmem:[%s3 + $0x178] sm:$0xff]
  %v644 = vld [vmem:[%s3 + $0x180] sm:$0xff]
  %v645 = vld [vmem:[%s3 + $0x188] sm:$0xff]
  %v646 = vld [vmem:[%s3 + $0x190] sm:$0xff]
  %v647 = vld [vmem:[%s3 + $0x198] sm:$0xff]
  %v648 = vld [vmem:[%s3 + $0x1a0] sm:$0xff]
  %v649 = vld [vmem:[%s3 + $0x1a8] sm:$0xff]
  %v650 = vld [vmem:[%s3 + $0x1b0] sm:$0xff]
  %v651 = vld [vmem:[%s3 + $0x1b8] sm:$0xff]
  %v652 = vld [vmem:[%s3 + $0x1c0] sm:$0xff]
  %v653 = vld [vmem:[%s3 + $0x1c8] sm:$0xff]
  %v654 = vld [vmem:[%s3 + $0x1d0] sm:$0xff]
  %v655 = vld [vmem:[%s3 + $0x1d8] sm:$0xff]
  %v656 = vld [vmem:[%s3 + $0x1e0] sm:$0xff]
  %v657 = vld [vmem:[%s3 + $0x1e8] sm:$0xff]
  %v658 = vld [vmem:[%s3 + $0x1f0] sm:$0xff]
  %v659 = vld [vmem:[%s3 + $0x1f8] sm:$0xff]
  %v660 = vld [vmem:[%s3 + $0x200] sm:$0xff]
  %v661 = vld [vmem:[%s3 + $0x208] sm:$0xff]
  %v662 = vld [vmem:[%s3 + $0x210] sm:$0xff]
  %v663 = vld [vmem:[%s3 + $0x218] sm:$0xff]
  %v664 = vld [vmem:[%s3 + $0x220] sm:$0xff]
  %v665 = vld [vmem:[%s3 + $0x228] sm:$0xff]
  %v666 = vld [vmem:[%s3 + $0x230] sm:$0xff]
  %v667 = vld [vmem:[%s3 + $0x238] sm:$0xff]
  %v668 = vld [vmem:[%s3 + $0x240] sm:$0xff]
  %v669 = vld [vmem:[%s3 + $0x248] sm:$0xff]
  %v670 = vld [vmem:[%s3 + $0x250] sm:$0xff]
  %v671 = vld [vmem:[%s3 + $0x258] sm:$0xff]
  %v672 = vld [vmem:[%s3 + $0x260] sm:$0xff]
  %v673 = vld [vmem:[%s3 + $0x268] sm:$0xff]
  %v674 = vld [vmem:[%s3 + $0x270] sm:$0xff]
  %v675 = vld [vmem:[%s3 + $0x278] sm:$0xff]
  %v676 = vld [vmem:[%s3 + $0x280] sm:$0xff]
  %v677 = vld [vmem:[%s3 + $0x288] sm:$0xff]
  %v678 = vld [vmem:[%s3 + $0x290] sm:$0xff]
  %v679 = vld [vmem:[%s3 + $0x298] sm:$0xff]
  %v680 = vld [vmem:[%s3 + $0x2a0] sm:$0xff]
  %v681 = vld [vmem:[%s3 + $0x2a8] sm:$0xff]
  %v682 = vld [vmem:[%s3 + $0x2b0] sm:$0xff]
  %v683 = vld [vmem:[%s3 + $0x2b8] sm:$0xff]
  %v684 = vld [vmem:[%s3 + $0x2c0] sm:$0xff]
  %v685 = vld [vmem:[%s3 + $0x2c8] sm:$0xff]
  %v686 = vld [vmem:[%s3 + $0x2d0] sm:$0xff]
  %v687 = vld [vmem:[%s3 + $0x2d8] sm:$0xff]
  %v688 = vld [vmem:[%s3 + $0x2e0] sm:$0xff]
  %v689 = vld [vmem:[%s3 + $0x2e8] sm:$0xff]
  %v690 = vld [vmem:[%s3 + $0x2f0] sm:$0xff]
  %v691 = vld [vmem:[%s3 + $0x2f8] sm:$0xff]
  %v692 = vld [vmem:[%s3 + $0x300] sm:$0xff]
  %v693 = vld [vmem:[%s3 + $0x308] sm:$0xff]
  %v694 = vld [vmem:[%s3 + $0x310] sm:$0xff]
  %v695 = vld [vmem:[%s3 + $0x318] sm:$0xff]
  %v696 = vld [vmem:[%s3 + $0x320] sm:$0xff]
  %v697 = vld [vmem:[%s3 + $0x328] sm:$0xff]
  %v698 = vld [vmem:[%s3 + $0x330] sm:$0xff]
  %v699 = vld [vmem:[%s3 + $0x338] sm:$0xff]
  %v700 = vld [vmem:[%s3 + $0x340] sm:$0xff]
  %v701 = vld [vmem:[%s3 + $0x348] sm:$0xff]
  %v702 = vld [vmem:[%s3 + $0x350] sm:$0xff]
  %v703 = vld [vmem:[%s3 + $0x358] sm:$0xff]
  %v704 = vld [vmem:[%s3 + $0x360] sm:$0xff]
  %v705 = vld [vmem:[%s3 + $0x368] sm:$0xff]
  %v706 = vld [vmem:[%s3 + $0x370] sm:$0xff]
  %v707 = vld [vmem:[%s3 + $0x378] sm:$0xff]
  %v708 = vld [vmem:[%s3 + $0x380] sm:$0xff]
  %v709 = vld [vmem:[%s3 + $0x388] sm:$0xff]
  %v710 = vld [vmem:[%s3 + $0x390] sm:$0xff]
  %v711 = vld [vmem:[%s3 + $0x398] sm:$0xff]
  %v712 = vld [vmem:[%s3 + $0x3a0] sm:$0xff]
  %v713 = vld [vmem:[%s3 + $0x3a8] sm:$0xff]
  %v714 = vld [vmem:[%s3 + $0x3b0] sm:$0xff]
  %v715 = vld [vmem:[%s3 + $0x3b8] sm:$0xff]
  %v716 = vld [vmem:[%s3 + $0x3c0] sm:$0xff]
  %v717 = vld [vmem:[%s3 + $0x3c8] sm:$0xff]
  %v718 = vld [vmem:[%s3 + $0x3d0] sm:$0xff]
  %v719 = vld [vmem:[%s3 + $0x3d8] sm:$0xff]
  %v720 = vld [vmem:[%s3 + $0x3e0] sm:$0xff]
  %v721 = vld [vmem:[%s3 + $0x3e8] sm:$0xff]
  %v722 = vld [vmem:[%s3 + $0x3f0] sm:$0xff]
  %v723 = vld [vmem:[%s3 + $0x3f8] sm:$0xff]
  %v724 = vld [vmem:[%s4] sm:$0xf]
  %v726 = vperm.slane %v724, 0
  %v727 = vperm.slane %v724, 1
  %v728 = vperm.slane %v724, 2
  %v729 = vperm.slane %v724, 3
  %v862 = vunpack.c.l.b16 %v596
  %v863 = vunpack.c.h.b16 %v596
  %v864 = vunpack.c.l.b16 %v597
  %v865 = vunpack.c.h.b16 %v597
  %v866 = vunpack.c.l.b16 %v598
  %v867 = vunpack.c.h.b16 %v598
  %v868 = vunpack.c.l.b16 %v599
  %v869 = vunpack.c.h.b16 %v599
  %v870 = vunpack.c.l.b16 %v600
  %v871 = vunpack.c.h.b16 %v600
  %v872 = vunpack.c.l.b16 %v601
  %v873 = vunpack.c.h.b16 %v601
  %v874 = vunpack.c.l.b16 %v602
  %v875 = vunpack.c.h.b16 %v602
  %v876 = vunpack.c.l.b16 %v603
  %v877 = vunpack.c.h.b16 %v603
  %v878 = vunpack.c.l.b16 %v604
  %v879 = vunpack.c.h.b16 %v604
  %v880 = vunpack.c.l.b16 %v605
  %v881 = vunpack.c.h.b16 %v605
  %v882 = vunpack.c.l.b16 %v606
  %v883 = vunpack.c.h.b16 %v606
  %v884 = vunpack.c.l.b16 %v607
  %v885 = vunpack.c.h.b16 %v607
  %v886 = vunpack.c.l.b16 %v608
  %v887 = vunpack.c.h.b16 %v608
  %v888 = vunpack.c.l.b16 %v609
  %v889 = vunpack.c.h.b16 %v609
  %v890 = vunpack.c.l.b16 %v610
  %v891 = vunpack.c.h.b16 %v610
  %v892 = vunpack.c.l.b16 %v611
  %v893 = vunpack.c.h.b16 %v611
  %v894 = vunpack.c.l.b16 %v612
  %v895 = vunpack.c.h.b16 %v612
  %v896 = vunpack.c.l.b16 %v613
  %v897 = vunpack.c.h.b16 %v613
  %v898 = vunpack.c.l.b16 %v614
  %v899 = vunpack.c.h.b16 %v614
  %v900 = vunpack.c.l.b16 %v615
  %v901 = vunpack.c.h.b16 %v615
  %v902 = vunpack.c.l.b16 %v616
  %v903 = vunpack.c.h.b16 %v616
  %v904 = vunpack.c.l.b16 %v617
  %v905 = vunpack.c.h.b16 %v617
  %v906 = vunpack.c.l.b16 %v618
  %v907 = vunpack.c.h.b16 %v618
  %v908 = vunpack.c.l.b16 %v619
  %v909 = vunpack.c.h.b16 %v619
  %v910 = vunpack.c.l.b16 %v620
  %v911 = vunpack.c.h.b16 %v620
  %v912 = vunpack.c.l.b16 %v621
  %v913 = vunpack.c.h.b16 %v621
  %v914 = vunpack.c.l.b16 %v622
  %v915 = vunpack.c.h.b16 %v622
  %v916 = vunpack.c.l.b16 %v623
  %v917 = vunpack.c.h.b16 %v623
  %v918 = vunpack.c.l.b16 %v624
  %v919 = vunpack.c.h.b16 %v624
  %v920 = vunpack.c.l.b16 %v625
  %v921 = vunpack.c.h.b16 %v625
  %v922 = vunpack.c.l.b16 %v626
  %v923 = vunpack.c.h.b16 %v626
  %v924 = vunpack.c.l.b16 %v627
  %v925 = vunpack.c.h.b16 %v627
  %v926 = vunpack.c.l.b16 %v628
  %v927 = vunpack.c.h.b16 %v628
  %v928 = vunpack.c.l.b16 %v629
  %v929 = vunpack.c.h.b16 %v629
  %v930 = vunpack.c.l.b16 %v630
  %v931 = vunpack.c.h.b16 %v630
  %v932 = vunpack.c.l.b16 %v631
  %v933 = vunpack.c.h.b16 %v631
  %v934 = vunpack.c.l.b16 %v632
  %v935 = vunpack.c.h.b16 %v632
  %v936 = vunpack.c.l.b16 %v633
  %v937 = vunpack.c.h.b16 %v633
  %v938 = vunpack.c.l.b16 %v634
  %v939 = vunpack.c.h.b16 %v634
  %v940 = vunpack.c.l.b16 %v635
  %v941 = vunpack.c.h.b16 %v635
  %v942 = vunpack.c.l.b16 %v636
  %v943 = vunpack.c.h.b16 %v636
  %v944 = vunpack.c.l.b16 %v637
  %v945 = vunpack.c.h.b16 %v637
  %v946 = vunpack.c.l.b16 %v638
  %v947 = vunpack.c.h.b16 %v638
  %v948 = vunpack.c.l.b16 %v639
  %v949 = vunpack.c.h.b16 %v639
  %v950 = vunpack.c.l.b16 %v640
  %v951 = vunpack.c.h.b16 %v640
  %v952 = vunpack.c.l.b16 %v641
  %v953 = vunpack.c.h.b16 %v641
  %v954 = vunpack.c.l.b16 %v642
  %v955 = vunpack.c.h.b16 %v642
  %v956 = vunpack.c.l.b16 %v643
  %v957 = vunpack.c.h.b16 %v643
  %v958 = vunpack.c.l.b16 %v644
  %v959 = vunpack.c.h.b16 %v644
  %v960 = vunpack.c.l.b16 %v645
  %v961 = vunpack.c.h.b16 %v645
  %v962 = vunpack.c.l.b16 %v646
  %v963 = vunpack.c.h.b16 %v646
  %v964 = vunpack.c.l.b16 %v647
  %v965 = vunpack.c.h.b16 %v647
  %v966 = vunpack.c.l.b16 %v648
  %v967 = vunpack.c.h.b16 %v648
  %v968 = vunpack.c.l.b16 %v649
  %v969 = vunpack.c.h.b16 %v649
  %v970 = vunpack.c.l.b16 %v650
  %v971 = vunpack.c.h.b16 %v650
  %v972 = vunpack.c.l.b16 %v651
  %v973 = vunpack.c.h.b16 %v651
  %v974 = vunpack.c.l.b16 %v652
  %v975 = vunpack.c.h.b16 %v652
  %v976 = vunpack.c.l.b16 %v653
  %v977 = vunpack.c.h.b16 %v653
  %v978 = vunpack.c.l.b16 %v654
  %v979 = vunpack.c.h.b16 %v654
  %v980 = vunpack.c.l.b16 %v655
  %v981 = vunpack.c.h.b16 %v655
  %v982 = vunpack.c.l.b16 %v656
  %v983 = vunpack.c.h.b16 %v656
  %v984 = vunpack.c.l.b16 %v657
  %v985 = vunpack.c.h.b16 %v657
  %v986 = vunpack.c.l.b16 %v658
  %v987 = vunpack.c.h.b16 %v658
  %v988 = vunpack.c.l.b16 %v659
  %v989 = vunpack.c.h.b16 %v659
  %v990 = vunpack.c.l.b16 %v660
  %v991 = vunpack.c.h.b16 %v660
  %v992 = vunpack.c.l.b16 %v661
  %v993 = vunpack.c.h.b16 %v661
  %v994 = vunpack.c.l.b16 %v662
  %v995 = vunpack.c.h.b16 %v662
  %v996 = vunpack.c.l.b16 %v663
  %v997 = vunpack.c.h.b16 %v663
  %v998 = vunpack.c.l.b16 %v664
  %v999 = vunpack.c.h.b16 %v664
  %v1000 = vunpack.c.l.b16 %v665
  %v1001 = vunpack.c.h.b16 %v665
  %v1002 = vunpack.c.l.b16 %v666
  %v1003 = vunpack.c.h.b16 %v666
  %v1004 = vunpack.c.l.b16 %v667
  %v1005 = vunpack.c.h.b16 %v667
  %v1006 = vunpack.c.l.b16 %v668
  %v1007 = vunpack.c.h.b16 %v668
  %v1008 = vunpack.c.l.b16 %v669
  %v1009 = vunpack.c.h.b16 %v669
  %v1010 = vunpack.c.l.b16 %v670
  %v1011 = vunpack.c.h.b16 %v670
  %v1012 = vunpack.c.l.b16 %v671
  %v1013 = vunpack.c.h.b16 %v671
  %v1014 = vunpack.c.l.b16 %v672
  %v1015 = vunpack.c.h.b16 %v672
  %v1016 = vunpack.c.l.b16 %v673
  %v1017 = vunpack.c.h.b16 %v673
  %v1018 = vunpack.c.l.b16 %v674
  %v1019 = vunpack.c.h.b16 %v674
  %v1020 = vunpack.c.l.b16 %v675
  %v1021 = vunpack.c.h.b16 %v675
  %v1022 = vunpack.c.l.b16 %v676
  %v1023 = vunpack.c.h.b16 %v676
  %v1024 = vunpack.c.l.b16 %v677
  %v1025 = vunpack.c.h.b16 %v677
  %v1026 = vunpack.c.l.b16 %v678
  %v1027 = vunpack.c.h.b16 %v678
  %v1028 = vunpack.c.l.b16 %v679
  %v1029 = vunpack.c.h.b16 %v679
  %v1030 = vunpack.c.l.b16 %v680
  %v1031 = vunpack.c.h.b16 %v680
  %v1032 = vunpack.c.l.b16 %v681
  %v1033 = vunpack.c.h.b16 %v681
  %v1034 = vunpack.c.l.b16 %v682
  %v1035 = vunpack.c.h.b16 %v682
  %v1036 = vunpack.c.l.b16 %v683
  %v1037 = vunpack.c.h.b16 %v683
  %v1038 = vunpack.c.l.b16 %v684
  %v1039 = vunpack.c.h.b16 %v684
  %v1040 = vunpack.c.l.b16 %v685
  %v1041 = vunpack.c.h.b16 %v685
  %v1042 = vunpack.c.l.b16 %v686
  %v1043 = vunpack.c.h.b16 %v686
  %v1044 = vunpack.c.l.b16 %v687
  %v1045 = vunpack.c.h.b16 %v687
  %v1046 = vunpack.c.l.b16 %v688
  %v1047 = vunpack.c.h.b16 %v688
  %v1048 = vunpack.c.l.b16 %v689
  %v1049 = vunpack.c.h.b16 %v689
  %v1050 = vunpack.c.l.b16 %v690
  %v1051 = vunpack.c.h.b16 %v690
  %v1052 = vunpack.c.l.b16 %v691
  %v1053 = vunpack.c.h.b16 %v691
  %v1054 = vunpack.c.l.b16 %v692
  %v1055 = vunpack.c.h.b16 %v692
  %v1056 = vunpack.c.l.b16 %v693
  %v1057 = vunpack.c.h.b16 %v693
  %v1058 = vunpack.c.l.b16 %v694
  %v1059 = vunpack.c.h.b16 %v694
  %v1060 = vunpack.c.l.b16 %v695
  %v1061 = vunpack.c.h.b16 %v695
  %v1062 = vunpack.c.l.b16 %v696
  %v1063 = vunpack.c.h.b16 %v696
  %v1064 = vunpack.c.l.b16 %v697
  %v1065 = vunpack.c.h.b16 %v697
  %v1066 = vunpack.c.l.b16 %v698
  %v1067 = vunpack.c.h.b16 %v698
  %v1068 = vunpack.c.l.b16 %v699
  %v1069 = vunpack.c.h.b16 %v699
  %v1070 = vunpack.c.l.b16 %v700
  %v1071 = vunpack.c.h.b16 %v700
  %v1072 = vunpack.c.l.b16 %v701
  %v1073 = vunpack.c.h.b16 %v701
  %v1074 = vunpack.c.l.b16 %v702
  %v1075 = vunpack.c.h.b16 %v702
  %v1076 = vunpack.c.l.b16 %v703
  %v1077 = vunpack.c.h.b16 %v703
  %v1078 = vunpack.c.l.b16 %v704
  %v1079 = vunpack.c.h.b16 %v704
  %v1080 = vunpack.c.l.b16 %v705
  %v1081 = vunpack.c.h.b16 %v705
  %v1082 = vunpack.c.l.b16 %v706
  %v1083 = vunpack.c.h.b16 %v706
  %v1084 = vunpack.c.l.b16 %v707
  %v1085 = vunpack.c.h.b16 %v707
  %v1086 = vunpack.c.l.b16 %v708
  %v1087 = vunpack.c.h.b16 %v708
  %v1088 = vunpack.c.l.b16 %v709
  %v1089 = vunpack.c.h.b16 %v709
  %v1090 = vunpack.c.l.b16 %v710
  %v1091 = vunpack.c.h.b16 %v710
  %v1092 = vunpack.c.l.b16 %v711
  %v1093 = vunpack.c.h.b16 %v711
  %v1094 = vunpack.c.l.b16 %v712
  %v1095 = vunpack.c.h.b16 %v712
  %v1096 = vunpack.c.l.b16 %v713
  %v1097 = vunpack.c.h.b16 %v713
  %v1098 = vunpack.c.l.b16 %v714
  %v1099 = vunpack.c.h.b16 %v714
  %v1100 = vunpack.c.l.b16 %v715
  %v1101 = vunpack.c.h.b16 %v715
  %v1102 = vunpack.c.l.b16 %v716
  %v1103 = vunpack.c.h.b16 %v716
  %v1104 = vunpack.c.l.b16 %v717
  %v1105 = vunpack.c.h.b16 %v717
  %v1106 = vunpack.c.l.b16 %v718
  %v1107 = vunpack.c.h.b16 %v718
  %v1108 = vunpack.c.l.b16 %v719
  %v1109 = vunpack.c.h.b16 %v719
  %v1110 = vunpack.c.l.b16 %v720
  %v1111 = vunpack.c.h.b16 %v720
  %v1112 = vunpack.c.l.b16 %v721
  %v1113 = vunpack.c.h.b16 %v721
  %v1114 = vunpack.c.l.b16 %v722
  %v1115 = vunpack.c.h.b16 %v722
  %v1116 = vunpack.c.l.b16 %v723
  %v1117 = vunpack.c.h.b16 %v723
  %v1118 = vpack.c.b16 %v866, %v862
  %v1119 = vpack.c.b16 %v867, %v863
  %v1120 = vpack.c.b16 %v868, %v864
  %v1121 = vpack.c.b16 %v869, %v865
  %v1122 = vpack.c.b16 %v874, %v870
  %v1123 = vpack.c.b16 %v875, %v871
  %v1124 = vpack.c.b16 %v876, %v872
  %v1125 = vpack.c.b16 %v877, %v873
  %v1126 = vpack.c.b16 %v882, %v878
  %v1127 = vpack.c.b16 %v883, %v879
  %v1128 = vpack.c.b16 %v884, %v880
  %v1129 = vpack.c.b16 %v885, %v881
  %v1130 = vpack.c.b16 %v890, %v886
  %v1131 = vpack.c.b16 %v891, %v887
  %v1132 = vpack.c.b16 %v892, %v888
  %v1133 = vpack.c.b16 %v893, %v889
  %v1134 = vpack.c.b16 %v898, %v894
  %v1135 = vpack.c.b16 %v899, %v895
  %v1136 = vpack.c.b16 %v900, %v896
  %v1137 = vpack.c.b16 %v901, %v897
  %v1138 = vpack.c.b16 %v906, %v902
  %v1139 = vpack.c.b16 %v907, %v903
  %v1140 = vpack.c.b16 %v908, %v904
  %v1141 = vpack.c.b16 %v909, %v905
  %v1142 = vpack.c.b16 %v914, %v910
  %v1143 = vpack.c.b16 %v915, %v911
  %v1144 = vpack.c.b16 %v916, %v912
  %v1145 = vpack.c.b16 %v917, %v913
  %v1146 = vpack.c.b16 %v922, %v918
  %v1147 = vpack.c.b16 %v923, %v919
  %v1148 = vpack.c.b16 %v924, %v920
  %v1149 = vpack.c.b16 %v925, %v921
  %v1150 = vpack.c.b16 %v930, %v926
  %v1151 = vpack.c.b16 %v931, %v927
  %v1152 = vpack.c.b16 %v932, %v928
  %v1153 = vpack.c.b16 %v933, %v929
  %v1154 = vpack.c.b16 %v938, %v934
  %v1155 = vpack.c.b16 %v939, %v935
  %v1156 = vpack.c.b16 %v940, %v936
  %v1157 = vpack.c.b16 %v941, %v937
  %v1158 = vpack.c.b16 %v946, %v942
  %v1159 = vpack.c.b16 %v947, %v943
  %v1160 = vpack.c.b16 %v948, %v944
  %v1161 = vpack.c.b16 %v949, %v945
  %v1162 = vpack.c.b16 %v954, %v950
  %v1163 = vpack.c.b16 %v955, %v951
  %v1164 = vpack.c.b16 %v956, %v952
  %v1165 = vpack.c.b16 %v957, %v953
  %v1166 = vpack.c.b16 %v962, %v958
  %v1167 = vpack.c.b16 %v963, %v959
  %v1168 = vpack.c.b16 %v964, %v960
  %v1169 = vpack.c.b16 %v965, %v961
  %v1170 = vpack.c.b16 %v970, %v966
  %v1171 = vpack.c.b16 %v971, %v967
  %v1172 = vpack.c.b16 %v972, %v968
  %v1173 = vpack.c.b16 %v973, %v969
  %v1174 = vpack.c.b16 %v978, %v974
  %v1175 = vpack.c.b16 %v979, %v975
  %v1176 = vpack.c.b16 %v980, %v976
  %v1177 = vpack.c.b16 %v981, %v977
  %v1178 = vpack.c.b16 %v986, %v982
  %v1179 = vpack.c.b16 %v987, %v983
  %v1180 = vpack.c.b16 %v988, %v984
  %v1181 = vpack.c.b16 %v989, %v985
  %v1182 = vpack.c.b16 %v994, %v990
  %v1183 = vpack.c.b16 %v995, %v991
  %v1184 = vpack.c.b16 %v996, %v992
  %v1185 = vpack.c.b16 %v997, %v993
  %v1186 = vpack.c.b16 %v1002, %v998
  %v1187 = vpack.c.b16 %v1003, %v999
  %v1188 = vpack.c.b16 %v1004, %v1000
  %v1189 = vpack.c.b16 %v1005, %v1001
  %v1190 = vpack.c.b16 %v1010, %v1006
  %v1191 = vpack.c.b16 %v1011, %v1007
  %v1192 = vpack.c.b16 %v1012, %v1008
  %v1193 = vpack.c.b16 %v1013, %v1009
  %v1194 = vpack.c.b16 %v1018, %v1014
  %v1195 = vpack.c.b16 %v1019, %v1015
  %v1196 = vpack.c.b16 %v1020, %v1016
  %v1197 = vpack.c.b16 %v1021, %v1017
  %v1198 = vpack.c.b16 %v1026, %v1022
  %v1199 = vpack.c.b16 %v1027, %v1023
  %v1200 = vpack.c.b16 %v1028, %v1024
  %v1201 = vpack.c.b16 %v1029, %v1025
  %v1202 = vpack.c.b16 %v1034, %v1030
  %v1203 = vpack.c.b16 %v1035, %v1031
  %v1204 = vpack.c.b16 %v1036, %v1032
  %v1205 = vpack.c.b16 %v1037, %v1033
  %v1206 = vpack.c.b16 %v1042, %v1038
  %v1207 = vpack.c.b16 %v1043, %v1039
  %v1208 = vpack.c.b16 %v1044, %v1040
  %v1209 = vpack.c.b16 %v1045, %v1041
  %v1210 = vpack.c.b16 %v1050, %v1046
  %v1211 = vpack.c.b16 %v1051, %v1047
  %v1212 = vpack.c.b16 %v1052, %v1048
  %v1213 = vpack.c.b16 %v1053, %v1049
  %v1214 = vpack.c.b16 %v1058, %v1054
  %v1215 = vpack.c.b16 %v1059, %v1055
  %v1216 = vpack.c.b16 %v1060, %v1056
  %v1217 = vpack.c.b16 %v1061, %v1057
  %v1218 = vpack.c.b16 %v1066, %v1062
  %v1219 = vpack.c.b16 %v1067, %v1063
  %v1220 = vpack.c.b16 %v1068, %v1064
  %v1221 = vpack.c.b16 %v1069, %v1065
  %v1222 = vpack.c.b16 %v1074, %v1070
  %v1223 = vpack.c.b16 %v1075, %v1071
  %v1224 = vpack.c.b16 %v1076, %v1072
  %v1225 = vpack.c.b16 %v1077, %v1073
  %v1226 = vpack.c.b16 %v1082, %v1078
  %v1227 = vpack.c.b16 %v1083, %v1079
  %v1228 = vpack.c.b16 %v1084, %v1080
  %v1229 = vpack.c.b16 %v1085, %v1081
  %v1230 = vpack.c.b16 %v1090, %v1086
  %v1231 = vpack.c.b16 %v1091, %v1087
  %v1232 = vpack.c.b16 %v1092, %v1088
  %v1233 = vpack.c.b16 %v1093, %v1089
  %v1234 = vpack.c.b16 %v1098, %v1094
  %v1235 = vpack.c.b16 %v1099, %v1095
  %v1236 = vpack.c.b16 %v1100, %v1096
  %v1237 = vpack.c.b16 %v1101, %v1097
  %v1238 = vpack.c.b16 %v1106, %v1102
  %v1239 = vpack.c.b16 %v1107, %v1103
  %v1240 = vpack.c.b16 %v1108, %v1104
  %v1241 = vpack.c.b16 %v1109, %v1105
  %v1242 = vpack.c.b16 %v1114, %v1110
  %v1243 = vpack.c.b16 %v1115, %v1111
  %v1244 = vpack.c.b16 %v1116, %v1112
  %v1245 = vpack.c.b16 %v1117, %v1113
  %1374 = vmatpush.bf16.msra.mxu0 %v1146
  %1375 = vmatpush.bf16.msra.mxu0 %v1142
  %1376 = vmatpush.bf16.msra.mxu0 %v1138
  %1377 = vmatpush.bf16.msra.mxu0 %v1134
  %1378 = vmatpush.bf16.msra.mxu0 %v1130
  %1379 = vmatpush.bf16.msra.mxu0 %v1126
  %1380 = vmatpush.bf16.msra.mxu0 %v1122
  %1381 = vmatpush.bf16.msra.mxu0 %v1118
  %1382 = vmatmul.bf16.gmra.mxu0 %v564
  %v1383 = vpop.f32.mrf.mxu0
  %v1384 = vadd.f32 %v726, %v1383
  %v1385 = vpop.f32.mrf.mxu0
  %v1386 = vadd.f32 %v726, %v1385
  %1387 = vmatmul.bf16.gmra.mxu0 %v568
  %v1388 = vpop.f32.mrf.mxu0
  %v1389 = vadd.f32 %v726, %v1388
  %v1390 = vpop.f32.mrf.mxu0
  %v1391 = vadd.f32 %v726, %v1390
  %1392 = vmatmul.bf16.gmra.mxu0 %v572
  %v1393 = vpop.f32.mrf.mxu0
  %v1394 = vadd.f32 %v726, %v1393
  %v1395 = vpop.f32.mrf.mxu0
  %v1396 = vadd.f32 %v726, %v1395
  %1397 = vmatmul.bf16.gmra.mxu0 %v576
  %v1398 = vpop.f32.mrf.mxu0
  %v1399 = vadd.f32 %v726, %v1398
  %v1400 = vpop.f32.mrf.mxu0
  %v1401 = vadd.f32 %v726, %v1400
  %1402 = vmatmul.bf16.gmra.mxu0 %v580
  %v1403 = vpop.f32.mrf.mxu0
  %v1404 = vadd.f32 %v726, %v1403
  %v1405 = vpop.f32.mrf.mxu0
  %v1406 = vadd.f32 %v726, %v1405
  %1407 = vmatmul.bf16.gmra.mxu0 %v584
  %v1408 = vpop.f32.mrf.mxu0
  %v1409 = vadd.f32 %v726, %v1408
  %v1410 = vpop.f32.mrf.mxu0
  %v1411 = vadd.f32 %v726, %v1410
  %1412 = vmatmul.bf16.gmra.mxu0 %v588
  %v1413 = vpop.f32.mrf.mxu0
  %v1414 = vadd.f32 %v726, %v1413
  %v1415 = vpop.f32.mrf.mxu0
  %v1416 = vadd.f32 %v726, %v1415
  %1417 = vmatmul.bf16.gmra.mxu0 %v592
  %v1418 = vpop.f32.mrf.mxu0
  %v1419 = vadd.f32 %v726, %v1418
  %v1420 = vpop.f32.mrf.mxu0
  %v1421 = vadd.f32 %v726, %v1420
  %1422 = vdwg.mxu0
  %1423 = vmatpush.bf16.msra.mxu0 %v1178
  %1424 = vmatpush.bf16.msra.mxu0 %v1174
  %1425 = vmatpush.bf16.msra.mxu0 %v1170
  %1426 = vmatpush.bf16.msra.mxu0 %v1166
  %1427 = vmatpush.bf16.msra.mxu0 %v1162
  %1428 = vmatpush.bf16.msra.mxu0 %v1158
  %1429 = vmatpush.bf16.msra.mxu0 %v1154
  %1430 = vmatpush.bf16.msra.mxu0 %v1150
  %1431 = vmatmul.bf16.gmra.mxu0 %v565
  %v1432 = vpop.f32.mrf.mxu0
  %v1433 = vadd.f32 %v1384, %v1432
  %v1434 = vpop.f32.mrf.mxu0
  %v1435 = vadd.f32 %v1386, %v1434
  %1436 = vmatmul.bf16.gmra.mxu0 %v569
  %v1437 = vpop.f32.mrf.mxu0
  %v1438 = vadd.f32 %v1389, %v1437
  %v1439 = vpop.f32.mrf.mxu0
  %v1440 = vadd.f32 %v1391, %v1439
  %1441 = vmatmul.bf16.gmra.mxu0 %v573
  %v1442 = vpop.f32.mrf.mxu0
  %v1443 = vadd.f32 %v1394, %v1442
  %v1444 = vpop.f32.mrf.mxu0
  %v1445 = vadd.f32 %v1396, %v1444
  %1446 = vmatmul.bf16.gmra.mxu0 %v577
  %v1447 = vpop.f32.mrf.mxu0
  %v1448 = vadd.f32 %v1399, %v1447
  %v1449 = vpop.f32.mrf.mxu0
  %v1450 = vadd.f32 %v1401, %v1449
  %1451 = vmatmul.bf16.gmra.mxu0 %v581
  %v1452 = vpop.f32.mrf.mxu0
  %v1453 = vadd.f32 %v1404, %v1452
  %v1454 = vpop.f32.mrf.mxu0
  %v1455 = vadd.f32 %v1406, %v1454
  %1456 = vmatmul.bf16.gmra.mxu0 %v585
  %v1457 = vpop.f32.mrf.mxu0
  %v1458 = vadd.f32 %v1409, %v1457
  %v1459 = vpop.f32.mrf.mxu0
  %v1460 = vadd.f32 %v1411, %v1459
  %1461 = vmatmul.bf16.gmra.mxu0 %v589
  %v1462 = vpop.f32.mrf.mxu0
  %v1463 = vadd.f32 %v1414, %v1462
  %v1464 = vpop.f32.mrf.mxu0
  %v1465 = vadd.f32 %v1416, %v1464
  %1466 = vmatmul.bf16.gmra.mxu0 %v593
  %v1467 = vpop.f32.mrf.mxu0
  %v1468 = vadd.f32 %v1419, %v1467
  %v1469 = vpop.f32.mrf.mxu0
  %v1470 = vadd.f32 %v1421, %v1469
  %1471 = vdwg.mxu0
  %1472 = vmatpush.bf16.msra.mxu0 %v1210
  %1473 = vmatpush.bf16.msra.mxu0 %v1206
  %1474 = vmatpush.bf16.msra.mxu0 %v1202
  %1475 = vmatpush.bf16.msra.mxu0 %v1198
  %1476 = vmatpush.bf16.msra.mxu0 %v1194
  %1477 = vmatpush.bf16.msra.mxu0 %v1190
  %1478 = vmatpush.bf16.msra.mxu0 %v1186
  %1479 = vmatpush.bf16.msra.mxu0 %v1182
  %1480 = vmatmul.bf16.gmra.mxu0 %v566
  %v1481 = vpop.f32.mrf.mxu0
  %v1482 = vadd.f32 %v1433, %v1481
  %v1483 = vpop.f32.mrf.mxu0
  %v1484 = vadd.f32 %v1435, %v1483
  %1485 = vmatmul.bf16.gmra.mxu0 %v570
  %v1486 = vpop.f32.mrf.mxu0
  %v1487 = vadd.f32 %v1438, %v1486
  %v1488 = vpop.f32.mrf.mxu0
  %v1489 = vadd.f32 %v1440, %v1488
  %1490 = vmatmul.bf16.gmra.mxu0 %v574
  %v1491 = vpop.f32.mrf.mxu0
  %v1492 = vadd.f32 %v1443, %v1491
  %v1493 = vpop.f32.mrf.mxu0
  %v1494 = vadd.f32 %v1445, %v1493
  %1495 = vmatmul.bf16.gmra.mxu0 %v578
  %v1496 = vpop.f32.mrf.mxu0
  %v1497 = vadd.f32 %v1448, %v1496
  %v1498 = vpop.f32.mrf.mxu0
  %v1499 = vadd.f32 %v1450, %v1498
  %1500 = vmatmul.bf16.gmra.mxu0 %v582
  %v1501 = vpop.f32.mrf.mxu0
  %v1502 = vadd.f32 %v1453, %v1501
  %v1503 = vpop.f32.mrf.mxu0
  %v1504 = vadd.f32 %v1455, %v1503
  %1505 = vmatmul.bf16.gmra.mxu0 %v586
  %v1506 = vpop.f32.mrf.mxu0
  %v1507 = vadd.f32 %v1458, %v1506
  %v1508 = vpop.f32.mrf.mxu0
  %v1509 = vadd.f32 %v1460, %v1508
  %1510 = vmatmul.bf16.gmra.mxu0 %v590
  %v1511 = vpop.f32.mrf.mxu0
  %v1512 = vadd.f32 %v1463, %v1511
  %v1513 = vpop.f32.mrf.mxu0
  %v1514 = vadd.f32 %v1465, %v1513
  %1515 = vmatmul.bf16.gmra.mxu0 %v594
  %v1516 = vpop.f32.mrf.mxu0
  %v1517 = vadd.f32 %v1468, %v1516
  %v1518 = vpop.f32.mrf.mxu0
  %v1519 = vadd.f32 %v1470, %v1518
  %1520 = vdwg.mxu0
  %1521 = vmatpush.bf16.msra.mxu0 %v1242
  %1522 = vmatpush.bf16.msra.mxu0 %v1238
  %1523 = vmatpush.bf16.msra.mxu0 %v1234
  %1524 = vmatpush.bf16.msra.mxu0 %v1230
  %1525 = vmatpush.bf16.msra.mxu0 %v1226
  %1526 = vmatpush.bf16.msra.mxu0 %v1222
  %1527 = vmatpush.bf16.msra.mxu0 %v1218
  %1528 = vmatpush.bf16.msra.mxu0 %v1214
  %1529 = vmatmul.bf16.gmra.mxu0 %v567
  %v1530 = vpop.f32.mrf.mxu0
  %v1531 = vadd.f32 %v1482, %v1530
  %v1532 = vpop.f32.mrf.mxu0
  %v1533 = vadd.f32 %v1484, %v1532
  %1534 = vmatmul.bf16.gmra.mxu0 %v571
  %v1535 = vpop.f32.mrf.mxu0
  %v1536 = vadd.f32 %v1487, %v1535
  %v1537 = vpop.f32.mrf.mxu0
  %v1538 = vadd.f32 %v1489, %v1537
  %1539 = vmatmul.bf16.gmra.mxu0 %v575
  %v1540 = vpop.f32.mrf.mxu0
  %v1541 = vadd.f32 %v1492, %v1540
  %v1542 = vpop.f32.mrf.mxu0
  %v1543 = vadd.f32 %v1494, %v1542
  %1544 = vmatmul.bf16.gmra.mxu0 %v579
  %v1545 = vpop.f32.mrf.mxu0
  %v1546 = vadd.f32 %v1497, %v1545
  %v1547 = vpop.f32.mrf.mxu0
  %v1548 = vadd.f32 %v1499, %v1547
  %1549 = vmatmul.bf16.gmra.mxu0 %v583
  %v1550 = vpop.f32.mrf.mxu0
  %v1551 = vadd.f32 %v1502, %v1550
  %v1552 = vpop.f32.mrf.mxu0
  %v1553 = vadd.f32 %v1504, %v1552
  %1554 = vmatmul.bf16.gmra.mxu0 %v587
  %v1555 = vpop.f32.mrf.mxu0
  %v1556 = vadd.f32 %v1507, %v1555
  %v1557 = vpop.f32.mrf.mxu0
  %v1558 = vadd.f32 %v1509, %v1557
  %1559 = vmatmul.bf16.gmra.mxu0 %v591
  %v1560 = vpop.f32.mrf.mxu0
  %v1561 = vadd.f32 %v1512, %v1560
  %v1562 = vpop.f32.mrf.mxu0
  %v1563 = vadd.f32 %v1514, %v1562
  %1564 = vmatmul.bf16.gmra.mxu0 %v595
  %v1565 = vpop.f32.mrf.mxu0
  %v1566 = vadd.f32 %v1517, %v1565
  %v1567 = vpop.f32.mrf.mxu0
  %v1568 = vadd.f32 %v1519, %v1567
  %1569 = vdwg.mxu0
  %1570 = vmatpush.bf16.msra.mxu0 %v1147
  %1571 = vmatpush.bf16.msra.mxu0 %v1143
  %1572 = vmatpush.bf16.msra.mxu0 %v1139
  %1573 = vmatpush.bf16.msra.mxu0 %v1135
  %1574 = vmatpush.bf16.msra.mxu0 %v1131
  %1575 = vmatpush.bf16.msra.mxu0 %v1127
  %1576 = vmatpush.bf16.msra.mxu0 %v1123
  %1577 = vmatpush.bf16.msra.mxu0 %v1119
  %1578 = vmatmul.bf16.gmra.mxu0 %v564
  %v1579 = vpop.f32.mrf.mxu0
  %v1580 = vadd.f32 %v727, %v1579
  %v1581 = vpop.f32.mrf.mxu0
  %v1582 = vadd.f32 %v727, %v1581
  %1583 = vmatmul.bf16.gmra.mxu0 %v568
  %v1584 = vpop.f32.mrf.mxu0
  %v1585 = vadd.f32 %v727, %v1584
  %v1586 = vpop.f32.mrf.mxu0
  %v1587 = vadd.f32 %v727, %v1586
  %1588 = vmatmul.bf16.gmra.mxu0 %v572
  %v1589 = vpop.f32.mrf.mxu0
  %v1590 = vadd.f32 %v727, %v1589
  %v1591 = vpop.f32.mrf.mxu0
  %v1592 = vadd.f32 %v727, %v1591
  %1593 = vmatmul.bf16.gmra.mxu0 %v576
  %v1594 = vpop.f32.mrf.mxu0
  %v1595 = vadd.f32 %v727, %v1594
  %v1596 = vpop.f32.mrf.mxu0
  %v1597 = vadd.f32 %v727, %v1596
  %1598 = vmatmul.bf16.gmra.mxu0 %v580
  %v1599 = vpop.f32.mrf.mxu0
  %v1600 = vadd.f32 %v727, %v1599
  %v1601 = vpop.f32.mrf.mxu0
  %v1602 = vadd.f32 %v727, %v1601
  %1603 = vmatmul.bf16.gmra.mxu0 %v584
  %v1604 = vpop.f32.mrf.mxu0
  %v1605 = vadd.f32 %v727, %v1604
  %v1606 = vpop.f32.mrf.mxu0
  %v1607 = vadd.f32 %v727, %v1606
  %1608 = vmatmul.bf16.gmra.mxu0 %v588
  %v1609 = vpop.f32.mrf.mxu0
  %v1610 = vadd.f32 %v727, %v1609
  %v1611 = vpop.f32.mrf.mxu0
  %v1612 = vadd.f32 %v727, %v1611
  %1613 = vmatmul.bf16.gmra.mxu0 %v592
  %v1614 = vpop.f32.mrf.mxu0
  %v1615 = vadd.f32 %v727, %v1614
  %v1616 = vpop.f32.mrf.mxu0
  %v1617 = vadd.f32 %v727, %v1616
  %1618 = vdwg.mxu0
  %1619 = vmatpush.bf16.msra.mxu0 %v1179
  %1620 = vmatpush.bf16.msra.mxu0 %v1175
  %1621 = vmatpush.bf16.msra.mxu0 %v1171
  %1622 = vmatpush.bf16.msra.mxu0 %v1167
  %1623 = vmatpush.bf16.msra.mxu0 %v1163
  %1624 = vmatpush.bf16.msra.mxu0 %v1159
  %1625 = vmatpush.bf16.msra.mxu0 %v1155
  %1626 = vmatpush.bf16.msra.mxu0 %v1151
  %1627 = vmatmul.bf16.gmra.mxu0 %v565
  %v1628 = vpop.f32.mrf.mxu0
  %v1629 = vadd.f32 %v1580, %v1628
  %v1630 = vpop.f32.mrf.mxu0
  %v1631 = vadd.f32 %v1582, %v1630
  %1632 = vmatmul.bf16.gmra.mxu0 %v569
  %v1633 = vpop.f32.mrf.mxu0
  %v1634 = vadd.f32 %v1585, %v1633
  %v1635 = vpop.f32.mrf.mxu0
  %v1636 = vadd.f32 %v1587, %v1635
  %1637 = vmatmul.bf16.gmra.mxu0 %v573
  %v1638 = vpop.f32.mrf.mxu0
  %v1639 = vadd.f32 %v1590, %v1638
  %v1640 = vpop.f32.mrf.mxu0
  %v1641 = vadd.f32 %v1592, %v1640
  %1642 = vmatmul.bf16.gmra.mxu0 %v577
  %v1643 = vpop.f32.mrf.mxu0
  %v1644 = vadd.f32 %v1595, %v1643
  %v1645 = vpop.f32.mrf.mxu0
  %v1646 = vadd.f32 %v1597, %v1645
  %1647 = vmatmul.bf16.gmra.mxu0 %v581
  %v1648 = vpop.f32.mrf.mxu0
  %v1649 = vadd.f32 %v1600, %v1648
  %v1650 = vpop.f32.mrf.mxu0
  %v1651 = vadd.f32 %v1602, %v1650
  %1652 = vmatmul.bf16.gmra.mxu0 %v585
  %v1653 = vpop.f32.mrf.mxu0
  %v1654 = vadd.f32 %v1605, %v1653
  %v1655 = vpop.f32.mrf.mxu0
  %v1656 = vadd.f32 %v1607, %v1655
  %1657 = vmatmul.bf16.gmra.mxu0 %v589
  %v1658 = vpop.f32.mrf.mxu0
  %v1659 = vadd.f32 %v1610, %v1658
  %v1660 = vpop.f32.mrf.mxu0
  %v1661 = vadd.f32 %v1612, %v1660
  %1662 = vmatmul.bf16.gmra.mxu0 %v593
  %v1663 = vpop.f32.mrf.mxu0
  %v1664 = vadd.f32 %v1615, %v1663
  %v1665 = vpop.f32.mrf.mxu0
  %v1666 = vadd.f32 %v1617, %v1665
  %1667 = vdwg.mxu0
  %1668 = vmatpush.bf16.msra.mxu0 %v1211
  %1669 = vmatpush.bf16.msra.mxu0 %v1207
  %1670 = vmatpush.bf16.msra.mxu0 %v1203
  %1671 = vmatpush.bf16.msra.mxu0 %v1199
  %1672 = vmatpush.bf16.msra.mxu0 %v1195
  %1673 = vmatpush.bf16.msra.mxu0 %v1191
  %1674 = vmatpush.bf16.msra.mxu0 %v1187
  %1675 = vmatpush.bf16.msra.mxu0 %v1183
  %1676 = vmatmul.bf16.gmra.mxu0 %v566
  %v1677 = vpop.f32.mrf.mxu0
  %v1678 = vadd.f32 %v1629, %v1677
  %v1679 = vpop.f32.mrf.mxu0
  %v1680 = vadd.f32 %v1631, %v1679
  %1681 = vmatmul.bf16.gmra.mxu0 %v570
  %v1682 = vpop.f32.mrf.mxu0
  %v1683 = vadd.f32 %v1634, %v1682
  %v1684 = vpop.f32.mrf.mxu0
  %v1685 = vadd.f32 %v1636, %v1684
  %1686 = vmatmul.bf16.gmra.mxu0 %v574
  %v1687 = vpop.f32.mrf.mxu0
  %v1688 = vadd.f32 %v1639, %v1687
  %v1689 = vpop.f32.mrf.mxu0
  %v1690 = vadd.f32 %v1641, %v1689
  %1691 = vmatmul.bf16.gmra.mxu0 %v578
  %v1692 = vpop.f32.mrf.mxu0
  %v1693 = vadd.f32 %v1644, %v1692
  %v1694 = vpop.f32.mrf.mxu0
  %v1695 = vadd.f32 %v1646, %v1694
  %1696 = vmatmul.bf16.gmra.mxu0 %v582
  %v1697 = vpop.f32.mrf.mxu0
  %v1698 = vadd.f32 %v1649, %v1697
  %v1699 = vpop.f32.mrf.mxu0
  %v1700 = vadd.f32 %v1651, %v1699
  %1701 = vmatmul.bf16.gmra.mxu0 %v586
  %v1702 = vpop.f32.mrf.mxu0
  %v1703 = vadd.f32 %v1654, %v1702
  %v1704 = vpop.f32.mrf.mxu0
  %v1705 = vadd.f32 %v1656, %v1704
  %1706 = vmatmul.bf16.gmra.mxu0 %v590
  %v1707 = vpop.f32.mrf.mxu0
  %v1708 = vadd.f32 %v1659, %v1707
  %v1709 = vpop.f32.mrf.mxu0
  %v1710 = vadd.f32 %v1661, %v1709
  %1711 = vmatmul.bf16.gmra.mxu0 %v594
  %v1712 = vpop.f32.mrf.mxu0
  %v1713 = vadd.f32 %v1664, %v1712
  %v1714 = vpop.f32.mrf.mxu0
  %v1715 = vadd.f32 %v1666, %v1714
  %1716 = vdwg.mxu0
  %1717 = vmatpush.bf16.msra.mxu0 %v1243
  %1718 = vmatpush.bf16.msra.mxu0 %v1239
  %1719 = vmatpush.bf16.msra.mxu0 %v1235
  %1720 = vmatpush.bf16.msra.mxu0 %v1231
  %1721 = vmatpush.bf16.msra.mxu0 %v1227
  %1722 = vmatpush.bf16.msra.mxu0 %v1223
  %1723 = vmatpush.bf16.msra.mxu0 %v1219
  %1724 = vmatpush.bf16.msra.mxu0 %v1215
  %1725 = vmatmul.bf16.gmra.mxu0 %v567
  %v1726 = vpop.f32.mrf.mxu0
  %v1727 = vadd.f32 %v1678, %v1726
  %v1728 = vpop.f32.mrf.mxu0
  %v1729 = vadd.f32 %v1680, %v1728
  %1730 = vmatmul.bf16.gmra.mxu0 %v571
  %v1731 = vpop.f32.mrf.mxu0
  %v1732 = vadd.f32 %v1683, %v1731
  %v1733 = vpop.f32.mrf.mxu0
  %v1734 = vadd.f32 %v1685, %v1733
  %1735 = vmatmul.bf16.gmra.mxu0 %v575
  %v1736 = vpop.f32.mrf.mxu0
  %v1737 = vadd.f32 %v1688, %v1736
  %v1738 = vpop.f32.mrf.mxu0
  %v1739 = vadd.f32 %v1690, %v1738
  %1740 = vmatmul.bf16.gmra.mxu0 %v579
  %v1741 = vpop.f32.mrf.mxu0
  %v1742 = vadd.f32 %v1693, %v1741
  %v1743 = vpop.f32.mrf.mxu0
  %v1744 = vadd.f32 %v1695, %v1743
  %1745 = vmatmul.bf16.gmra.mxu0 %v583
  %v1746 = vpop.f32.mrf.mxu0
  %v1747 = vadd.f32 %v1698, %v1746
  %v1748 = vpop.f32.mrf.mxu0
  %v1749 = vadd.f32 %v1700, %v1748
  %1750 = vmatmul.bf16.gmra.mxu0 %v587
  %v1751 = vpop.f32.mrf.mxu0
  %v1752 = vadd.f32 %v1703, %v1751
  %v1753 = vpop.f32.mrf.mxu0
  %v1754 = vadd.f32 %v1705, %v1753
  %1755 = vmatmul.bf16.gmra.mxu0 %v591
  %v1756 = vpop.f32.mrf.mxu0
  %v1757 = vadd.f32 %v1708, %v1756
  %v1758 = vpop.f32.mrf.mxu0
  %v1759 = vadd.f32 %v1710, %v1758
  %1760 = vmatmul.bf16.gmra.mxu0 %v595
  %v1761 = vpop.f32.mrf.mxu0
  %v1762 = vadd.f32 %v1713, %v1761
  %v1763 = vpop.f32.mrf.mxu0
  %v1764 = vadd.f32 %v1715, %v1763
  %1765 = vdwg.mxu0
  %1766 = vmatpush.bf16.msra.mxu0 %v1148
  %1767 = vmatpush.bf16.msra.mxu0 %v1144
  %1768 = vmatpush.bf16.msra.mxu0 %v1140
  %1769 = vmatpush.bf16.msra.mxu0 %v1136
  %1770 = vmatpush.bf16.msra.mxu0 %v1132
  %1771 = vmatpush.bf16.msra.mxu0 %v1128
  %1772 = vmatpush.bf16.msra.mxu0 %v1124
  %1773 = vmatpush.bf16.msra.mxu0 %v1120
  %1774 = vmatmul.bf16.gmra.mxu0 %v564
  %v1775 = vpop.f32.mrf.mxu0
  %v1776 = vadd.f32 %v728, %v1775
  %v1777 = vpop.f32.mrf.mxu0
  %v1778 = vadd.f32 %v728, %v1777
  %1779 = vmatmul.bf16.gmra.mxu0 %v568
  %v1780 = vpop.f32.mrf.mxu0
  %v1781 = vadd.f32 %v728, %v1780
  %v1782 = vpop.f32.mrf.mxu0
  %v1783 = vadd.f32 %v728, %v1782
  %1784 = vmatmul.bf16.gmra.mxu0 %v572
  %v1785 = vpop.f32.mrf.mxu0
  %v1786 = vadd.f32 %v728, %v1785
  %v1787 = vpop.f32.mrf.mxu0
  %v1788 = vadd.f32 %v728, %v1787
  %1789 = vmatmul.bf16.gmra.mxu0 %v576
  %v1790 = vpop.f32.mrf.mxu0
  %v1791 = vadd.f32 %v728, %v1790
  %v1792 = vpop.f32.mrf.mxu0
  %v1793 = vadd.f32 %v728, %v1792
  %1794 = vmatmul.bf16.gmra.mxu0 %v580
  %v1795 = vpop.f32.mrf.mxu0
  %v1796 = vadd.f32 %v728, %v1795
  %v1797 = vpop.f32.mrf.mxu0
  %v1798 = vadd.f32 %v728, %v1797
  %1799 = vmatmul.bf16.gmra.mxu0 %v584
  %v1800 = vpop.f32.mrf.mxu0
  %v1801 = vadd.f32 %v728, %v1800
  %v1802 = vpop.f32.mrf.mxu0
  %v1803 = vadd.f32 %v728, %v1802
  %1804 = vmatmul.bf16.gmra.mxu0 %v588
  %v1805 = vpop.f32.mrf.mxu0
  %v1806 = vadd.f32 %v728, %v1805
  %v1807 = vpop.f32.mrf.mxu0
  %v1808 = vadd.f32 %v728, %v1807
  %1809 = vmatmul.bf16.gmra.mxu0 %v592
  %v1810 = vpop.f32.mrf.mxu0
  %v1811 = vadd.f32 %v728, %v1810
  %v1812 = vpop.f32.mrf.mxu0
  %v1813 = vadd.f32 %v728, %v1812
  %1814 = vdwg.mxu0
  %1815 = vmatpush.bf16.msra.mxu0 %v1180
  %1816 = vmatpush.bf16.msra.mxu0 %v1176
  %1817 = vmatpush.bf16.msra.mxu0 %v1172
  %1818 = vmatpush.bf16.msra.mxu0 %v1168
  %1819 = vmatpush.bf16.msra.mxu0 %v1164
  %1820 = vmatpush.bf16.msra.mxu0 %v1160
  %1821 = vmatpush.bf16.msra.mxu0 %v1156
  %1822 = vmatpush.bf16.msra.mxu0 %v1152
  %1823 = vmatmul.bf16.gmra.mxu0 %v565
  %v1824 = vpop.f32.mrf.mxu0
  %v1825 = vadd.f32 %v1776, %v1824
  %v1826 = vpop.f32.mrf.mxu0
  %v1827 = vadd.f32 %v1778, %v1826
  %1828 = vmatmul.bf16.gmra.mxu0 %v569
  %v1829 = vpop.f32.mrf.mxu0
  %v1830 = vadd.f32 %v1781, %v1829
  %v1831 = vpop.f32.mrf.mxu0
  %v1832 = vadd.f32 %v1783, %v1831
  %1833 = vmatmul.bf16.gmra.mxu0 %v573
  %v1834 = vpop.f32.mrf.mxu0
  %v1835 = vadd.f32 %v1786, %v1834
  %v1836 = vpop.f32.mrf.mxu0
  %v1837 = vadd.f32 %v1788, %v1836
  %1838 = vmatmul.bf16.gmra.mxu0 %v577
  %v1839 = vpop.f32.mrf.mxu0
  %v1840 = vadd.f32 %v1791, %v1839
  %v1841 = vpop.f32.mrf.mxu0
  %v1842 = vadd.f32 %v1793, %v1841
  %1843 = vmatmul.bf16.gmra.mxu0 %v581
  %v1844 = vpop.f32.mrf.mxu0
  %v1845 = vadd.f32 %v1796, %v1844
  %v1846 = vpop.f32.mrf.mxu0
  %v1847 = vadd.f32 %v1798, %v1846
  %1848 = vmatmul.bf16.gmra.mxu0 %v585
  %v1849 = vpop.f32.mrf.mxu0
  %v1850 = vadd.f32 %v1801, %v1849
  %v1851 = vpop.f32.mrf.mxu0
  %v1852 = vadd.f32 %v1803, %v1851
  %1853 = vmatmul.bf16.gmra.mxu0 %v589
  %v1854 = vpop.f32.mrf.mxu0
  %v1855 = vadd.f32 %v1806, %v1854
  %v1856 = vpop.f32.mrf.mxu0
  %v1857 = vadd.f32 %v1808, %v1856
  %1858 = vmatmul.bf16.gmra.mxu0 %v593
  %v1859 = vpop.f32.mrf.mxu0
  %v1860 = vadd.f32 %v1811, %v1859
  %v1861 = vpop.f32.mrf.mxu0
  %v1862 = vadd.f32 %v1813, %v1861
  %1863 = vdwg.mxu0
  %1864 = vmatpush.bf16.msra.mxu0 %v1212
  %1865 = vmatpush.bf16.msra.mxu0 %v1208
  %1866 = vmatpush.bf16.msra.mxu0 %v1204
  %1867 = vmatpush.bf16.msra.mxu0 %v1200
  %1868 = vmatpush.bf16.msra.mxu0 %v1196
  %1869 = vmatpush.bf16.msra.mxu0 %v1192
  %1870 = vmatpush.bf16.msra.mxu0 %v1188
  %1871 = vmatpush.bf16.msra.mxu0 %v1184
  %1872 = vmatmul.bf16.gmra.mxu0 %v566
  %v1873 = vpop.f32.mrf.mxu0
  %v1874 = vadd.f32 %v1825, %v1873
  %v1875 = vpop.f32.mrf.mxu0
  %v1876 = vadd.f32 %v1827, %v1875
  %1877 = vmatmul.bf16.gmra.mxu0 %v570
  %v1878 = vpop.f32.mrf.mxu0
  %v1879 = vadd.f32 %v1830, %v1878
  %v1880 = vpop.f32.mrf.mxu0
  %v1881 = vadd.f32 %v1832, %v1880
  %1882 = vmatmul.bf16.gmra.mxu0 %v574
  %v1883 = vpop.f32.mrf.mxu0
  %v1884 = vadd.f32 %v1835, %v1883
  %v1885 = vpop.f32.mrf.mxu0
  %v1886 = vadd.f32 %v1837, %v1885
  %1887 = vmatmul.bf16.gmra.mxu0 %v578
  %v1888 = vpop.f32.mrf.mxu0
  %v1889 = vadd.f32 %v1840, %v1888
  %v1890 = vpop.f32.mrf.mxu0
  %v1891 = vadd.f32 %v1842, %v1890
  %1892 = vmatmul.bf16.gmra.mxu0 %v582
  %v1893 = vpop.f32.mrf.mxu0
  %v1894 = vadd.f32 %v1845, %v1893
  %v1895 = vpop.f32.mrf.mxu0
  %v1896 = vadd.f32 %v1847, %v1895
  %1897 = vmatmul.bf16.gmra.mxu0 %v586
  %v1898 = vpop.f32.mrf.mxu0
  %v1899 = vadd.f32 %v1850, %v1898
  %v1900 = vpop.f32.mrf.mxu0
  %v1901 = vadd.f32 %v1852, %v1900
  %1902 = vmatmul.bf16.gmra.mxu0 %v590
  %v1903 = vpop.f32.mrf.mxu0
  %v1904 = vadd.f32 %v1855, %v1903
  %v1905 = vpop.f32.mrf.mxu0
  %v1906 = vadd.f32 %v1857, %v1905
  %1907 = vmatmul.bf16.gmra.mxu0 %v594
  %v1908 = vpop.f32.mrf.mxu0
  %v1909 = vadd.f32 %v1860, %v1908
  %v1910 = vpop.f32.mrf.mxu0
  %v1911 = vadd.f32 %v1862, %v1910
  %1912 = vdwg.mxu0
  %1913 = vmatpush.bf16.msra.mxu0 %v1244
  %1914 = vmatpush.bf16.msra.mxu0 %v1240
  %1915 = vmatpush.bf16.msra.mxu0 %v1236
  %1916 = vmatpush.bf16.msra.mxu0 %v1232
  %1917 = vmatpush.bf16.msra.mxu0 %v1228
  %1918 = vmatpush.bf16.msra.mxu0 %v1224
  %1919 = vmatpush.bf16.msra.mxu0 %v1220
  %1920 = vmatpush.bf16.msra.mxu0 %v1216
  %1921 = vmatmul.bf16.gmra.mxu0 %v567
  %v1922 = vpop.f32.mrf.mxu0
  %v1923 = vadd.f32 %v1874, %v1922
  %v1924 = vpop.f32.mrf.mxu0
  %v1925 = vadd.f32 %v1876, %v1924
  %1926 = vmatmul.bf16.gmra.mxu0 %v571
  %v1927 = vpop.f32.mrf.mxu0
  %v1928 = vadd.f32 %v1879, %v1927
  %v1929 = vpop.f32.mrf.mxu0
  %v1930 = vadd.f32 %v1881, %v1929
  %1931 = vmatmul.bf16.gmra.mxu0 %v575
  %v1932 = vpop.f32.mrf.mxu0
  %v1933 = vadd.f32 %v1884, %v1932
  %v1934 = vpop.f32.mrf.mxu0
  %v1935 = vadd.f32 %v1886, %v1934
  %1936 = vmatmul.bf16.gmra.mxu0 %v579
  %v1937 = vpop.f32.mrf.mxu0
  %v1938 = vadd.f32 %v1889, %v1937
  %v1939 = vpop.f32.mrf.mxu0
  %v1940 = vadd.f32 %v1891, %v1939
  %1941 = vmatmul.bf16.gmra.mxu0 %v583
  %v1942 = vpop.f32.mrf.mxu0
  %v1943 = vadd.f32 %v1894, %v1942
  %v1944 = vpop.f32.mrf.mxu0
  %v1945 = vadd.f32 %v1896, %v1944
  %1946 = vmatmul.bf16.gmra.mxu0 %v587
  %v1947 = vpop.f32.mrf.mxu0
  %v1948 = vadd.f32 %v1899, %v1947
  %v1949 = vpop.f32.mrf.mxu0
  %v1950 = vadd.f32 %v1901, %v1949
  %1951 = vmatmul.bf16.gmra.mxu0 %v591
  %v1952 = vpop.f32.mrf.mxu0
  %v1953 = vadd.f32 %v1904, %v1952
  %v1954 = vpop.f32.mrf.mxu0
  %v1955 = vadd.f32 %v1906, %v1954
  %1956 = vmatmul.bf16.gmra.mxu0 %v595
  %v1957 = vpop.f32.mrf.mxu0
  %v1958 = vadd.f32 %v1909, %v1957
  %v1959 = vpop.f32.mrf.mxu0
  %v1960 = vadd.f32 %v1911, %v1959
  %1961 = vdwg.mxu0
  %1962 = vmatpush.bf16.msra.mxu0 %v1149
  %1963 = vmatpush.bf16.msra.mxu0 %v1145
  %1964 = vmatpush.bf16.msra.mxu0 %v1141
  %1965 = vmatpush.bf16.msra.mxu0 %v1137
  %1966 = vmatpush.bf16.msra.mxu0 %v1133
  %1967 = vmatpush.bf16.msra.mxu0 %v1129
  %1968 = vmatpush.bf16.msra.mxu0 %v1125
  %1969 = vmatpush.bf16.msra.mxu0 %v1121
  %1970 = vmatmul.bf16.gmra.mxu0 %v564
  %v1971 = vpop.f32.mrf.mxu0
  %v1972 = vadd.f32 %v729, %v1971
  %v1973 = vpop.f32.mrf.mxu0
  %v1974 = vadd.f32 %v729, %v1973
  %1975 = vmatmul.bf16.gmra.mxu0 %v568
  %v1976 = vpop.f32.mrf.mxu0
  %v1977 = vadd.f32 %v729, %v1976
  %v1978 = vpop.f32.mrf.mxu0
  %v1979 = vadd.f32 %v729, %v1978
  %1980 = vmatmul.bf16.gmra.mxu0 %v572
  %v1981 = vpop.f32.mrf.mxu0
  %v1982 = vadd.f32 %v729, %v1981
  %v1983 = vpop.f32.mrf.mxu0
  %v1984 = vadd.f32 %v729, %v1983
  %1985 = vmatmul.bf16.gmra.mxu0 %v576
  %v1986 = vpop.f32.mrf.mxu0
  %v1987 = vadd.f32 %v729, %v1986
  %v1988 = vpop.f32.mrf.mxu0
  %v1989 = vadd.f32 %v729, %v1988
  %1990 = vmatmul.bf16.gmra.mxu0 %v580
  %v1991 = vpop.f32.mrf.mxu0
  %v1992 = vadd.f32 %v729, %v1991
  %v1993 = vpop.f32.mrf.mxu0
  %v1994 = vadd.f32 %v729, %v1993
  %1995 = vmatmul.bf16.gmra.mxu0 %v584
  %v1996 = vpop.f32.mrf.mxu0
  %v1997 = vadd.f32 %v729, %v1996
  %v1998 = vpop.f32.mrf.mxu0
  %v1999 = vadd.f32 %v729, %v1998
  %2000 = vmatmul.bf16.gmra.mxu0 %v588
  %v2001 = vpop.f32.mrf.mxu0
  %v2002 = vadd.f32 %v729, %v2001
  %v2003 = vpop.f32.mrf.mxu0
  %v2004 = vadd.f32 %v729, %v2003
  %2005 = vmatmul.bf16.gmra.mxu0 %v592
  %v2006 = vpop.f32.mrf.mxu0
  %v2007 = vadd.f32 %v729, %v2006
  %v2008 = vpop.f32.mrf.mxu0
  %v2009 = vadd.f32 %v729, %v2008
  %2010 = vdwg.mxu0
  %2011 = vmatpush.bf16.msra.mxu0 %v1181
  %2012 = vmatpush.bf16.msra.mxu0 %v1177
  %2013 = vmatpush.bf16.msra.mxu0 %v1173
  %2014 = vmatpush.bf16.msra.mxu0 %v1169
  %2015 = vmatpush.bf16.msra.mxu0 %v1165
  %2016 = vmatpush.bf16.msra.mxu0 %v1161
  %2017 = vmatpush.bf16.msra.mxu0 %v1157
  %2018 = vmatpush.bf16.msra.mxu0 %v1153
  %2019 = vmatmul.bf16.gmra.mxu0 %v565
  %v2020 = vpop.f32.mrf.mxu0
  %v2021 = vadd.f32 %v1972, %v2020
  %v2022 = vpop.f32.mrf.mxu0
  %v2023 = vadd.f32 %v1974, %v2022
  %2024 = vmatmul.bf16.gmra.mxu0 %v569
  %v2025 = vpop.f32.mrf.mxu0
  %v2026 = vadd.f32 %v1977, %v2025
  %v2027 = vpop.f32.mrf.mxu0
  %v2028 = vadd.f32 %v1979, %v2027
  %2029 = vmatmul.bf16.gmra.mxu0 %v573
  %v2030 = vpop.f32.mrf.mxu0
  %v2031 = vadd.f32 %v1982, %v2030
  %v2032 = vpop.f32.mrf.mxu0
  %v2033 = vadd.f32 %v1984, %v2032
  %2034 = vmatmul.bf16.gmra.mxu0 %v577
  %v2035 = vpop.f32.mrf.mxu0
  %v2036 = vadd.f32 %v1987, %v2035
  %v2037 = vpop.f32.mrf.mxu0
  %v2038 = vadd.f32 %v1989, %v2037
  %2039 = vmatmul.bf16.gmra.mxu0 %v581
  %v2040 = vpop.f32.mrf.mxu0
  %v2041 = vadd.f32 %v1992, %v2040
  %v2042 = vpop.f32.mrf.mxu0
  %v2043 = vadd.f32 %v1994, %v2042
  %2044 = vmatmul.bf16.gmra.mxu0 %v585
  %v2045 = vpop.f32.mrf.mxu0
  %v2046 = vadd.f32 %v1997, %v2045
  %v2047 = vpop.f32.mrf.mxu0
  %v2048 = vadd.f32 %v1999, %v2047
  %2049 = vmatmul.bf16.gmra.mxu0 %v589
  %v2050 = vpop.f32.mrf.mxu0
  %v2051 = vadd.f32 %v2002, %v2050
  %v2052 = vpop.f32.mrf.mxu0
  %v2053 = vadd.f32 %v2004, %v2052
  %2054 = vmatmul.bf16.gmra.mxu0 %v593
  %v2055 = vpop.f32.mrf.mxu0
  %v2056 = vadd.f32 %v2007, %v2055
  %v2057 = vpop.f32.mrf.mxu0
  %v2058 = vadd.f32 %v2009, %v2057
  %2059 = vdwg.mxu0
  %2060 = vmatpush.bf16.msra.mxu0 %v1213
  %2061 = vmatpush.bf16.msra.mxu0 %v1209
  %2062 = vmatpush.bf16.msra.mxu0 %v1205
  %2063 = vmatpush.bf16.msra.mxu0 %v1201
  %2064 = vmatpush.bf16.msra.mxu0 %v1197
  %2065 = vmatpush.bf16.msra.mxu0 %v1193
  %2066 = vmatpush.bf16.msra.mxu0 %v1189
  %2067 = vmatpush.bf16.msra.mxu0 %v1185
  %2068 = vmatmul.bf16.gmra.mxu0 %v566
  %v2069 = vpop.f32.mrf.mxu0
  %v2070 = vadd.f32 %v2021, %v2069
  %v2071 = vpop.f32.mrf.mxu0
  %v2072 = vadd.f32 %v2023, %v2071
  %2073 = vmatmul.bf16.gmra.mxu0 %v570
  %v2074 = vpop.f32.mrf.mxu0
  %v2075 = vadd.f32 %v2026, %v2074
  %v2076 = vpop.f32.mrf.mxu0
  %v2077 = vadd.f32 %v2028, %v2076
  %2078 = vmatmul.bf16.gmra.mxu0 %v574
  %v2079 = vpop.f32.mrf.mxu0
  %v2080 = vadd.f32 %v2031, %v2079
  %v2081 = vpop.f32.mrf.mxu0
  %v2082 = vadd.f32 %v2033, %v2081
  %2083 = vmatmul.bf16.gmra.mxu0 %v578
  %v2084 = vpop.f32.mrf.mxu0
  %v2085 = vadd.f32 %v2036, %v2084
  %v2086 = vpop.f32.mrf.mxu0
  %v2087 = vadd.f32 %v2038, %v2086
  %2088 = vmatmul.bf16.gmra.mxu0 %v582
  %v2089 = vpop.f32.mrf.mxu0
  %v2090 = vadd.f32 %v2041, %v2089
  %v2091 = vpop.f32.mrf.mxu0
  %v2092 = vadd.f32 %v2043, %v2091
  %2093 = vmatmul.bf16.gmra.mxu0 %v586
  %v2094 = vpop.f32.mrf.mxu0
  %v2095 = vadd.f32 %v2046, %v2094
  %v2096 = vpop.f32.mrf.mxu0
  %v2097 = vadd.f32 %v2048, %v2096
  %2098 = vmatmul.bf16.gmra.mxu0 %v590
  %v2099 = vpop.f32.mrf.mxu0
  %v2100 = vadd.f32 %v2051, %v2099
  %v2101 = vpop.f32.mrf.mxu0
  %v2102 = vadd.f32 %v2053, %v2101
  %2103 = vmatmul.bf16.gmra.mxu0 %v594
  %v2104 = vpop.f32.mrf.mxu0
  %v2105 = vadd.f32 %v2056, %v2104
  %v2106 = vpop.f32.mrf.mxu0
  %v2107 = vadd.f32 %v2058, %v2106
  %2108 = vdwg.mxu0
  %2109 = vmatpush.bf16.msra.mxu0 %v1245
  %2110 = vmatpush.bf16.msra.mxu0 %v1241
  %2111 = vmatpush.bf16.msra.mxu0 %v1237
  %2112 = vmatpush.bf16.msra.mxu0 %v1233
  %2113 = vmatpush.bf16.msra.mxu0 %v1229
  %2114 = vmatpush.bf16.msra.mxu0 %v1225
  %2115 = vmatpush.bf16.msra.mxu0 %v1221
  %2116 = vmatpush.bf16.msra.mxu0 %v1217
  %2117 = vmatmul.bf16.gmra.mxu0 %v567
  %v2118 = vpop.f32.mrf.mxu0
  %v2119 = vadd.f32 %v2070, %v2118
  %v2120 = vpop.f32.mrf.mxu0
  %v2121 = vadd.f32 %v2072, %v2120
  %2122 = vmatmul.bf16.gmra.mxu0 %v571
  %v2123 = vpop.f32.mrf.mxu0
  %v2124 = vadd.f32 %v2075, %v2123
  %v2125 = vpop.f32.mrf.mxu0
  %v2126 = vadd.f32 %v2077, %v2125
  %2127 = vmatmul.bf16.gmra.mxu0 %v575
  %v2128 = vpop.f32.mrf.mxu0
  %v2129 = vadd.f32 %v2080, %v2128
  %v2130 = vpop.f32.mrf.mxu0
  %v2131 = vadd.f32 %v2082, %v2130
  %2132 = vmatmul.bf16.gmra.mxu0 %v579
  %v2133 = vpop.f32.mrf.mxu0
  %v2134 = vadd.f32 %v2085, %v2133
  %v2135 = vpop.f32.mrf.mxu0
  %v2136 = vadd.f32 %v2087, %v2135
  %2137 = vmatmul.bf16.gmra.mxu0 %v583
  %v2138 = vpop.f32.mrf.mxu0
  %v2139 = vadd.f32 %v2090, %v2138
  %v2140 = vpop.f32.mrf.mxu0
  %v2141 = vadd.f32 %v2092, %v2140
  %2142 = vmatmul.bf16.gmra.mxu0 %v587
  %v2143 = vpop.f32.mrf.mxu0
  %v2144 = vadd.f32 %v2095, %v2143
  %v2145 = vpop.f32.mrf.mxu0
  %v2146 = vadd.f32 %v2097, %v2145
  %2147 = vmatmul.bf16.gmra.mxu0 %v591
  %v2148 = vpop.f32.mrf.mxu0
  %v2149 = vadd.f32 %v2100, %v2148
  %v2150 = vpop.f32.mrf.mxu0
  %v2151 = vadd.f32 %v2102, %v2150
  %2152 = vmatmul.bf16.gmra.mxu0 %v595
  %v2153 = vpop.f32.mrf.mxu0
  %v2154 = vadd.f32 %v2105, %v2153
  %v2155 = vpop.f32.mrf.mxu0
  %v2156 = vadd.f32 %v2107, %v2155
  %2157 = vdwg.mxu0
  %v2158 = vmax.f32 %v1531, 0.0
  %v2159 = vmax.f32 %v1727, 0.0
  %v2160 = vmax.f32 %v1923, 0.0
  %v2161 = vmax.f32 %v2119, 0.0
  %v2162 = vmax.f32 %v1533, 0.0
  %v2163 = vmax.f32 %v1729, 0.0
  %v2164 = vmax.f32 %v1925, 0.0
  %v2165 = vmax.f32 %v2121, 0.0
  %v2166 = vmax.f32 %v1536, 0.0
  %v2167 = vmax.f32 %v1732, 0.0
  %v2168 = vmax.f32 %v1928, 0.0
  %v2169 = vmax.f32 %v2124, 0.0
  %v2170 = vmax.f32 %v1538, 0.0
  %v2171 = vmax.f32 %v1734, 0.0
  %v2172 = vmax.f32 %v1930, 0.0
  %v2173 = vmax.f32 %v2126, 0.0
  %v2174 = vmax.f32 %v1541, 0.0
  %v2175 = vmax.f32 %v1737, 0.0
  %v2176 = vmax.f32 %v1933, 0.0
  %v2177 = vmax.f32 %v2129, 0.0
  %v2178 = vmax.f32 %v1543, 0.0
  %v2179 = vmax.f32 %v1739, 0.0
  %v2180 = vmax.f32 %v1935, 0.0
  %v2181 = vmax.f32 %v2131, 0.0
  %v2182 = vmax.f32 %v1546, 0.0
  %v2183 = vmax.f32 %v1742, 0.0
  %v2184 = vmax.f32 %v1938, 0.0
  %v2185 = vmax.f32 %v2134, 0.0
  %v2186 = vmax.f32 %v1548, 0.0
  %v2187 = vmax.f32 %v1744, 0.0
  %v2188 = vmax.f32 %v1940, 0.0
  %v2189 = vmax.f32 %v2136, 0.0
  %v2190 = vmax.f32 %v1551, 0.0
  %v2191 = vmax.f32 %v1747, 0.0
  %v2192 = vmax.f32 %v1943, 0.0
  %v2193 = vmax.f32 %v2139, 0.0
  %v2194 = vmax.f32 %v1553, 0.0
  %v2195 = vmax.f32 %v1749, 0.0
  %v2196 = vmax.f32 %v1945, 0.0
  %v2197 = vmax.f32 %v2141, 0.0
  %v2198 = vmax.f32 %v1556, 0.0
  %v2199 = vmax.f32 %v1752, 0.0
  %v2200 = vmax.f32 %v1948, 0.0
  %v2201 = vmax.f32 %v2144, 0.0
  %v2202 = vmax.f32 %v1558, 0.0
  %v2203 = vmax.f32 %v1754, 0.0
  %v2204 = vmax.f32 %v1950, 0.0
  %v2205 = vmax.f32 %v2146, 0.0
  %v2206 = vmax.f32 %v1561, 0.0
  %v2207 = vmax.f32 %v1757, 0.0
  %v2208 = vmax.f32 %v1953, 0.0
  %v2209 = vmax.f32 %v2149, 0.0
  %v2210 = vmax.f32 %v1563, 0.0
  %v2211 = vmax.f32 %v1759, 0.0
  %v2212 = vmax.f32 %v1955, 0.0
  %v2213 = vmax.f32 %v2151, 0.0
  %v2214 = vmax.f32 %v1566, 0.0
  %v2215 = vmax.f32 %v1762, 0.0
  %v2216 = vmax.f32 %v1958, 0.0
  %v2217 = vmax.f32 %v2154, 0.0
  %v2218 = vmax.f32 %v1568, 0.0
  %v2219 = vmax.f32 %v1764, 0.0
  %v2220 = vmax.f32 %v1960, 0.0
  %v2221 = vmax.f32 %v2156, 0.0
  %v2222 = vpack.c.bf16 %v2162, %v2158
  %v2223 = vpack.c.bf16 %v2163, %v2159
  %v2224 = vpack.c.bf16 %v2164, %v2160
  %v2225 = vpack.c.bf16 %v2165, %v2161
  %v2226 = vpack.c.bf16 %v2170, %v2166
  %v2227 = vpack.c.bf16 %v2171, %v2167
  %v2228 = vpack.c.bf16 %v2172, %v2168
  %v2229 = vpack.c.bf16 %v2173, %v2169
  %v2230 = vpack.c.bf16 %v2178, %v2174
  %v2231 = vpack.c.bf16 %v2179, %v2175
  %v2232 = vpack.c.bf16 %v2180, %v2176
  %v2233 = vpack.c.bf16 %v2181, %v2177
  %v2234 = vpack.c.bf16 %v2186, %v2182
  %v2235 = vpack.c.bf16 %v2187, %v2183
  %v2236 = vpack.c.bf16 %v2188, %v2184
  %v2237 = vpack.c.bf16 %v2189, %v2185
  %v2238 = vpack.c.bf16 %v2194, %v2190
  %v2239 = vpack.c.bf16 %v2195, %v2191
  %v2240 = vpack.c.bf16 %v2196, %v2192
  %v2241 = vpack.c.bf16 %v2197, %v2193
  %v2242 = vpack.c.bf16 %v2202, %v2198
  %v2243 = vpack.c.bf16 %v2203, %v2199
  %v2244 = vpack.c.bf16 %v2204, %v2200
  %v2245 = vpack.c.bf16 %v2205, %v2201
  %v2246 = vpack.c.bf16 %v2210, %v2206
  %v2247 = vpack.c.bf16 %v2211, %v2207
  %v2248 = vpack.c.bf16 %v2212, %v2208
  %v2249 = vpack.c.bf16 %v2213, %v2209
  %v2250 = vpack.c.bf16 %v2218, %v2214
  %v2251 = vpack.c.bf16 %v2219, %v2215
  %v2252 = vpack.c.bf16 %v2220, %v2216
  %v2253 = vpack.c.bf16 %v2221, %v2217
  %v2254 = vld [vmem:[%s5] sm:$0xff]
  %v2255 = vld [vmem:[%s5 + $0x8] sm:$0xff]
  %v2256 = vld [vmem:[%s5 + $0x10] sm:$0xff]
  %v2257 = vld [vmem:[%s5 + $0x18] sm:$0xff]
  %v2258 = vld [vmem:[%s5 + $0x20] sm:$0xff]
  %v2259 = vld [vmem:[%s5 + $0x28] sm:$0xff]
  %v2260 = vld [vmem:[%s5 + $0x30] sm:$0xff]
  %v2261 = vld [vmem:[%s5 + $0x38] sm:$0xff]
  %v2262 = vld [vmem:[%s5 + $0x40] sm:$0xff]
  %v2263 = vld [vmem:[%s5 + $0x48] sm:$0xff]
  %v2264 = vld [vmem:[%s5 + $0x50] sm:$0xff]
  %v2265 = vld [vmem:[%s5 + $0x58] sm:$0xff]
  %v2266 = vld [vmem:[%s5 + $0x60] sm:$0xff]
  %v2267 = vld [vmem:[%s5 + $0x68] sm:$0xff]
  %v2268 = vld [vmem:[%s5 + $0x70] sm:$0xff]
  %v2269 = vld [vmem:[%s5 + $0x78] sm:$0xff]
  %v2270 = vld [vmem:[%s5 + $0x80] sm:$0xff]
  %v2271 = vld [vmem:[%s5 + $0x88] sm:$0xff]
  %v2272 = vld [vmem:[%s5 + $0x90] sm:$0xff]
  %v2273 = vld [vmem:[%s5 + $0x98] sm:$0xff]
  %v2274 = vld [vmem:[%s5 + $0xa0] sm:$0xff]
  %v2275 = vld [vmem:[%s5 + $0xa8] sm:$0xff]
  %v2276 = vld [vmem:[%s5 + $0xb0] sm:$0xff]
  %v2277 = vld [vmem:[%s5 + $0xb8] sm:$0xff]
  %v2278 = vld [vmem:[%s5 + $0xc0] sm:$0xff]
  %v2279 = vld [vmem:[%s5 + $0xc8] sm:$0xff]
  %v2280 = vld [vmem:[%s5 + $0xd0] sm:$0xff]
  %v2281 = vld [vmem:[%s5 + $0xd8] sm:$0xff]
  %v2282 = vld [vmem:[%s5 + $0xe0] sm:$0xff]
  %v2283 = vld [vmem:[%s5 + $0xe8] sm:$0xff]
  %v2284 = vld [vmem:[%s5 + $0xf0] sm:$0xff]
  %v2285 = vld [vmem:[%s5 + $0xf8] sm:$0xff]
  %v2286 = vld [vmem:[%s5 + $0x100] sm:$0xff]
  %v2287 = vld [vmem:[%s5 + $0x108] sm:$0xff]
  %v2288 = vld [vmem:[%s5 + $0x110] sm:$0xff]
  %v2289 = vld [vmem:[%s5 + $0x118] sm:$0xff]
  %v2290 = vld [vmem:[%s5 + $0x120] sm:$0xff]
  %v2291 = vld [vmem:[%s5 + $0x128] sm:$0xff]
  %v2292 = vld [vmem:[%s5 + $0x130] sm:$0xff]
  %v2293 = vld [vmem:[%s5 + $0x138] sm:$0xff]
  %v2294 = vld [vmem:[%s5 + $0x140] sm:$0xff]
  %v2295 = vld [vmem:[%s5 + $0x148] sm:$0xff]
  %v2296 = vld [vmem:[%s5 + $0x150] sm:$0xff]
  %v2297 = vld [vmem:[%s5 + $0x158] sm:$0xff]
  %v2298 = vld [vmem:[%s5 + $0x160] sm:$0xff]
  %v2299 = vld [vmem:[%s5 + $0x168] sm:$0xff]
  %v2300 = vld [vmem:[%s5 + $0x170] sm:$0xff]
  %v2301 = vld [vmem:[%s5 + $0x178] sm:$0xff]
  %v2302 = vld [vmem:[%s5 + $0x180] sm:$0xff]
  %v2303 = vld [vmem:[%s5 + $0x188] sm:$0xff]
  %v2304 = vld [vmem:[%s5 + $0x190] sm:$0xff]
  %v2305 = vld [vmem:[%s5 + $0x198] sm:$0xff]
  %v2306 = vld [vmem:[%s5 + $0x1a0] sm:$0xff]
  %v2307 = vld [vmem:[%s5 + $0x1a8] sm:$0xff]
  %v2308 = vld [vmem:[%s5 + $0x1b0] sm:$0xff]
  %v2309 = vld [vmem:[%s5 + $0x1b8] sm:$0xff]
  %v2310 = vld [vmem:[%s5 + $0x1c0] sm:$0xff]
  %v2311 = vld [vmem:[%s5 + $0x1c8] sm:$0xff]
  %v2312 = vld [vmem:[%s5 + $0x1d0] sm:$0xff]
  %v2313 = vld [vmem:[%s5 + $0x1d8] sm:$0xff]
  %v2314 = vld [vmem:[%s5 + $0x1e0] sm:$0xff]
  %v2315 = vld [vmem:[%s5 + $0x1e8] sm:$0xff]
  %v2316 = vld [vmem:[%s5 + $0x1f0] sm:$0xff]
  %v2317 = vld [vmem:[%s5 + $0x1f8] sm:$0xff]
  %v2318 = vld [vmem:[%s5 + $0x200] sm:$0xff]
  %v2319 = vld [vmem:[%s5 + $0x208] sm:$0xff]
  %v2320 = vld [vmem:[%s5 + $0x210] sm:$0xff]
  %v2321 = vld [vmem:[%s5 + $0x218] sm:$0xff]
  %v2322 = vld [vmem:[%s5 + $0x220] sm:$0xff]
  %v2323 = vld [vmem:[%s5 + $0x228] sm:$0xff]
  %v2324 = vld [vmem:[%s5 + $0x230] sm:$0xff]
  %v2325 = vld [vmem:[%s5 + $0x238] sm:$0xff]
  %v2326 = vld [vmem:[%s5 + $0x240] sm:$0xff]
  %v2327 = vld [vmem:[%s5 + $0x248] sm:$0xff]
  %v2328 = vld [vmem:[%s5 + $0x250] sm:$0xff]
  %v2329 = vld [vmem:[%s5 + $0x258] sm:$0xff]
  %v2330 = vld [vmem:[%s5 + $0x260] sm:$0xff]
  %v2331 = vld [vmem:[%s5 + $0x268] sm:$0xff]
  %v2332 = vld [vmem:[%s5 + $0x270] sm:$0xff]
  %v2333 = vld [vmem:[%s5 + $0x278] sm:$0xff]
  %v2334 = vld [vmem:[%s5 + $0x280] sm:$0xff]
  %v2335 = vld [vmem:[%s5 + $0x288] sm:$0xff]
  %v2336 = vld [vmem:[%s5 + $0x290] sm:$0xff]
  %v2337 = vld [vmem:[%s5 + $0x298] sm:$0xff]
  %v2338 = vld [vmem:[%s5 + $0x2a0] sm:$0xff]
  %v2339 = vld [vmem:[%s5 + $0x2a8] sm:$0xff]
  %v2340 = vld [vmem:[%s5 + $0x2b0] sm:$0xff]
  %v2341 = vld [vmem:[%s5 + $0x2b8] sm:$0xff]
  %v2342 = vld [vmem:[%s5 + $0x2c0] sm:$0xff]
  %v2343 = vld [vmem:[%s5 + $0x2c8] sm:$0xff]
  %v2344 = vld [vmem:[%s5 + $0x2d0] sm:$0xff]
  %v2345 = vld [vmem:[%s5 + $0x2d8] sm:$0xff]
  %v2346 = vld [vmem:[%s5 + $0x2e0] sm:$0xff]
  %v2347 = vld [vmem:[%s5 + $0x2e8] sm:$0xff]
  %v2348 = vld [vmem:[%s5 + $0x2f0] sm:$0xff]
  %v2349 = vld [vmem:[%s5 + $0x2f8] sm:$0xff]
  %v2350 = vld [vmem:[%s5 + $0x300] sm:$0xff]
  %v2351 = vld [vmem:[%s5 + $0x308] sm:$0xff]
  %v2352 = vld [vmem:[%s5 + $0x310] sm:$0xff]
  %v2353 = vld [vmem:[%s5 + $0x318] sm:$0xff]
  %v2354 = vld [vmem:[%s5 + $0x320] sm:$0xff]
  %v2355 = vld [vmem:[%s5 + $0x328] sm:$0xff]
  %v2356 = vld [vmem:[%s5 + $0x330] sm:$0xff]
  %v2357 = vld [vmem:[%s5 + $0x338] sm:$0xff]
  %v2358 = vld [vmem:[%s5 + $0x340] sm:$0xff]
  %v2359 = vld [vmem:[%s5 + $0x348] sm:$0xff]
  %v2360 = vld [vmem:[%s5 + $0x350] sm:$0xff]
  %v2361 = vld [vmem:[%s5 + $0x358] sm:$0xff]
  %v2362 = vld [vmem:[%s5 + $0x360] sm:$0xff]
  %v2363 = vld [vmem:[%s5 + $0x368] sm:$0xff]
  %v2364 = vld [vmem:[%s5 + $0x370] sm:$0xff]
  %v2365 = vld [vmem:[%s5 + $0x378] sm:$0xff]
  %v2366 = vld [vmem:[%s5 + $0x380] sm:$0xff]
  %v2367 = vld [vmem:[%s5 + $0x388] sm:$0xff]
  %v2368 = vld [vmem:[%s5 + $0x390] sm:$0xff]
  %v2369 = vld [vmem:[%s5 + $0x398] sm:$0xff]
  %v2370 = vld [vmem:[%s5 + $0x3a0] sm:$0xff]
  %v2371 = vld [vmem:[%s5 + $0x3a8] sm:$0xff]
  %v2372 = vld [vmem:[%s5 + $0x3b0] sm:$0xff]
  %v2373 = vld [vmem:[%s5 + $0x3b8] sm:$0xff]
  %v2374 = vld [vmem:[%s5 + $0x3c0] sm:$0xff]
  %v2375 = vld [vmem:[%s5 + $0x3c8] sm:$0xff]
  %v2376 = vld [vmem:[%s5 + $0x3d0] sm:$0xff]
  %v2377 = vld [vmem:[%s5 + $0x3d8] sm:$0xff]
  %v2378 = vld [vmem:[%s5 + $0x3e0] sm:$0xff]
  %v2379 = vld [vmem:[%s5 + $0x3e8] sm:$0xff]
  %v2380 = vld [vmem:[%s5 + $0x3f0] sm:$0xff]
  %v2381 = vld [vmem:[%s5 + $0x3f8] sm:$0xff]
  %v2382 = vld [vmem:[%s6] sm:$0xf]
  %v2384 = vperm.slane %v2382, 0
  %v2385 = vperm.slane %v2382, 1
  %v2386 = vperm.slane %v2382, 2
  %v2387 = vperm.slane %v2382, 3
  %v2520 = vunpack.c.l.b16 %v2254
  %v2521 = vunpack.c.h.b16 %v2254
  %v2522 = vunpack.c.l.b16 %v2255
  %v2523 = vunpack.c.h.b16 %v2255
  %v2524 = vunpack.c.l.b16 %v2256
  %v2525 = vunpack.c.h.b16 %v2256
  %v2526 = vunpack.c.l.b16 %v2257
  %v2527 = vunpack.c.h.b16 %v2257
  %v2528 = vunpack.c.l.b16 %v2258
  %v2529 = vunpack.c.h.b16 %v2258
  %v2530 = vunpack.c.l.b16 %v2259
  %v2531 = vunpack.c.h.b16 %v2259
  %v2532 = vunpack.c.l.b16 %v2260
  %v2533 = vunpack.c.h.b16 %v2260
  %v2534 = vunpack.c.l.b16 %v2261
  %v2535 = vunpack.c.h.b16 %v2261
  %v2536 = vunpack.c.l.b16 %v2262
  %v2537 = vunpack.c.h.b16 %v2262
  %v2538 = vunpack.c.l.b16 %v2263
  %v2539 = vunpack.c.h.b16 %v2263
  %v2540 = vunpack.c.l.b16 %v2264
  %v2541 = vunpack.c.h.b16 %v2264
  %v2542 = vunpack.c.l.b16 %v2265
  %v2543 = vunpack.c.h.b16 %v2265
  %v2544 = vunpack.c.l.b16 %v2266
  %v2545 = vunpack.c.h.b16 %v2266
  %v2546 = vunpack.c.l.b16 %v2267
  %v2547 = vunpack.c.h.b16 %v2267
  %v2548 = vunpack.c.l.b16 %v2268
  %v2549 = vunpack.c.h.b16 %v2268
  %v2550 = vunpack.c.l.b16 %v2269
  %v2551 = vunpack.c.h.b16 %v2269
  %v2552 = vunpack.c.l.b16 %v2270
  %v2553 = vunpack.c.h.b16 %v2270
  %v2554 = vunpack.c.l.b16 %v2271
  %v2555 = vunpack.c.h.b16 %v2271
  %v2556 = vunpack.c.l.b16 %v2272
  %v2557 = vunpack.c.h.b16 %v2272
  %v2558 = vunpack.c.l.b16 %v2273
  %v2559 = vunpack.c.h.b16 %v2273
  %v2560 = vunpack.c.l.b16 %v2274
  %v2561 = vunpack.c.h.b16 %v2274
  %v2562 = vunpack.c.l.b16 %v2275
  %v2563 = vunpack.c.h.b16 %v2275
  %v2564 = vunpack.c.l.b16 %v2276
  %v2565 = vunpack.c.h.b16 %v2276
  %v2566 = vunpack.c.l.b16 %v2277
  %v2567 = vunpack.c.h.b16 %v2277
  %v2568 = vunpack.c.l.b16 %v2278
  %v2569 = vunpack.c.h.b16 %v2278
  %v2570 = vunpack.c.l.b16 %v2279
  %v2571 = vunpack.c.h.b16 %v2279
  %v2572 = vunpack.c.l.b16 %v2280
  %v2573 = vunpack.c.h.b16 %v2280
  %v2574 = vunpack.c.l.b16 %v2281
  %v2575 = vunpack.c.h.b16 %v2281
  %v2576 = vunpack.c.l.b16 %v2282
  %v2577 = vunpack.c.h.b16 %v2282
  %v2578 = vunpack.c.l.b16 %v2283
  %v2579 = vunpack.c.h.b16 %v2283
  %v2580 = vunpack.c.l.b16 %v2284
  %v2581 = vunpack.c.h.b16 %v2284
  %v2582 = vunpack.c.l.b16 %v2285
  %v2583 = vunpack.c.h.b16 %v2285
  %v2584 = vunpack.c.l.b16 %v2286
  %v2585 = vunpack.c.h.b16 %v2286
  %v2586 = vunpack.c.l.b16 %v2287
  %v2587 = vunpack.c.h.b16 %v2287
  %v2588 = vunpack.c.l.b16 %v2288
  %v2589 = vunpack.c.h.b16 %v2288
  %v2590 = vunpack.c.l.b16 %v2289
  %v2591 = vunpack.c.h.b16 %v2289
  %v2592 = vunpack.c.l.b16 %v2290
  %v2593 = vunpack.c.h.b16 %v2290
  %v2594 = vunpack.c.l.b16 %v2291
  %v2595 = vunpack.c.h.b16 %v2291
  %v2596 = vunpack.c.l.b16 %v2292
  %v2597 = vunpack.c.h.b16 %v2292
  %v2598 = vunpack.c.l.b16 %v2293
  %v2599 = vunpack.c.h.b16 %v2293
  %v2600 = vunpack.c.l.b16 %v2294
  %v2601 = vunpack.c.h.b16 %v2294
  %v2602 = vunpack.c.l.b16 %v2295
  %v2603 = vunpack.c.h.b16 %v2295
  %v2604 = vunpack.c.l.b16 %v2296
  %v2605 = vunpack.c.h.b16 %v2296
  %v2606 = vunpack.c.l.b16 %v2297
  %v2607 = vunpack.c.h.b16 %v2297
  %v2608 = vunpack.c.l.b16 %v2298
  %v2609 = vunpack.c.h.b16 %v2298
  %v2610 = vunpack.c.l.b16 %v2299
  %v2611 = vunpack.c.h.b16 %v2299
  %v2612 = vunpack.c.l.b16 %v2300
  %v2613 = vunpack.c.h.b16 %v2300
  %v2614 = vunpack.c.l.b16 %v2301
  %v2615 = vunpack.c.h.b16 %v2301
  %v2616 = vunpack.c.l.b16 %v2302
  %v2617 = vunpack.c.h.b16 %v2302
  %v2618 = vunpack.c.l.b16 %v2303
  %v2619 = vunpack.c.h.b16 %v2303
  %v2620 = vunpack.c.l.b16 %v2304
  %v2621 = vunpack.c.h.b16 %v2304
  %v2622 = vunpack.c.l.b16 %v2305
  %v2623 = vunpack.c.h.b16 %v2305
  %v2624 = vunpack.c.l.b16 %v2306
  %v2625 = vunpack.c.h.b16 %v2306
  %v2626 = vunpack.c.l.b16 %v2307
  %v2627 = vunpack.c.h.b16 %v2307
  %v2628 = vunpack.c.l.b16 %v2308
  %v2629 = vunpack.c.h.b16 %v2308
  %v2630 = vunpack.c.l.b16 %v2309
  %v2631 = vunpack.c.h.b16 %v2309
  %v2632 = vunpack.c.l.b16 %v2310
  %v2633 = vunpack.c.h.b16 %v2310
  %v2634 = vunpack.c.l.b16 %v2311
  %v2635 = vunpack.c.h.b16 %v2311
  %v2636 = vunpack.c.l.b16 %v2312
  %v2637 = vunpack.c.h.b16 %v2312
  %v2638 = vunpack.c.l.b16 %v2313
  %v2639 = vunpack.c.h.b16 %v2313
  %v2640 = vunpack.c.l.b16 %v2314
  %v2641 = vunpack.c.h.b16 %v2314
  %v2642 = vunpack.c.l.b16 %v2315
  %v2643 = vunpack.c.h.b16 %v2315
  %v2644 = vunpack.c.l.b16 %v2316
  %v2645 = vunpack.c.h.b16 %v2316
  %v2646 = vunpack.c.l.b16 %v2317
  %v2647 = vunpack.c.h.b16 %v2317
  %v2648 = vunpack.c.l.b16 %v2318
  %v2649 = vunpack.c.h.b16 %v2318
  %v2650 = vunpack.c.l.b16 %v2319
  %v2651 = vunpack.c.h.b16 %v2319
  %v2652 = vunpack.c.l.b16 %v2320
  %v2653 = vunpack.c.h.b16 %v2320
  %v2654 = vunpack.c.l.b16 %v2321
  %v2655 = vunpack.c.h.b16 %v2321
  %v2656 = vunpack.c.l.b16 %v2322
  %v2657 = vunpack.c.h.b16 %v2322
  %v2658 = vunpack.c.l.b16 %v2323
  %v2659 = vunpack.c.h.b16 %v2323
  %v2660 = vunpack.c.l.b16 %v2324
  %v2661 = vunpack.c.h.b16 %v2324
  %v2662 = vunpack.c.l.b16 %v2325
  %v2663 = vunpack.c.h.b16 %v2325
  %v2664 = vunpack.c.l.b16 %v2326
  %v2665 = vunpack.c.h.b16 %v2326
  %v2666 = vunpack.c.l.b16 %v2327
  %v2667 = vunpack.c.h.b16 %v2327
  %v2668 = vunpack.c.l.b16 %v2328
  %v2669 = vunpack.c.h.b16 %v2328
  %v2670 = vunpack.c.l.b16 %v2329
  %v2671 = vunpack.c.h.b16 %v2329
  %v2672 = vunpack.c.l.b16 %v2330
  %v2673 = vunpack.c.h.b16 %v2330
  %v2674 = vunpack.c.l.b16 %v2331
  %v2675 = vunpack.c.h.b16 %v2331
  %v2676 = vunpack.c.l.b16 %v2332
  %v2677 = vunpack.c.h.b16 %v2332
  %v2678 = vunpack.c.l.b16 %v2333
  %v2679 = vunpack.c.h.b16 %v2333
  %v2680 = vunpack.c.l.b16 %v2334
  %v2681 = vunpack.c.h.b16 %v2334
  %v2682 = vunpack.c.l.b16 %v2335
  %v2683 = vunpack.c.h.b16 %v2335
  %v2684 = vunpack.c.l.b16 %v2336
  %v2685 = vunpack.c.h.b16 %v2336
  %v2686 = vunpack.c.l.b16 %v2337
  %v2687 = vunpack.c.h.b16 %v2337
  %v2688 = vunpack.c.l.b16 %v2338
  %v2689 = vunpack.c.h.b16 %v2338
  %v2690 = vunpack.c.l.b16 %v2339
  %v2691 = vunpack.c.h.b16 %v2339
  %v2692 = vunpack.c.l.b16 %v2340
  %v2693 = vunpack.c.h.b16 %v2340
  %v2694 = vunpack.c.l.b16 %v2341
  %v2695 = vunpack.c.h.b16 %v2341
  %v2696 = vunpack.c.l.b16 %v2342
  %v2697 = vunpack.c.h.b16 %v2342
  %v2698 = vunpack.c.l.b16 %v2343
  %v2699 = vunpack.c.h.b16 %v2343
  %v2700 = vunpack.c.l.b16 %v2344
  %v2701 = vunpack.c.h.b16 %v2344
  %v2702 = vunpack.c.l.b16 %v2345
  %v2703 = vunpack.c.h.b16 %v2345
  %v2704 = vunpack.c.l.b16 %v2346
  %v2705 = vunpack.c.h.b16 %v2346
  %v2706 = vunpack.c.l.b16 %v2347
  %v2707 = vunpack.c.h.b16 %v2347
  %v2708 = vunpack.c.l.b16 %v2348
  %v2709 = vunpack.c.h.b16 %v2348
  %v2710 = vunpack.c.l.b16 %v2349
  %v2711 = vunpack.c.h.b16 %v2349
  %v2712 = vunpack.c.l.b16 %v2350
  %v2713 = vunpack.c.h.b16 %v2350
  %v2714 = vunpack.c.l.b16 %v2351
  %v2715 = vunpack.c.h.b16 %v2351
  %v2716 = vunpack.c.l.b16 %v2352
  %v2717 = vunpack.c.h.b16 %v2352
  %v2718 = vunpack.c.l.b16 %v2353
  %v2719 = vunpack.c.h.b16 %v2353
  %v2720 = vunpack.c.l.b16 %v2354
  %v2721 = vunpack.c.h.b16 %v2354
  %v2722 = vunpack.c.l.b16 %v2355
  %v2723 = vunpack.c.h.b16 %v2355
  %v2724 = vunpack.c.l.b16 %v2356
  %v2725 = vunpack.c.h.b16 %v2356
  %v2726 = vunpack.c.l.b16 %v2357
  %v2727 = vunpack.c.h.b16 %v2357
  %v2728 = vunpack.c.l.b16 %v2358
  %v2729 = vunpack.c.h.b16 %v2358
  %v2730 = vunpack.c.l.b16 %v2359
  %v2731 = vunpack.c.h.b16 %v2359
  %v2732 = vunpack.c.l.b16 %v2360
  %v2733 = vunpack.c.h.b16 %v2360
  %v2734 = vunpack.c.l.b16 %v2361
  %v2735 = vunpack.c.h.b16 %v2361
  %v2736 = vunpack.c.l.b16 %v2362
  %v2737 = vunpack.c.h.b16 %v2362
  %v2738 = vunpack.c.l.b16 %v2363
  %v2739 = vunpack.c.h.b16 %v2363
  %v2740 = vunpack.c.l.b16 %v2364
  %v2741 = vunpack.c.h.b16 %v2364
  %v2742 = vunpack.c.l.b16 %v2365
  %v2743 = vunpack.c.h.b16 %v2365
  %v2744 = vunpack.c.l.b16 %v2366
  %v2745 = vunpack.c.h.b16 %v2366
  %v2746 = vunpack.c.l.b16 %v2367
  %v2747 = vunpack.c.h.b16 %v2367
  %v2748 = vunpack.c.l.b16 %v2368
  %v2749 = vunpack.c.h.b16 %v2368
  %v2750 = vunpack.c.l.b16 %v2369
  %v2751 = vunpack.c.h.b16 %v2369
  %v2752 = vunpack.c.l.b16 %v2370
  %v2753 = vunpack.c.h.b16 %v2370
  %v2754 = vunpack.c.l.b16 %v2371
  %v2755 = vunpack.c.h.b16 %v2371
  %v2756 = vunpack.c.l.b16 %v2372
  %v2757 = vunpack.c.h.b16 %v2372
  %v2758 = vunpack.c.l.b16 %v2373
  %v2759 = vunpack.c.h.b16 %v2373
  %v2760 = vunpack.c.l.b16 %v2374
  %v2761 = vunpack.c.h.b16 %v2374
  %v2762 = vunpack.c.l.b16 %v2375
  %v2763 = vunpack.c.h.b16 %v2375
  %v2764 = vunpack.c.l.b16 %v2376
  %v2765 = vunpack.c.h.b16 %v2376
  %v2766 = vunpack.c.l.b16 %v2377
  %v2767 = vunpack.c.h.b16 %v2377
  %v2768 = vunpack.c.l.b16 %v2378
  %v2769 = vunpack.c.h.b16 %v2378
  %v2770 = vunpack.c.l.b16 %v2379
  %v2771 = vunpack.c.h.b16 %v2379
  %v2772 = vunpack.c.l.b16 %v2380
  %v2773 = vunpack.c.h.b16 %v2380
  %v2774 = vunpack.c.l.b16 %v2381
  %v2775 = vunpack.c.h.b16 %v2381
  %v2776 = vpack.c.b16 %v2524, %v2520
  %v2777 = vpack.c.b16 %v2525, %v2521
  %v2778 = vpack.c.b16 %v2526, %v2522
  %v2779 = vpack.c.b16 %v2527, %v2523
  %v2780 = vpack.c.b16 %v2532, %v2528
  %v2781 = vpack.c.b16 %v2533, %v2529
  %v2782 = vpack.c.b16 %v2534, %v2530
  %v2783 = vpack.c.b16 %v2535, %v2531
  %v2784 = vpack.c.b16 %v2540, %v2536
  %v2785 = vpack.c.b16 %v2541, %v2537
  %v2786 = vpack.c.b16 %v2542, %v2538
  %v2787 = vpack.c.b16 %v2543, %v2539
  %v2788 = vpack.c.b16 %v2548, %v2544
  %v2789 = vpack.c.b16 %v2549, %v2545
  %v2790 = vpack.c.b16 %v2550, %v2546
  %v2791 = vpack.c.b16 %v2551, %v2547
  %v2792 = vpack.c.b16 %v2556, %v2552
  %v2793 = vpack.c.b16 %v2557, %v2553
  %v2794 = vpack.c.b16 %v2558, %v2554
  %v2795 = vpack.c.b16 %v2559, %v2555
  %v2796 = vpack.c.b16 %v2564, %v2560
  %v2797 = vpack.c.b16 %v2565, %v2561
  %v2798 = vpack.c.b16 %v2566, %v2562
  %v2799 = vpack.c.b16 %v2567, %v2563
  %v2800 = vpack.c.b16 %v2572, %v2568
  %v2801 = vpack.c.b16 %v2573, %v2569
  %v2802 = vpack.c.b16 %v2574, %v2570
  %v2803 = vpack.c.b16 %v2575, %v2571
  %v2804 = vpack.c.b16 %v2580, %v2576
  %v2805 = vpack.c.b16 %v2581, %v2577
  %v2806 = vpack.c.b16 %v2582, %v2578
  %v2807 = vpack.c.b16 %v2583, %v2579
  %v2808 = vpack.c.b16 %v2588, %v2584
  %v2809 = vpack.c.b16 %v2589, %v2585
  %v2810 = vpack.c.b16 %v2590, %v2586
  %v2811 = vpack.c.b16 %v2591, %v2587
  %v2812 = vpack.c.b16 %v2596, %v2592
  %v2813 = vpack.c.b16 %v2597, %v2593
  %v2814 = vpack.c.b16 %v2598, %v2594
  %v2815 = vpack.c.b16 %v2599, %v2595
  %v2816 = vpack.c.b16 %v2604, %v2600
  %v2817 = vpack.c.b16 %v2605, %v2601
  %v2818 = vpack.c.b16 %v2606, %v2602
  %v2819 = vpack.c.b16 %v2607, %v2603
  %v2820 = vpack.c.b16 %v2612, %v2608
  %v2821 = vpack.c.b16 %v2613, %v2609
  %v2822 = vpack.c.b16 %v2614, %v2610
  %v2823 = vpack.c.b16 %v2615, %v2611
  %v2824 = vpack.c.b16 %v2620, %v2616
  %v2825 = vpack.c.b16 %v2621, %v2617
  %v2826 = vpack.c.b16 %v2622, %v2618
  %v2827 = vpack.c.b16 %v2623, %v2619
  %v2828 = vpack.c.b16 %v2628, %v2624
  %v2829 = vpack.c.b16 %v2629, %v2625
  %v2830 = vpack.c.b16 %v2630, %v2626
  %v2831 = vpack.c.b16 %v2631, %v2627
  %v2832 = vpack.c.b16 %v2636, %v2632
  %v2833 = vpack.c.b16 %v2637, %v2633
  %v2834 = vpack.c.b16 %v2638, %v2634
  %v2835 = vpack.c.b16 %v2639, %v2635
  %v2836 = vpack.c.b16 %v2644, %v2640
  %v2837 = vpack.c.b16 %v2645, %v2641
  %v2838 = vpack.c.b16 %v2646, %v2642
  %v2839 = vpack.c.b16 %v2647, %v2643
  %v2840 = vpack.c.b16 %v2652, %v2648
  %v2841 = vpack.c.b16 %v2653, %v2649
  %v2842 = vpack.c.b16 %v2654, %v2650
  %v2843 = vpack.c.b16 %v2655, %v2651
  %v2844 = vpack.c.b16 %v2660, %v2656
  %v2845 = vpack.c.b16 %v2661, %v2657
  %v2846 = vpack.c.b16 %v2662, %v2658
  %v2847 = vpack.c.b16 %v2663, %v2659
  %v2848 = vpack.c.b16 %v2668, %v2664
  %v2849 = vpack.c.b16 %v2669, %v2665
  %v2850 = vpack.c.b16 %v2670, %v2666
  %v2851 = vpack.c.b16 %v2671, %v2667
  %v2852 = vpack.c.b16 %v2676, %v2672
  %v2853 = vpack.c.b16 %v2677, %v2673
  %v2854 = vpack.c.b16 %v2678, %v2674
  %v2855 = vpack.c.b16 %v2679, %v2675
  %v2856 = vpack.c.b16 %v2684, %v2680
  %v2857 = vpack.c.b16 %v2685, %v2681
  %v2858 = vpack.c.b16 %v2686, %v2682
  %v2859 = vpack.c.b16 %v2687, %v2683
  %v2860 = vpack.c.b16 %v2692, %v2688
  %v2861 = vpack.c.b16 %v2693, %v2689
  %v2862 = vpack.c.b16 %v2694, %v2690
  %v2863 = vpack.c.b16 %v2695, %v2691
  %v2864 = vpack.c.b16 %v2700, %v2696
  %v2865 = vpack.c.b16 %v2701, %v2697
  %v2866 = vpack.c.b16 %v2702, %v2698
  %v2867 = vpack.c.b16 %v2703, %v2699
  %v2868 = vpack.c.b16 %v2708, %v2704
  %v2869 = vpack.c.b16 %v2709, %v2705
  %v2870 = vpack.c.b16 %v2710, %v2706
  %v2871 = vpack.c.b16 %v2711, %v2707
  %v2872 = vpack.c.b16 %v2716, %v2712
  %v2873 = vpack.c.b16 %v2717, %v2713
  %v2874 = vpack.c.b16 %v2718, %v2714
  %v2875 = vpack.c.b16 %v2719, %v2715
  %v2876 = vpack.c.b16 %v2724, %v2720
  %v2877 = vpack.c.b16 %v2725, %v2721
  %v2878 = vpack.c.b16 %v2726, %v2722
  %v2879 = vpack.c.b16 %v2727, %v2723
  %v2880 = vpack.c.b16 %v2732, %v2728
  %v2881 = vpack.c.b16 %v2733, %v2729
  %v2882 = vpack.c.b16 %v2734, %v2730
  %v2883 = vpack.c.b16 %v2735, %v2731
  %v2884 = vpack.c.b16 %v2740, %v2736
  %v2885 = vpack.c.b16 %v2741, %v2737
  %v2886 = vpack.c.b16 %v2742, %v2738
  %v2887 = vpack.c.b16 %v2743, %v2739
  %v2888 = vpack.c.b16 %v2748, %v2744
  %v2889 = vpack.c.b16 %v2749, %v2745
  %v2890 = vpack.c.b16 %v2750, %v2746
  %v2891 = vpack.c.b16 %v2751, %v2747
  %v2892 = vpack.c.b16 %v2756, %v2752
  %v2893 = vpack.c.b16 %v2757, %v2753
  %v2894 = vpack.c.b16 %v2758, %v2754
  %v2895 = vpack.c.b16 %v2759, %v2755
  %v2896 = vpack.c.b16 %v2764, %v2760
  %v2897 = vpack.c.b16 %v2765, %v2761
  %v2898 = vpack.c.b16 %v2766, %v2762
  %v2899 = vpack.c.b16 %v2767, %v2763
  %v2900 = vpack.c.b16 %v2772, %v2768
  %v2901 = vpack.c.b16 %v2773, %v2769
  %v2902 = vpack.c.b16 %v2774, %v2770
  %v2903 = vpack.c.b16 %v2775, %v2771
  %3032 = vmatpush.bf16.msra.mxu0 %v2804
  %3033 = vmatpush.bf16.msra.mxu0 %v2800
  %3034 = vmatpush.bf16.msra.mxu0 %v2796
  %3035 = vmatpush.bf16.msra.mxu0 %v2792
  %3036 = vmatpush.bf16.msra.mxu0 %v2788
  %3037 = vmatpush.bf16.msra.mxu0 %v2784
  %3038 = vmatpush.bf16.msra.mxu0 %v2780
  %3039 = vmatpush.bf16.msra.mxu0 %v2776
  %3040 = vmatmul.bf16.gmra.mxu0 %v2222
  %v3041 = vpop.f32.mrf.mxu0
  %v3042 = vadd.f32 %v2384, %v3041
  %v3043 = vpop.f32.mrf.mxu0
  %v3044 = vadd.f32 %v2384, %v3043
  %3045 = vmatmul.bf16.gmra.mxu0 %v2226
  %v3046 = vpop.f32.mrf.mxu0
  %v3047 = vadd.f32 %v2384, %v3046
  %v3048 = vpop.f32.mrf.mxu0
  %v3049 = vadd.f32 %v2384, %v3048
  %3050 = vmatmul.bf16.gmra.mxu0 %v2230
  %v3051 = vpop.f32.mrf.mxu0
  %v3052 = vadd.f32 %v2384, %v3051
  %v3053 = vpop.f32.mrf.mxu0
  %v3054 = vadd.f32 %v2384, %v3053
  %3055 = vmatmul.bf16.gmra.mxu0 %v2234
  %v3056 = vpop.f32.mrf.mxu0
  %v3057 = vadd.f32 %v2384, %v3056
  %v3058 = vpop.f32.mrf.mxu0
  %v3059 = vadd.f32 %v2384, %v3058
  %3060 = vmatmul.bf16.gmra.mxu0 %v2238
  %v3061 = vpop.f32.mrf.mxu0
  %v3062 = vadd.f32 %v2384, %v3061
  %v3063 = vpop.f32.mrf.mxu0
  %v3064 = vadd.f32 %v2384, %v3063
  %3065 = vmatmul.bf16.gmra.mxu0 %v2242
  %v3066 = vpop.f32.mrf.mxu0
  %v3067 = vadd.f32 %v2384, %v3066
  %v3068 = vpop.f32.mrf.mxu0
  %v3069 = vadd.f32 %v2384, %v3068
  %3070 = vmatmul.bf16.gmra.mxu0 %v2246
  %v3071 = vpop.f32.mrf.mxu0
  %v3072 = vadd.f32 %v2384, %v3071
  %v3073 = vpop.f32.mrf.mxu0
  %v3074 = vadd.f32 %v2384, %v3073
  %3075 = vmatmul.bf16.gmra.mxu0 %v2250
  %v3076 = vpop.f32.mrf.mxu0
  %v3077 = vadd.f32 %v2384, %v3076
  %v3078 = vpop.f32.mrf.mxu0
  %v3079 = vadd.f32 %v2384, %v3078
  %3080 = vdwg.mxu0
  %3081 = vmatpush.bf16.msra.mxu0 %v2836
  %3082 = vmatpush.bf16.msra.mxu0 %v2832
  %3083 = vmatpush.bf16.msra.mxu0 %v2828
  %3084 = vmatpush.bf16.msra.mxu0 %v2824
  %3085 = vmatpush.bf16.msra.mxu0 %v2820
  %3086 = vmatpush.bf16.msra.mxu0 %v2816
  %3087 = vmatpush.bf16.msra.mxu0 %v2812
  %3088 = vmatpush.bf16.msra.mxu0 %v2808
  %3089 = vmatmul.bf16.gmra.mxu0 %v2223
  %v3090 = vpop.f32.mrf.mxu0
  %v3091 = vadd.f32 %v3042, %v3090
  %v3092 = vpop.f32.mrf.mxu0
  %v3093 = vadd.f32 %v3044, %v3092
  %3094 = vmatmul.bf16.gmra.mxu0 %v2227
  %v3095 = vpop.f32.mrf.mxu0
  %v3096 = vadd.f32 %v3047, %v3095
  %v3097 = vpop.f32.mrf.mxu0
  %v3098 = vadd.f32 %v3049, %v3097
  %3099 = vmatmul.bf16.gmra.mxu0 %v2231
  %v3100 = vpop.f32.mrf.mxu0
  %v3101 = vadd.f32 %v3052, %v3100
  %v3102 = vpop.f32.mrf.mxu0
  %v3103 = vadd.f32 %v3054, %v3102
  %3104 = vmatmul.bf16.gmra.mxu0 %v2235
  %v3105 = vpop.f32.mrf.mxu0
  %v3106 = vadd.f32 %v3057, %v3105
  %v3107 = vpop.f32.mrf.mxu0
  %v3108 = vadd.f32 %v3059, %v3107
  %3109 = vmatmul.bf16.gmra.mxu0 %v2239
  %v3110 = vpop.f32.mrf.mxu0
  %v3111 = vadd.f32 %v3062, %v3110
  %v3112 = vpop.f32.mrf.mxu0
  %v3113 = vadd.f32 %v3064, %v3112
  %3114 = vmatmul.bf16.gmra.mxu0 %v2243
  %v3115 = vpop.f32.mrf.mxu0
  %v3116 = vadd.f32 %v3067, %v3115
  %v3117 = vpop.f32.mrf.mxu0
  %v3118 = vadd.f32 %v3069, %v3117
  %3119 = vmatmul.bf16.gmra.mxu0 %v2247
  %v3120 = vpop.f32.mrf.mxu0
  %v3121 = vadd.f32 %v3072, %v3120
  %v3122 = vpop.f32.mrf.mxu0
  %v3123 = vadd.f32 %v3074, %v3122
  %3124 = vmatmul.bf16.gmra.mxu0 %v2251
  %v3125 = vpop.f32.mrf.mxu0
  %v3126 = vadd.f32 %v3077, %v3125
  %v3127 = vpop.f32.mrf.mxu0
  %v3128 = vadd.f32 %v3079, %v3127
  %3129 = vdwg.mxu0
  %3130 = vmatpush.bf16.msra.mxu0 %v2868
  %3131 = vmatpush.bf16.msra.mxu0 %v2864
  %3132 = vmatpush.bf16.msra.mxu0 %v2860
  %3133 = vmatpush.bf16.msra.mxu0 %v2856
  %3134 = vmatpush.bf16.msra.mxu0 %v2852
  %3135 = vmatpush.bf16.msra.mxu0 %v2848
  %3136 = vmatpush.bf16.msra.mxu0 %v2844
  %3137 = vmatpush.bf16.msra.mxu0 %v2840
  %3138 = vmatmul.bf16.gmra.mxu0 %v2224
  %v3139 = vpop.f32.mrf.mxu0
  %v3140 = vadd.f32 %v3091, %v3139
  %v3141 = vpop.f32.mrf.mxu0
  %v3142 = vadd.f32 %v3093, %v3141
  %3143 = vmatmul.bf16.gmra.mxu0 %v2228
  %v3144 = vpop.f32.mrf.mxu0
  %v3145 = vadd.f32 %v3096, %v3144
  %v3146 = vpop.f32.mrf.mxu0
  %v3147 = vadd.f32 %v3098, %v3146
  %3148 = vmatmul.bf16.gmra.mxu0 %v2232
  %v3149 = vpop.f32.mrf.mxu0
  %v3150 = vadd.f32 %v3101, %v3149
  %v3151 = vpop.f32.mrf.mxu0
  %v3152 = vadd.f32 %v3103, %v3151
  %3153 = vmatmul.bf16.gmra.mxu0 %v2236
  %v3154 = vpop.f32.mrf.mxu0
  %v3155 = vadd.f32 %v3106, %v3154
  %v3156 = vpop.f32.mrf.mxu0
  %v3157 = vadd.f32 %v3108, %v3156
  %3158 = vmatmul.bf16.gmra.mxu0 %v2240
  %v3159 = vpop.f32.mrf.mxu0
  %v3160 = vadd.f32 %v3111, %v3159
  %v3161 = vpop.f32.mrf.mxu0
  %v3162 = vadd.f32 %v3113, %v3161
  %3163 = vmatmul.bf16.gmra.mxu0 %v2244
  %v3164 = vpop.f32.mrf.mxu0
  %v3165 = vadd.f32 %v3116, %v3164
  %v3166 = vpop.f32.mrf.mxu0
  %v3167 = vadd.f32 %v3118, %v3166
  %3168 = vmatmul.bf16.gmra.mxu0 %v2248
  %v3169 = vpop.f32.mrf.mxu0
  %v3170 = vadd.f32 %v3121, %v3169
  %v3171 = vpop.f32.mrf.mxu0
  %v3172 = vadd.f32 %v3123, %v3171
  %3173 = vmatmul.bf16.gmra.mxu0 %v2252
  %v3174 = vpop.f32.mrf.mxu0
  %v3175 = vadd.f32 %v3126, %v3174
  %v3176 = vpop.f32.mrf.mxu0
  %v3177 = vadd.f32 %v3128, %v3176
  %3178 = vdwg.mxu0
  %3179 = vmatpush.bf16.msra.mxu0 %v2900
  %3180 = vmatpush.bf16.msra.mxu0 %v2896
  %3181 = vmatpush.bf16.msra.mxu0 %v2892
  %3182 = vmatpush.bf16.msra.mxu0 %v2888
  %3183 = vmatpush.bf16.msra.mxu0 %v2884
  %3184 = vmatpush.bf16.msra.mxu0 %v2880
  %3185 = vmatpush.bf16.msra.mxu0 %v2876
  %3186 = vmatpush.bf16.msra.mxu0 %v2872
  %3187 = vmatmul.bf16.gmra.mxu0 %v2225
  %v3188 = vpop.f32.mrf.mxu0
  %v3189 = vadd.f32 %v3140, %v3188
  %v3190 = vpop.f32.mrf.mxu0
  %v3191 = vadd.f32 %v3142, %v3190
  %3192 = vmatmul.bf16.gmra.mxu0 %v2229
  %v3193 = vpop.f32.mrf.mxu0
  %v3194 = vadd.f32 %v3145, %v3193
  %v3195 = vpop.f32.mrf.mxu0
  %v3196 = vadd.f32 %v3147, %v3195
  %3197 = vmatmul.bf16.gmra.mxu0 %v2233
  %v3198 = vpop.f32.mrf.mxu0
  %v3199 = vadd.f32 %v3150, %v3198
  %v3200 = vpop.f32.mrf.mxu0
  %v3201 = vadd.f32 %v3152, %v3200
  %3202 = vmatmul.bf16.gmra.mxu0 %v2237
  %v3203 = vpop.f32.mrf.mxu0
  %v3204 = vadd.f32 %v3155, %v3203
  %v3205 = vpop.f32.mrf.mxu0
  %v3206 = vadd.f32 %v3157, %v3205
  %3207 = vmatmul.bf16.gmra.mxu0 %v2241
  %v3208 = vpop.f32.mrf.mxu0
  %v3209 = vadd.f32 %v3160, %v3208
  %v3210 = vpop.f32.mrf.mxu0
  %v3211 = vadd.f32 %v3162, %v3210
  %3212 = vmatmul.bf16.gmra.mxu0 %v2245
  %v3213 = vpop.f32.mrf.mxu0
  %v3214 = vadd.f32 %v3165, %v3213
  %v3215 = vpop.f32.mrf.mxu0
  %v3216 = vadd.f32 %v3167, %v3215
  %3217 = vmatmul.bf16.gmra.mxu0 %v2249
  %v3218 = vpop.f32.mrf.mxu0
  %v3219 = vadd.f32 %v3170, %v3218
  %v3220 = vpop.f32.mrf.mxu0
  %v3221 = vadd.f32 %v3172, %v3220
  %3222 = vmatmul.bf16.gmra.mxu0 %v2253
  %v3223 = vpop.f32.mrf.mxu0
  %v3224 = vadd.f32 %v3175, %v3223
  %v3225 = vpop.f32.mrf.mxu0
  %v3226 = vadd.f32 %v3177, %v3225
  %3227 = vdwg.mxu0
  %3228 = vmatpush.bf16.msra.mxu0 %v2805
  %3229 = vmatpush.bf16.msra.mxu0 %v2801
  %3230 = vmatpush.bf16.msra.mxu0 %v2797
  %3231 = vmatpush.bf16.msra.mxu0 %v2793
  %3232 = vmatpush.bf16.msra.mxu0 %v2789
  %3233 = vmatpush.bf16.msra.mxu0 %v2785
  %3234 = vmatpush.bf16.msra.mxu0 %v2781
  %3235 = vmatpush.bf16.msra.mxu0 %v2777
  %3236 = vmatmul.bf16.gmra.mxu0 %v2222
  %v3237 = vpop.f32.mrf.mxu0
  %v3238 = vadd.f32 %v2385, %v3237
  %v3239 = vpop.f32.mrf.mxu0
  %v3240 = vadd.f32 %v2385, %v3239
  %3241 = vmatmul.bf16.gmra.mxu0 %v2226
  %v3242 = vpop.f32.mrf.mxu0
  %v3243 = vadd.f32 %v2385, %v3242
  %v3244 = vpop.f32.mrf.mxu0
  %v3245 = vadd.f32 %v2385, %v3244
  %3246 = vmatmul.bf16.gmra.mxu0 %v2230
  %v3247 = vpop.f32.mrf.mxu0
  %v3248 = vadd.f32 %v2385, %v3247
  %v3249 = vpop.f32.mrf.mxu0
  %v3250 = vadd.f32 %v2385, %v3249
  %3251 = vmatmul.bf16.gmra.mxu0 %v2234
  %v3252 = vpop.f32.mrf.mxu0
  %v3253 = vadd.f32 %v2385, %v3252
  %v3254 = vpop.f32.mrf.mxu0
  %v3255 = vadd.f32 %v2385, %v3254
  %3256 = vmatmul.bf16.gmra.mxu0 %v2238
  %v3257 = vpop.f32.mrf.mxu0
  %v3258 = vadd.f32 %v2385, %v3257
  %v3259 = vpop.f32.mrf.mxu0
  %v3260 = vadd.f32 %v2385, %v3259
  %3261 = vmatmul.bf16.gmra.mxu0 %v2242
  %v3262 = vpop.f32.mrf.mxu0
  %v3263 = vadd.f32 %v2385, %v3262
  %v3264 = vpop.f32.mrf.mxu0
  %v3265 = vadd.f32 %v2385, %v3264
  %3266 = vmatmul.bf16.gmra.mxu0 %v2246
  %v3267 = vpop.f32.mrf.mxu0
  %v3268 = vadd.f32 %v2385, %v3267
  %v3269 = vpop.f32.mrf.mxu0
  %v3270 = vadd.f32 %v2385, %v3269
  %3271 = vmatmul.bf16.gmra.mxu0 %v2250
  %v3272 = vpop.f32.mrf.mxu0
  %v3273 = vadd.f32 %v2385, %v3272
  %v3274 = vpop.f32.mrf.mxu0
  %v3275 = vadd.f32 %v2385, %v3274
  %3276 = vdwg.mxu0
  %3277 = vmatpush.bf16.msra.mxu0 %v2837
  %3278 = vmatpush.bf16.msra.mxu0 %v2833
  %3279 = vmatpush.bf16.msra.mxu0 %v2829
  %3280 = vmatpush.bf16.msra.mxu0 %v2825
  %3281 = vmatpush.bf16.msra.mxu0 %v2821
  %3282 = vmatpush.bf16.msra.mxu0 %v2817
  %3283 = vmatpush.bf16.msra.mxu0 %v2813
  %3284 = vmatpush.bf16.msra.mxu0 %v2809
  %3285 = vmatmul.bf16.gmra.mxu0 %v2223
  %v3286 = vpop.f32.mrf.mxu0
  %v3287 = vadd.f32 %v3238, %v3286
  %v3288 = vpop.f32.mrf.mxu0
  %v3289 = vadd.f32 %v3240, %v3288
  %3290 = vmatmul.bf16.gmra.mxu0 %v2227
  %v3291 = vpop.f32.mrf.mxu0
  %v3292 = vadd.f32 %v3243, %v3291
  %v3293 = vpop.f32.mrf.mxu0
  %v3294 = vadd.f32 %v3245, %v3293
  %3295 = vmatmul.bf16.gmra.mxu0 %v2231
  %v3296 = vpop.f32.mrf.mxu0
  %v3297 = vadd.f32 %v3248, %v3296
  %v3298 = vpop.f32.mrf.mxu0
  %v3299 = vadd.f32 %v3250, %v3298
  %3300 = vmatmul.bf16.gmra.mxu0 %v2235
  %v3301 = vpop.f32.mrf.mxu0
  %v3302 = vadd.f32 %v3253, %v3301
  %v3303 = vpop.f32.mrf.mxu0
  %v3304 = vadd.f32 %v3255, %v3303
  %3305 = vmatmul.bf16.gmra.mxu0 %v2239
  %v3306 = vpop.f32.mrf.mxu0
  %v3307 = vadd.f32 %v3258, %v3306
  %v3308 = vpop.f32.mrf.mxu0
  %v3309 = vadd.f32 %v3260, %v3308
  %3310 = vmatmul.bf16.gmra.mxu0 %v2243
  %v3311 = vpop.f32.mrf.mxu0
  %v3312 = vadd.f32 %v3263, %v3311
  %v3313 = vpop.f32.mrf.mxu0
  %v3314 = vadd.f32 %v3265, %v3313
  %3315 = vmatmul.bf16.gmra.mxu0 %v2247
  %v3316 = vpop.f32.mrf.mxu0
  %v3317 = vadd.f32 %v3268, %v3316
  %v3318 = vpop.f32.mrf.mxu0
  %v3319 = vadd.f32 %v3270, %v3318
  %3320 = vmatmul.bf16.gmra.mxu0 %v2251
  %v3321 = vpop.f32.mrf.mxu0
  %v3322 = vadd.f32 %v3273, %v3321
  %v3323 = vpop.f32.mrf.mxu0
  %v3324 = vadd.f32 %v3275, %v3323
  %3325 = vdwg.mxu0
  %3326 = vmatpush.bf16.msra.mxu0 %v2869
  %3327 = vmatpush.bf16.msra.mxu0 %v2865
  %3328 = vmatpush.bf16.msra.mxu0 %v2861
  %3329 = vmatpush.bf16.msra.mxu0 %v2857
  %3330 = vmatpush.bf16.msra.mxu0 %v2853
  %3331 = vmatpush.bf16.msra.mxu0 %v2849
  %3332 = vmatpush.bf16.msra.mxu0 %v2845
  %3333 = vmatpush.bf16.msra.mxu0 %v2841
  %3334 = vmatmul.bf16.gmra.mxu0 %v2224
  %v3335 = vpop.f32.mrf.mxu0
  %v3336 = vadd.f32 %v3287, %v3335
  %v3337 = vpop.f32.mrf.mxu0
  %v3338 = vadd.f32 %v3289, %v3337
  %3339 = vmatmul.bf16.gmra.mxu0 %v2228
  %v3340 = vpop.f32.mrf.mxu0
  %v3341 = vadd.f32 %v3292, %v3340
  %v3342 = vpop.f32.mrf.mxu0
  %v3343 = vadd.f32 %v3294, %v3342
  %3344 = vmatmul.bf16.gmra.mxu0 %v2232
  %v3345 = vpop.f32.mrf.mxu0
  %v3346 = vadd.f32 %v3297, %v3345
  %v3347 = vpop.f32.mrf.mxu0
  %v3348 = vadd.f32 %v3299, %v3347
  %3349 = vmatmul.bf16.gmra.mxu0 %v2236
  %v3350 = vpop.f32.mrf.mxu0
  %v3351 = vadd.f32 %v3302, %v3350
  %v3352 = vpop.f32.mrf.mxu0
  %v3353 = vadd.f32 %v3304, %v3352
  %3354 = vmatmul.bf16.gmra.mxu0 %v2240
  %v3355 = vpop.f32.mrf.mxu0
  %v3356 = vadd.f32 %v3307, %v3355
  %v3357 = vpop.f32.mrf.mxu0
  %v3358 = vadd.f32 %v3309, %v3357
  %3359 = vmatmul.bf16.gmra.mxu0 %v2244
  %v3360 = vpop.f32.mrf.mxu0
  %v3361 = vadd.f32 %v3312, %v3360
  %v3362 = vpop.f32.mrf.mxu0
  %v3363 = vadd.f32 %v3314, %v3362
  %3364 = vmatmul.bf16.gmra.mxu0 %v2248
  %v3365 = vpop.f32.mrf.mxu0
  %v3366 = vadd.f32 %v3317, %v3365
  %v3367 = vpop.f32.mrf.mxu0
  %v3368 = vadd.f32 %v3319, %v3367
  %3369 = vmatmul.bf16.gmra.mxu0 %v2252
  %v3370 = vpop.f32.mrf.mxu0
  %v3371 = vadd.f32 %v3322, %v3370
  %v3372 = vpop.f32.mrf.mxu0
  %v3373 = vadd.f32 %v3324, %v3372
  %3374 = vdwg.mxu0
  %3375 = vmatpush.bf16.msra.mxu0 %v2901
  %3376 = vmatpush.bf16.msra.mxu0 %v2897
  %3377 = vmatpush.bf16.msra.mxu0 %v2893
  %3378 = vmatpush.bf16.msra.mxu0 %v2889
  %3379 = vmatpush.bf16.msra.mxu0 %v2885
  %3380 = vmatpush.bf16.msra.mxu0 %v2881
  %3381 = vmatpush.bf16.msra.mxu0 %v2877
  %3382 = vmatpush.bf16.msra.mxu0 %v2873
  %3383 = vmatmul.bf16.gmra.mxu0 %v2225
  %v3384 = vpop.f32.mrf.mxu0
  %v3385 = vadd.f32 %v3336, %v3384
  %v3386 = vpop.f32.mrf.mxu0
  %v3387 = vadd.f32 %v3338, %v3386
  %3388 = vmatmul.bf16.gmra.mxu0 %v2229
  %v3389 = vpop.f32.mrf.mxu0
  %v3390 = vadd.f32 %v3341, %v3389
  %v3391 = vpop.f32.mrf.mxu0
  %v3392 = vadd.f32 %v3343, %v3391
  %3393 = vmatmul.bf16.gmra.mxu0 %v2233
  %v3394 = vpop.f32.mrf.mxu0
  %v3395 = vadd.f32 %v3346, %v3394
  %v3396 = vpop.f32.mrf.mxu0
  %v3397 = vadd.f32 %v3348, %v3396
  %3398 = vmatmul.bf16.gmra.mxu0 %v2237
  %v3399 = vpop.f32.mrf.mxu0
  %v3400 = vadd.f32 %v3351, %v3399
  %v3401 = vpop.f32.mrf.mxu0
  %v3402 = vadd.f32 %v3353, %v3401
  %3403 = vmatmul.bf16.gmra.mxu0 %v2241
  %v3404 = vpop.f32.mrf.mxu0
  %v3405 = vadd.f32 %v3356, %v3404
  %v3406 = vpop.f32.mrf.mxu0
  %v3407 = vadd.f32 %v3358, %v3406
  %3408 = vmatmul.bf16.gmra.mxu0 %v2245
  %v3409 = vpop.f32.mrf.mxu0
  %v3410 = vadd.f32 %v3361, %v3409
  %v3411 = vpop.f32.mrf.mxu0
  %v3412 = vadd.f32 %v3363, %v3411
  %3413 = vmatmul.bf16.gmra.mxu0 %v2249
  %v3414 = vpop.f32.mrf.mxu0
  %v3415 = vadd.f32 %v3366, %v3414
  %v3416 = vpop.f32.mrf.mxu0
  %v3417 = vadd.f32 %v3368, %v3416
  %3418 = vmatmul.bf16.gmra.mxu0 %v2253
  %v3419 = vpop.f32.mrf.mxu0
  %v3420 = vadd.f32 %v3371, %v3419
  %v3421 = vpop.f32.mrf.mxu0
  %v3422 = vadd.f32 %v3373, %v3421
  %3423 = vdwg.mxu0
  %3424 = vmatpush.bf16.msra.mxu0 %v2806
  %3425 = vmatpush.bf16.msra.mxu0 %v2802
  %3426 = vmatpush.bf16.msra.mxu0 %v2798
  %3427 = vmatpush.bf16.msra.mxu0 %v2794
  %3428 = vmatpush.bf16.msra.mxu0 %v2790
  %3429 = vmatpush.bf16.msra.mxu0 %v2786
  %3430 = vmatpush.bf16.msra.mxu0 %v2782
  %3431 = vmatpush.bf16.msra.mxu0 %v2778
  %3432 = vmatmul.bf16.gmra.mxu0 %v2222
  %v3433 = vpop.f32.mrf.mxu0
  %v3434 = vadd.f32 %v2386, %v3433
  %v3435 = vpop.f32.mrf.mxu0
  %v3436 = vadd.f32 %v2386, %v3435
  %3437 = vmatmul.bf16.gmra.mxu0 %v2226
  %v3438 = vpop.f32.mrf.mxu0
  %v3439 = vadd.f32 %v2386, %v3438
  %v3440 = vpop.f32.mrf.mxu0
  %v3441 = vadd.f32 %v2386, %v3440
  %3442 = vmatmul.bf16.gmra.mxu0 %v2230
  %v3443 = vpop.f32.mrf.mxu0
  %v3444 = vadd.f32 %v2386, %v3443
  %v3445 = vpop.f32.mrf.mxu0
  %v3446 = vadd.f32 %v2386, %v3445
  %3447 = vmatmul.bf16.gmra.mxu0 %v2234
  %v3448 = vpop.f32.mrf.mxu0
  %v3449 = vadd.f32 %v2386, %v3448
  %v3450 = vpop.f32.mrf.mxu0
  %v3451 = vadd.f32 %v2386, %v3450
  %3452 = vmatmul.bf16.gmra.mxu0 %v2238
  %v3453 = vpop.f32.mrf.mxu0
  %v3454 = vadd.f32 %v2386, %v3453
  %v3455 = vpop.f32.mrf.mxu0
  %v3456 = vadd.f32 %v2386, %v3455
  %3457 = vmatmul.bf16.gmra.mxu0 %v2242
  %v3458 = vpop.f32.mrf.mxu0
  %v3459 = vadd.f32 %v2386, %v3458
  %v3460 = vpop.f32.mrf.mxu0
  %v3461 = vadd.f32 %v2386, %v3460
  %3462 = vmatmul.bf16.gmra.mxu0 %v2246
  %v3463 = vpop.f32.mrf.mxu0
  %v3464 = vadd.f32 %v2386, %v3463
  %v3465 = vpop.f32.mrf.mxu0
  %v3466 = vadd.f32 %v2386, %v3465
  %3467 = vmatmul.bf16.gmra.mxu0 %v2250
  %v3468 = vpop.f32.mrf.mxu0
  %v3469 = vadd.f32 %v2386, %v3468
  %v3470 = vpop.f32.mrf.mxu0
  %v3471 = vadd.f32 %v2386, %v3470
  %3472 = vdwg.mxu0
  %3473 = vmatpush.bf16.msra.mxu0 %v2838
  %3474 = vmatpush.bf16.msra.mxu0 %v2834
  %3475 = vmatpush.bf16.msra.mxu0 %v2830
  %3476 = vmatpush.bf16.msra.mxu0 %v2826
  %3477 = vmatpush.bf16.msra.mxu0 %v2822
  %3478 = vmatpush.bf16.msra.mxu0 %v2818
  %3479 = vmatpush.bf16.msra.mxu0 %v2814
  %3480 = vmatpush.bf16.msra.mxu0 %v2810
  %3481 = vmatmul.bf16.gmra.mxu0 %v2223
  %v3482 = vpop.f32.mrf.mxu0
  %v3483 = vadd.f32 %v3434, %v3482
  %v3484 = vpop.f32.mrf.mxu0
  %v3485 = vadd.f32 %v3436, %v3484
  %3486 = vmatmul.bf16.gmra.mxu0 %v2227
  %v3487 = vpop.f32.mrf.mxu0
  %v3488 = vadd.f32 %v3439, %v3487
  %v3489 = vpop.f32.mrf.mxu0
  %v3490 = vadd.f32 %v3441, %v3489
  %3491 = vmatmul.bf16.gmra.mxu0 %v2231
  %v3492 = vpop.f32.mrf.mxu0
  %v3493 = vadd.f32 %v3444, %v3492
  %v3494 = vpop.f32.mrf.mxu0
  %v3495 = vadd.f32 %v3446, %v3494
  %3496 = vmatmul.bf16.gmra.mxu0 %v2235
  %v3497 = vpop.f32.mrf.mxu0
  %v3498 = vadd.f32 %v3449, %v3497
  %v3499 = vpop.f32.mrf.mxu0
  %v3500 = vadd.f32 %v3451, %v3499
  %3501 = vmatmul.bf16.gmra.mxu0 %v2239
  %v3502 = vpop.f32.mrf.mxu0
  %v3503 = vadd.f32 %v3454, %v3502
  %v3504 = vpop.f32.mrf.mxu0
  %v3505 = vadd.f32 %v3456, %v3504
  %3506 = vmatmul.bf16.gmra.mxu0 %v2243
  %v3507 = vpop.f32.mrf.mxu0
  %v3508 = vadd.f32 %v3459, %v3507
  %v3509 = vpop.f32.mrf.mxu0
  %v3510 = vadd.f32 %v3461, %v3509
  %3511 = vmatmul.bf16.gmra.mxu0 %v2247
  %v3512 = vpop.f32.mrf.mxu0
  %v3513 = vadd.f32 %v3464, %v3512
  %v3514 = vpop.f32.mrf.mxu0
  %v3515 = vadd.f32 %v3466, %v3514
  %3516 = vmatmul.bf16.gmra.mxu0 %v2251
  %v3517 = vpop.f32.mrf.mxu0
  %v3518 = vadd.f32 %v3469, %v3517
  %v3519 = vpop.f32.mrf.mxu0
  %v3520 = vadd.f32 %v3471, %v3519
  %3521 = vdwg.mxu0
  %3522 = vmatpush.bf16.msra.mxu0 %v2870
  %3523 = vmatpush.bf16.msra.mxu0 %v2866
  %3524 = vmatpush.bf16.msra.mxu0 %v2862
  %3525 = vmatpush.bf16.msra.mxu0 %v2858
  %3526 = vmatpush.bf16.msra.mxu0 %v2854
  %3527 = vmatpush.bf16.msra.mxu0 %v2850
  %3528 = vmatpush.bf16.msra.mxu0 %v2846
  %3529 = vmatpush.bf16.msra.mxu0 %v2842
  %3530 = vmatmul.bf16.gmra.mxu0 %v2224
  %v3531 = vpop.f32.mrf.mxu0
  %v3532 = vadd.f32 %v3483, %v3531
  %v3533 = vpop.f32.mrf.mxu0
  %v3534 = vadd.f32 %v3485, %v3533
  %3535 = vmatmul.bf16.gmra.mxu0 %v2228
  %v3536 = vpop.f32.mrf.mxu0
  %v3537 = vadd.f32 %v3488, %v3536
  %v3538 = vpop.f32.mrf.mxu0
  %v3539 = vadd.f32 %v3490, %v3538
  %3540 = vmatmul.bf16.gmra.mxu0 %v2232
  %v3541 = vpop.f32.mrf.mxu0
  %v3542 = vadd.f32 %v3493, %v3541
  %v3543 = vpop.f32.mrf.mxu0
  %v3544 = vadd.f32 %v3495, %v3543
  %3545 = vmatmul.bf16.gmra.mxu0 %v2236
  %v3546 = vpop.f32.mrf.mxu0
  %v3547 = vadd.f32 %v3498, %v3546
  %v3548 = vpop.f32.mrf.mxu0
  %v3549 = vadd.f32 %v3500, %v3548
  %3550 = vmatmul.bf16.gmra.mxu0 %v2240
  %v3551 = vpop.f32.mrf.mxu0
  %v3552 = vadd.f32 %v3503, %v3551
  %v3553 = vpop.f32.mrf.mxu0
  %v3554 = vadd.f32 %v3505, %v3553
  %3555 = vmatmul.bf16.gmra.mxu0 %v2244
  %v3556 = vpop.f32.mrf.mxu0
  %v3557 = vadd.f32 %v3508, %v3556
  %v3558 = vpop.f32.mrf.mxu0
  %v3559 = vadd.f32 %v3510, %v3558
  %3560 = vmatmul.bf16.gmra.mxu0 %v2248
  %v3561 = vpop.f32.mrf.mxu0
  %v3562 = vadd.f32 %v3513, %v3561
  %v3563 = vpop.f32.mrf.mxu0
  %v3564 = vadd.f32 %v3515, %v3563
  %3565 = vmatmul.bf16.gmra.mxu0 %v2252
  %v3566 = vpop.f32.mrf.mxu0
  %v3567 = vadd.f32 %v3518, %v3566
  %v3568 = vpop.f32.mrf.mxu0
  %v3569 = vadd.f32 %v3520, %v3568
  %3570 = vdwg.mxu0
  %3571 = vmatpush.bf16.msra.mxu0 %v2902
  %3572 = vmatpush.bf16.msra.mxu0 %v2898
  %3573 = vmatpush.bf16.msra.mxu0 %v2894
  %3574 = vmatpush.bf16.msra.mxu0 %v2890
  %3575 = vmatpush.bf16.msra.mxu0 %v2886
  %3576 = vmatpush.bf16.msra.mxu0 %v2882
  %3577 = vmatpush.bf16.msra.mxu0 %v2878
  %3578 = vmatpush.bf16.msra.mxu0 %v2874
  %3579 = vmatmul.bf16.gmra.mxu0 %v2225
  %v3580 = vpop.f32.mrf.mxu0
  %v3581 = vadd.f32 %v3532, %v3580
  %v3582 = vpop.f32.mrf.mxu0
  %v3583 = vadd.f32 %v3534, %v3582
  %3584 = vmatmul.bf16.gmra.mxu0 %v2229
  %v3585 = vpop.f32.mrf.mxu0
  %v3586 = vadd.f32 %v3537, %v3585
  %v3587 = vpop.f32.mrf.mxu0
  %v3588 = vadd.f32 %v3539, %v3587
  %3589 = vmatmul.bf16.gmra.mxu0 %v2233
  %v3590 = vpop.f32.mrf.mxu0
  %v3591 = vadd.f32 %v3542, %v3590
  %v3592 = vpop.f32.mrf.mxu0
  %v3593 = vadd.f32 %v3544, %v3592
  %3594 = vmatmul.bf16.gmra.mxu0 %v2237
  %v3595 = vpop.f32.mrf.mxu0
  %v3596 = vadd.f32 %v3547, %v3595
  %v3597 = vpop.f32.mrf.mxu0
  %v3598 = vadd.f32 %v3549, %v3597
  %3599 = vmatmul.bf16.gmra.mxu0 %v2241
  %v3600 = vpop.f32.mrf.mxu0
  %v3601 = vadd.f32 %v3552, %v3600
  %v3602 = vpop.f32.mrf.mxu0
  %v3603 = vadd.f32 %v3554, %v3602
  %3604 = vmatmul.bf16.gmra.mxu0 %v2245
  %v3605 = vpop.f32.mrf.mxu0
  %v3606 = vadd.f32 %v3557, %v3605
  %v3607 = vpop.f32.mrf.mxu0
  %v3608 = vadd.f32 %v3559, %v3607
  %3609 = vmatmul.bf16.gmra.mxu0 %v2249
  %v3610 = vpop.f32.mrf.mxu0
  %v3611 = vadd.f32 %v3562, %v3610
  %v3612 = vpop.f32.mrf.mxu0
  %v3613 = vadd.f32 %v3564, %v3612
  %3614 = vmatmul.bf16.gmra.mxu0 %v2253
  %v3615 = vpop.f32.mrf.mxu0
  %v3616 = vadd.f32 %v3567, %v3615
  %v3617 = vpop.f32.mrf.mxu0
  %v3618 = vadd.f32 %v3569, %v3617
  %3619 = vdwg.mxu0
  %3620 = vmatpush.bf16.msra.mxu0 %v2807
  %3621 = vmatpush.bf16.msra.mxu0 %v2803
  %3622 = vmatpush.bf16.msra.mxu0 %v2799
  %3623 = vmatpush.bf16.msra.mxu0 %v2795
  %3624 = vmatpush.bf16.msra.mxu0 %v2791
  %3625 = vmatpush.bf16.msra.mxu0 %v2787
  %3626 = vmatpush.bf16.msra.mxu0 %v2783
  %3627 = vmatpush.bf16.msra.mxu0 %v2779
  %3628 = vmatmul.bf16.gmra.mxu0 %v2222
  %v3629 = vpop.f32.mrf.mxu0
  %v3630 = vadd.f32 %v2387, %v3629
  %v3631 = vpop.f32.mrf.mxu0
  %v3632 = vadd.f32 %v2387, %v3631
  %3633 = vmatmul.bf16.gmra.mxu0 %v2226
  %v3634 = vpop.f32.mrf.mxu0
  %v3635 = vadd.f32 %v2387, %v3634
  %v3636 = vpop.f32.mrf.mxu0
  %v3637 = vadd.f32 %v2387, %v3636
  %3638 = vmatmul.bf16.gmra.mxu0 %v2230
  %v3639 = vpop.f32.mrf.mxu0
  %v3640 = vadd.f32 %v2387, %v3639
  %v3641 = vpop.f32.mrf.mxu0
  %v3642 = vadd.f32 %v2387, %v3641
  %3643 = vmatmul.bf16.gmra.mxu0 %v2234
  %v3644 = vpop.f32.mrf.mxu0
  %v3645 = vadd.f32 %v2387, %v3644
  %v3646 = vpop.f32.mrf.mxu0
  %v3647 = vadd.f32 %v2387, %v3646
  %3648 = vmatmul.bf16.gmra.mxu0 %v2238
  %v3649 = vpop.f32.mrf.mxu0
  %v3650 = vadd.f32 %v2387, %v3649
  %v3651 = vpop.f32.mrf.mxu0
  %v3652 = vadd.f32 %v2387, %v3651
  %3653 = vmatmul.bf16.gmra.mxu0 %v2242
  %v3654 = vpop.f32.mrf.mxu0
  %v3655 = vadd.f32 %v2387, %v3654
  %v3656 = vpop.f32.mrf.mxu0
  %v3657 = vadd.f32 %v2387, %v3656
  %3658 = vmatmul.bf16.gmra.mxu0 %v2246
  %v3659 = vpop.f32.mrf.mxu0
  %v3660 = vadd.f32 %v2387, %v3659
  %v3661 = vpop.f32.mrf.mxu0
  %v3662 = vadd.f32 %v2387, %v3661
  %3663 = vmatmul.bf16.gmra.mxu0 %v2250
  %v3664 = vpop.f32.mrf.mxu0
  %v3665 = vadd.f32 %v2387, %v3664
  %v3666 = vpop.f32.mrf.mxu0
  %v3667 = vadd.f32 %v2387, %v3666
  %3668 = vdwg.mxu0
  %3669 = vmatpush.bf16.msra.mxu0 %v2839
  %3670 = vmatpush.bf16.msra.mxu0 %v2835
  %3671 = vmatpush.bf16.msra.mxu0 %v2831
  %3672 = vmatpush.bf16.msra.mxu0 %v2827
  %3673 = vmatpush.bf16.msra.mxu0 %v2823
  %3674 = vmatpush.bf16.msra.mxu0 %v2819
  %3675 = vmatpush.bf16.msra.mxu0 %v2815
  %3676 = vmatpush.bf16.msra.mxu0 %v2811
  %3677 = vmatmul.bf16.gmra.mxu0 %v2223
  %v3678 = vpop.f32.mrf.mxu0
  %v3679 = vadd.f32 %v3630, %v3678
  %v3680 = vpop.f32.mrf.mxu0
  %v3681 = vadd.f32 %v3632, %v3680
  %3682 = vmatmul.bf16.gmra.mxu0 %v2227
  %v3683 = vpop.f32.mrf.mxu0
  %v3684 = vadd.f32 %v3635, %v3683
  %v3685 = vpop.f32.mrf.mxu0
  %v3686 = vadd.f32 %v3637, %v3685
  %3687 = vmatmul.bf16.gmra.mxu0 %v2231
  %v3688 = vpop.f32.mrf.mxu0
  %v3689 = vadd.f32 %v3640, %v3688
  %v3690 = vpop.f32.mrf.mxu0
  %v3691 = vadd.f32 %v3642, %v3690
  %3692 = vmatmul.bf16.gmra.mxu0 %v2235
  %v3693 = vpop.f32.mrf.mxu0
  %v3694 = vadd.f32 %v3645, %v3693
  %v3695 = vpop.f32.mrf.mxu0
  %v3696 = vadd.f32 %v3647, %v3695
  %3697 = vmatmul.bf16.gmra.mxu0 %v2239
  %v3698 = vpop.f32.mrf.mxu0
  %v3699 = vadd.f32 %v3650, %v3698
  %v3700 = vpop.f32.mrf.mxu0
  %v3701 = vadd.f32 %v3652, %v3700
  %3702 = vmatmul.bf16.gmra.mxu0 %v2243
  %v3703 = vpop.f32.mrf.mxu0
  %v3704 = vadd.f32 %v3655, %v3703
  %v3705 = vpop.f32.mrf.mxu0
  %v3706 = vadd.f32 %v3657, %v3705
  %3707 = vmatmul.bf16.gmra.mxu0 %v2247
  %v3708 = vpop.f32.mrf.mxu0
  %v3709 = vadd.f32 %v3660, %v3708
  %v3710 = vpop.f32.mrf.mxu0
  %v3711 = vadd.f32 %v3662, %v3710
  %3712 = vmatmul.bf16.gmra.mxu0 %v2251
  %v3713 = vpop.f32.mrf.mxu0
  %v3714 = vadd.f32 %v3665, %v3713
  %v3715 = vpop.f32.mrf.mxu0
  %v3716 = vadd.f32 %v3667, %v3715
  %3717 = vdwg.mxu0
  %3718 = vmatpush.bf16.msra.mxu0 %v2871
  %3719 = vmatpush.bf16.msra.mxu0 %v2867
  %3720 = vmatpush.bf16.msra.mxu0 %v2863
  %3721 = vmatpush.bf16.msra.mxu0 %v2859
  %3722 = vmatpush.bf16.msra.mxu0 %v2855
  %3723 = vmatpush.bf16.msra.mxu0 %v2851
  %3724 = vmatpush.bf16.msra.mxu0 %v2847
  %3725 = vmatpush.bf16.msra.mxu0 %v2843
  %3726 = vmatmul.bf16.gmra.mxu0 %v2224
  %v3727 = vpop.f32.mrf.mxu0
  %v3728 = vadd.f32 %v3679, %v3727
  %v3729 = vpop.f32.mrf.mxu0
  %v3730 = vadd.f32 %v3681, %v3729
  %3731 = vmatmul.bf16.gmra.mxu0 %v2228
  %v3732 = vpop.f32.mrf.mxu0
  %v3733 = vadd.f32 %v3684, %v3732
  %v3734 = vpop.f32.mrf.mxu0
  %v3735 = vadd.f32 %v3686, %v3734
  %3736 = vmatmul.bf16.gmra.mxu0 %v2232
  %v3737 = vpop.f32.mrf.mxu0
  %v3738 = vadd.f32 %v3689, %v3737
  %v3739 = vpop.f32.mrf.mxu0
  %v3740 = vadd.f32 %v3691, %v3739
  %3741 = vmatmul.bf16.gmra.mxu0 %v2236
  %v3742 = vpop.f32.mrf.mxu0
  %v3743 = vadd.f32 %v3694, %v3742
  %v3744 = vpop.f32.mrf.mxu0
  %v3745 = vadd.f32 %v3696, %v3744
  %3746 = vmatmul.bf16.gmra.mxu0 %v2240
  %v3747 = vpop.f32.mrf.mxu0
  %v3748 = vadd.f32 %v3699, %v3747
  %v3749 = vpop.f32.mrf.mxu0
  %v3750 = vadd.f32 %v3701, %v3749
  %3751 = vmatmul.bf16.gmra.mxu0 %v2244
  %v3752 = vpop.f32.mrf.mxu0
  %v3753 = vadd.f32 %v3704, %v3752
  %v3754 = vpop.f32.mrf.mxu0
  %v3755 = vadd.f32 %v3706, %v3754
  %3756 = vmatmul.bf16.gmra.mxu0 %v2248
  %v3757 = vpop.f32.mrf.mxu0
  %v3758 = vadd.f32 %v3709, %v3757
  %v3759 = vpop.f32.mrf.mxu0
  %v3760 = vadd.f32 %v3711, %v3759
  %3761 = vmatmul.bf16.gmra.mxu0 %v2252
  %v3762 = vpop.f32.mrf.mxu0
  %v3763 = vadd.f32 %v3714, %v3762
  %v3764 = vpop.f32.mrf.mxu0
  %v3765 = vadd.f32 %v3716, %v3764
  %3766 = vdwg.mxu0
  %3767 = vmatpush.bf16.msra.mxu0 %v2903
  %3768 = vmatpush.bf16.msra.mxu0 %v2899
  %3769 = vmatpush.bf16.msra.mxu0 %v2895
  %3770 = vmatpush.bf16.msra.mxu0 %v2891
  %3771 = vmatpush.bf16.msra.mxu0 %v2887
  %3772 = vmatpush.bf16.msra.mxu0 %v2883
  %3773 = vmatpush.bf16.msra.mxu0 %v2879
  %3774 = vmatpush.bf16.msra.mxu0 %v2875
  %3775 = vmatmul.bf16.gmra.mxu0 %v2225
  %v3776 = vpop.f32.mrf.mxu0
  %v3777 = vadd.f32 %v3728, %v3776
  %v3778 = vpop.f32.mrf.mxu0
  %v3779 = vadd.f32 %v3730, %v3778
  %3780 = vmatmul.bf16.gmra.mxu0 %v2229
  %v3781 = vpop.f32.mrf.mxu0
  %v3782 = vadd.f32 %v3733, %v3781
  %v3783 = vpop.f32.mrf.mxu0
  %v3784 = vadd.f32 %v3735, %v3783
  %3785 = vmatmul.bf16.gmra.mxu0 %v2233
  %v3786 = vpop.f32.mrf.mxu0
  %v3787 = vadd.f32 %v3738, %v3786
  %v3788 = vpop.f32.mrf.mxu0
  %v3789 = vadd.f32 %v3740, %v3788
  %3790 = vmatmul.bf16.gmra.mxu0 %v2237
  %v3791 = vpop.f32.mrf.mxu0
  %v3792 = vadd.f32 %v3743, %v3791
  %v3793 = vpop.f32.mrf.mxu0
  %v3794 = vadd.f32 %v3745, %v3793
  %3795 = vmatmul.bf16.gmra.mxu0 %v2241
  %v3796 = vpop.f32.mrf.mxu0
  %v3797 = vadd.f32 %v3748, %v3796
  %v3798 = vpop.f32.mrf.mxu0
  %v3799 = vadd.f32 %v3750, %v3798
  %3800 = vmatmul.bf16.gmra.mxu0 %v2245
  %v3801 = vpop.f32.mrf.mxu0
  %v3802 = vadd.f32 %v3753, %v3801
  %v3803 = vpop.f32.mrf.mxu0
  %v3804 = vadd.f32 %v3755, %v3803
  %3805 = vmatmul.bf16.gmra.mxu0 %v2249
  %v3806 = vpop.f32.mrf.mxu0
  %v3807 = vadd.f32 %v3758, %v3806
  %v3808 = vpop.f32.mrf.mxu0
  %v3809 = vadd.f32 %v3760, %v3808
  %3810 = vmatmul.bf16.gmra.mxu0 %v2253
  %v3811 = vpop.f32.mrf.mxu0
  %v3812 = vadd.f32 %v3763, %v3811
  %v3813 = vpop.f32.mrf.mxu0
  %v3814 = vadd.f32 %v3765, %v3813
  %3815 = vdwg.mxu0
  %v3816 = vmax.f32 %v3189, 0.0
  %v3817 = vmax.f32 %v3385, 0.0
  %v3818 = vmax.f32 %v3581, 0.0
  %v3819 = vmax.f32 %v3777, 0.0
  %v3820 = vmax.f32 %v3191, 0.0
  %v3821 = vmax.f32 %v3387, 0.0
  %v3822 = vmax.f32 %v3583, 0.0
  %v3823 = vmax.f32 %v3779, 0.0
  %v3824 = vmax.f32 %v3194, 0.0
  %v3825 = vmax.f32 %v3390, 0.0
  %v3826 = vmax.f32 %v3586, 0.0
  %v3827 = vmax.f32 %v3782, 0.0
  %v3828 = vmax.f32 %v3196, 0.0
  %v3829 = vmax.f32 %v3392, 0.0
  %v3830 = vmax.f32 %v3588, 0.0
  %v3831 = vmax.f32 %v3784, 0.0
  %v3832 = vmax.f32 %v3199, 0.0
  %v3833 = vmax.f32 %v3395, 0.0
  %v3834 = vmax.f32 %v3591, 0.0
  %v3835 = vmax.f32 %v3787, 0.0
  %v3836 = vmax.f32 %v3201, 0.0
  %v3837 = vmax.f32 %v3397, 0.0
  %v3838 = vmax.f32 %v3593, 0.0
  %v3839 = vmax.f32 %v3789, 0.0
  %v3840 = vmax.f32 %v3204, 0.0
  %v3841 = vmax.f32 %v3400, 0.0
  %v3842 = vmax.f32 %v3596, 0.0
  %v3843 = vmax.f32 %v3792, 0.0
  %v3844 = vmax.f32 %v3206, 0.0
  %v3845 = vmax.f32 %v3402, 0.0
  %v3846 = vmax.f32 %v3598, 0.0
  %v3847 = vmax.f32 %v3794, 0.0
  %v3848 = vmax.f32 %v3209, 0.0
  %v3849 = vmax.f32 %v3405, 0.0
  %v3850 = vmax.f32 %v3601, 0.0
  %v3851 = vmax.f32 %v3797, 0.0
  %v3852 = vmax.f32 %v3211, 0.0
  %v3853 = vmax.f32 %v3407, 0.0
  %v3854 = vmax.f32 %v3603, 0.0
  %v3855 = vmax.f32 %v3799, 0.0
  %v3856 = vmax.f32 %v3214, 0.0
  %v3857 = vmax.f32 %v3410, 0.0
  %v3858 = vmax.f32 %v3606, 0.0
  %v3859 = vmax.f32 %v3802, 0.0
  %v3860 = vmax.f32 %v3216, 0.0
  %v3861 = vmax.f32 %v3412, 0.0
  %v3862 = vmax.f32 %v3608, 0.0
  %v3863 = vmax.f32 %v3804, 0.0
  %v3864 = vmax.f32 %v3219, 0.0
  %v3865 = vmax.f32 %v3415, 0.0
  %v3866 = vmax.f32 %v3611, 0.0
  %v3867 = vmax.f32 %v3807, 0.0
  %v3868 = vmax.f32 %v3221, 0.0
  %v3869 = vmax.f32 %v3417, 0.0
  %v3870 = vmax.f32 %v3613, 0.0
  %v3871 = vmax.f32 %v3809, 0.0
  %v3872 = vmax.f32 %v3224, 0.0
  %v3873 = vmax.f32 %v3420, 0.0
  %v3874 = vmax.f32 %v3616, 0.0
  %v3875 = vmax.f32 %v3812, 0.0
  %v3876 = vmax.f32 %v3226, 0.0
  %v3877 = vmax.f32 %v3422, 0.0
  %v3878 = vmax.f32 %v3618, 0.0
  %v3879 = vmax.f32 %v3814, 0.0
  %v3880 = vpack.c.bf16 %v3820, %v3816
  %v3881 = vpack.c.bf16 %v3821, %v3817
  %v3882 = vpack.c.bf16 %v3822, %v3818
  %v3883 = vpack.c.bf16 %v3823, %v3819
  %v3884 = vpack.c.bf16 %v3828, %v3824
  %v3885 = vpack.c.bf16 %v3829, %v3825
  %v3886 = vpack.c.bf16 %v3830, %v3826
  %v3887 = vpack.c.bf16 %v3831, %v3827
  %v3888 = vpack.c.bf16 %v3836, %v3832
  %v3889 = vpack.c.bf16 %v3837, %v3833
  %v3890 = vpack.c.bf16 %v3838, %v3834
  %v3891 = vpack.c.bf16 %v3839, %v3835
  %v3892 = vpack.c.bf16 %v3844, %v3840
  %v3893 = vpack.c.bf16 %v3845, %v3841
  %v3894 = vpack.c.bf16 %v3846, %v3842
  %v3895 = vpack.c.bf16 %v3847, %v3843
  %v3896 = vpack.c.bf16 %v3852, %v3848
  %v3897 = vpack.c.bf16 %v3853, %v3849
  %v3898 = vpack.c.bf16 %v3854, %v3850
  %v3899 = vpack.c.bf16 %v3855, %v3851
  %v3900 = vpack.c.bf16 %v3860, %v3856
  %v3901 = vpack.c.bf16 %v3861, %v3857
  %v3902 = vpack.c.bf16 %v3862, %v3858
  %v3903 = vpack.c.bf16 %v3863, %v3859
  %v3904 = vpack.c.bf16 %v3868, %v3864
  %v3905 = vpack.c.bf16 %v3869, %v3865
  %v3906 = vpack.c.bf16 %v3870, %v3866
  %v3907 = vpack.c.bf16 %v3871, %v3867
  %v3908 = vpack.c.bf16 %v3876, %v3872
  %v3909 = vpack.c.bf16 %v3877, %v3873
  %v3910 = vpack.c.bf16 %v3878, %v3874
  %v3911 = vpack.c.bf16 %v3879, %v3875
  %v3912 = vld [vmem:[%s7] sm:$0xff]
  %v3913 = vld [vmem:[%s7 + $0x8] sm:$0xff]
  %v3914 = vld [vmem:[%s7 + $0x10] sm:$0xff]
  %v3915 = vld [vmem:[%s7 + $0x18] sm:$0xff]
  %v3916 = vld [vmem:[%s7 + $0x20] sm:$0xff]
  %v3917 = vld [vmem:[%s7 + $0x28] sm:$0xff]
  %v3918 = vld [vmem:[%s7 + $0x30] sm:$0xff]
  %v3919 = vld [vmem:[%s7 + $0x38] sm:$0xff]
  %v3920 = vld [vmem:[%s7 + $0x40] sm:$0xff]
  %v3921 = vld [vmem:[%s7 + $0x48] sm:$0xff]
  %v3922 = vld [vmem:[%s7 + $0x50] sm:$0xff]
  %v3923 = vld [vmem:[%s7 + $0x58] sm:$0xff]
  %v3924 = vld [vmem:[%s7 + $0x60] sm:$0xff]
  %v3925 = vld [vmem:[%s7 + $0x68] sm:$0xff]
  %v3926 = vld [vmem:[%s7 + $0x70] sm:$0xff]
  %v3927 = vld [vmem:[%s7 + $0x78] sm:$0xff]
  %v3928 = vld [vmem:[%s7 + $0x80] sm:$0xff]
  %v3929 = vld [vmem:[%s7 + $0x88] sm:$0xff]
  %v3930 = vld [vmem:[%s7 + $0x90] sm:$0xff]
  %v3931 = vld [vmem:[%s7 + $0x98] sm:$0xff]
  %v3932 = vld [vmem:[%s7 + $0xa0] sm:$0xff]
  %v3933 = vld [vmem:[%s7 + $0xa8] sm:$0xff]
  %v3934 = vld [vmem:[%s7 + $0xb0] sm:$0xff]
  %v3935 = vld [vmem:[%s7 + $0xb8] sm:$0xff]
  %v3936 = vld [vmem:[%s7 + $0xc0] sm:$0xff]
  %v3937 = vld [vmem:[%s7 + $0xc8] sm:$0xff]
  %v3938 = vld [vmem:[%s7 + $0xd0] sm:$0xff]
  %v3939 = vld [vmem:[%s7 + $0xd8] sm:$0xff]
  %v3940 = vld [vmem:[%s7 + $0xe0] sm:$0xff]
  %v3941 = vld [vmem:[%s7 + $0xe8] sm:$0xff]
  %v3942 = vld [vmem:[%s7 + $0xf0] sm:$0xff]
  %v3943 = vld [vmem:[%s7 + $0xf8] sm:$0xff]
  %v3944 = vld [vmem:[%s7 + $0x100] sm:$0xff]
  %v3945 = vld [vmem:[%s7 + $0x108] sm:$0xff]
  %v3946 = vld [vmem:[%s7 + $0x110] sm:$0xff]
  %v3947 = vld [vmem:[%s7 + $0x118] sm:$0xff]
  %v3948 = vld [vmem:[%s7 + $0x120] sm:$0xff]
  %v3949 = vld [vmem:[%s7 + $0x128] sm:$0xff]
  %v3950 = vld [vmem:[%s7 + $0x130] sm:$0xff]
  %v3951 = vld [vmem:[%s7 + $0x138] sm:$0xff]
  %v3952 = vld [vmem:[%s7 + $0x140] sm:$0xff]
  %v3953 = vld [vmem:[%s7 + $0x148] sm:$0xff]
  %v3954 = vld [vmem:[%s7 + $0x150] sm:$0xff]
  %v3955 = vld [vmem:[%s7 + $0x158] sm:$0xff]
  %v3956 = vld [vmem:[%s7 + $0x160] sm:$0xff]
  %v3957 = vld [vmem:[%s7 + $0x168] sm:$0xff]
  %v3958 = vld [vmem:[%s7 + $0x170] sm:$0xff]
  %v3959 = vld [vmem:[%s7 + $0x178] sm:$0xff]
  %v3960 = vld [vmem:[%s7 + $0x180] sm:$0xff]
  %v3961 = vld [vmem:[%s7 + $0x188] sm:$0xff]
  %v3962 = vld [vmem:[%s7 + $0x190] sm:$0xff]
  %v3963 = vld [vmem:[%s7 + $0x198] sm:$0xff]
  %v3964 = vld [vmem:[%s7 + $0x1a0] sm:$0xff]
  %v3965 = vld [vmem:[%s7 + $0x1a8] sm:$0xff]
  %v3966 = vld [vmem:[%s7 + $0x1b0] sm:$0xff]
  %v3967 = vld [vmem:[%s7 + $0x1b8] sm:$0xff]
  %v3968 = vld [vmem:[%s7 + $0x1c0] sm:$0xff]
  %v3969 = vld [vmem:[%s7 + $0x1c8] sm:$0xff]
  %v3970 = vld [vmem:[%s7 + $0x1d0] sm:$0xff]
  %v3971 = vld [vmem:[%s7 + $0x1d8] sm:$0xff]
  %v3972 = vld [vmem:[%s7 + $0x1e0] sm:$0xff]
  %v3973 = vld [vmem:[%s7 + $0x1e8] sm:$0xff]
  %v3974 = vld [vmem:[%s7 + $0x1f0] sm:$0xff]
  %v3975 = vld [vmem:[%s7 + $0x1f8] sm:$0xff]
  %v3976 = vld [vmem:[%s8] sm:$0x3]
  %v3978 = vperm.slane %v3976, 0
  %v3979 = vperm.slane %v3976, 1
  %v4046 = vunpack.c.l.b16 %v3912
  %v4047 = vunpack.c.h.b16 %v3912
  %v4048 = vunpack.c.l.b16 %v3913
  %v4049 = vunpack.c.h.b16 %v3913
  %v4050 = vunpack.c.l.b16 %v3914
  %v4051 = vunpack.c.h.b16 %v3914
  %v4052 = vunpack.c.l.b16 %v3915
  %v4053 = vunpack.c.h.b16 %v3915
  %v4054 = vunpack.c.l.b16 %v3916
  %v4055 = vunpack.c.h.b16 %v3916
  %v4056 = vunpack.c.l.b16 %v3917
  %v4057 = vunpack.c.h.b16 %v3917
  %v4058 = vunpack.c.l.b16 %v3918
  %v4059 = vunpack.c.h.b16 %v3918
  %v4060 = vunpack.c.l.b16 %v3919
  %v4061 = vunpack.c.h.b16 %v3919
  %v4062 = vunpack.c.l.b16 %v3920
  %v4063 = vunpack.c.h.b16 %v3920
  %v4064 = vunpack.c.l.b16 %v3921
  %v4065 = vunpack.c.h.b16 %v3921
  %v4066 = vunpack.c.l.b16 %v3922
  %v4067 = vunpack.c.h.b16 %v3922
  %v4068 = vunpack.c.l.b16 %v3923
  %v4069 = vunpack.c.h.b16 %v3923
  %v4070 = vunpack.c.l.b16 %v3924
  %v4071 = vunpack.c.h.b16 %v3924
  %v4072 = vunpack.c.l.b16 %v3925
  %v4073 = vunpack.c.h.b16 %v3925
  %v4074 = vunpack.c.l.b16 %v3926
  %v4075 = vunpack.c.h.b16 %v3926
  %v4076 = vunpack.c.l.b16 %v3927
  %v4077 = vunpack.c.h.b16 %v3927
  %v4078 = vunpack.c.l.b16 %v3928
  %v4079 = vunpack.c.h.b16 %v3928
  %v4080 = vunpack.c.l.b16 %v3929
  %v4081 = vunpack.c.h.b16 %v3929
  %v4082 = vunpack.c.l.b16 %v3930
  %v4083 = vunpack.c.h.b16 %v3930
  %v4084 = vunpack.c.l.b16 %v3931
  %v4085 = vunpack.c.h.b16 %v3931
  %v4086 = vunpack.c.l.b16 %v3932
  %v4087 = vunpack.c.h.b16 %v3932
  %v4088 = vunpack.c.l.b16 %v3933
  %v4089 = vunpack.c.h.b16 %v3933
  %v4090 = vunpack.c.l.b16 %v3934
  %v4091 = vunpack.c.h.b16 %v3934
  %v4092 = vunpack.c.l.b16 %v3935
  %v4093 = vunpack.c.h.b16 %v3935
  %v4094 = vunpack.c.l.b16 %v3936
  %v4095 = vunpack.c.h.b16 %v3936
  %v4096 = vunpack.c.l.b16 %v3937
  %v4097 = vunpack.c.h.b16 %v3937
  %v4098 = vunpack.c.l.b16 %v3938
  %v4099 = vunpack.c.h.b16 %v3938
  %v4100 = vunpack.c.l.b16 %v3939
  %v4101 = vunpack.c.h.b16 %v3939
  %v4102 = vunpack.c.l.b16 %v3940
  %v4103 = vunpack.c.h.b16 %v3940
  %v4104 = vunpack.c.l.b16 %v3941
  %v4105 = vunpack.c.h.b16 %v3941
  %v4106 = vunpack.c.l.b16 %v3942
  %v4107 = vunpack.c.h.b16 %v3942
  %v4108 = vunpack.c.l.b16 %v3943
  %v4109 = vunpack.c.h.b16 %v3943
  %v4110 = vunpack.c.l.b16 %v3944
  %v4111 = vunpack.c.h.b16 %v3944
  %v4112 = vunpack.c.l.b16 %v3945
  %v4113 = vunpack.c.h.b16 %v3945
  %v4114 = vunpack.c.l.b16 %v3946
  %v4115 = vunpack.c.h.b16 %v3946
  %v4116 = vunpack.c.l.b16 %v3947
  %v4117 = vunpack.c.h.b16 %v3947
  %v4118 = vunpack.c.l.b16 %v3948
  %v4119 = vunpack.c.h.b16 %v3948
  %v4120 = vunpack.c.l.b16 %v3949
  %v4121 = vunpack.c.h.b16 %v3949
  %v4122 = vunpack.c.l.b16 %v3950
  %v4123 = vunpack.c.h.b16 %v3950
  %v4124 = vunpack.c.l.b16 %v3951
  %v4125 = vunpack.c.h.b16 %v3951
  %v4126 = vunpack.c.l.b16 %v3952
  %v4127 = vunpack.c.h.b16 %v3952
  %v4128 = vunpack.c.l.b16 %v3953
  %v4129 = vunpack.c.h.b16 %v3953
  %v4130 = vunpack.c.l.b16 %v3954
  %v4131 = vunpack.c.h.b16 %v3954
  %v4132 = vunpack.c.l.b16 %v3955
  %v4133 = vunpack.c.h.b16 %v3955
  %v4134 = vunpack.c.l.b16 %v3956
  %v4135 = vunpack.c.h.b16 %v3956
  %v4136 = vunpack.c.l.b16 %v3957
  %v4137 = vunpack.c.h.b16 %v3957
  %v4138 = vunpack.c.l.b16 %v3958
  %v4139 = vunpack.c.h.b16 %v3958
  %v4140 = vunpack.c.l.b16 %v3959
  %v4141 = vunpack.c.h.b16 %v3959
  %v4142 = vunpack.c.l.b16 %v3960
  %v4143 = vunpack.c.h.b16 %v3960
  %v4144 = vunpack.c.l.b16 %v3961
  %v4145 = vunpack.c.h.b16 %v3961
  %v4146 = vunpack.c.l.b16 %v3962
  %v4147 = vunpack.c.h.b16 %v3962
  %v4148 = vunpack.c.l.b16 %v3963
  %v4149 = vunpack.c.h.b16 %v3963
  %v4150 = vunpack.c.l.b16 %v3964
  %v4151 = vunpack.c.h.b16 %v3964
  %v4152 = vunpack.c.l.b16 %v3965
  %v4153 = vunpack.c.h.b16 %v3965
  %v4154 = vunpack.c.l.b16 %v3966
  %v4155 = vunpack.c.h.b16 %v3966
  %v4156 = vunpack.c.l.b16 %v3967
  %v4157 = vunpack.c.h.b16 %v3967
  %v4158 = vunpack.c.l.b16 %v3968
  %v4159 = vunpack.c.h.b16 %v3968
  %v4160 = vunpack.c.l.b16 %v3969
  %v4161 = vunpack.c.h.b16 %v3969
  %v4162 = vunpack.c.l.b16 %v3970
  %v4163 = vunpack.c.h.b16 %v3970
  %v4164 = vunpack.c.l.b16 %v3971
  %v4165 = vunpack.c.h.b16 %v3971
  %v4166 = vunpack.c.l.b16 %v3972
  %v4167 = vunpack.c.h.b16 %v3972
  %v4168 = vunpack.c.l.b16 %v3973
  %v4169 = vunpack.c.h.b16 %v3973
  %v4170 = vunpack.c.l.b16 %v3974
  %v4171 = vunpack.c.h.b16 %v3974
  %v4172 = vunpack.c.l.b16 %v3975
  %v4173 = vunpack.c.h.b16 %v3975
  %v4174 = vpack.c.b16 %v4048, %v4046
  %v4175 = vpack.c.b16 %v4049, %v4047
  %v4176 = vpack.c.b16 %v4052, %v4050
  %v4177 = vpack.c.b16 %v4053, %v4051
  %v4178 = vpack.c.b16 %v4056, %v4054
  %v4179 = vpack.c.b16 %v4057, %v4055
  %v4180 = vpack.c.b16 %v4060, %v4058
  %v4181 = vpack.c.b16 %v4061, %v4059
  %v4182 = vpack.c.b16 %v4064, %v4062
  %v4183 = vpack.c.b16 %v4065, %v4063
  %v4184 = vpack.c.b16 %v4068, %v4066
  %v4185 = vpack.c.b16 %v4069, %v4067
  %v4186 = vpack.c.b16 %v4072, %v4070
  %v4187 = vpack.c.b16 %v4073, %v4071
  %v4188 = vpack.c.b16 %v4076, %v4074
  %v4189 = vpack.c.b16 %v4077, %v4075
  %v4190 = vpack.c.b16 %v4080, %v4078
  %v4191 = vpack.c.b16 %v4081, %v4079
  %v4192 = vpack.c.b16 %v4084, %v4082
  %v4193 = vpack.c.b16 %v4085, %v4083
  %v4194 = vpack.c.b16 %v4088, %v4086
  %v4195 = vpack.c.b16 %v4089, %v4087
  %v4196 = vpack.c.b16 %v4092, %v4090
  %v4197 = vpack.c.b16 %v4093, %v4091
  %v4198 = vpack.c.b16 %v4096, %v4094
  %v4199 = vpack.c.b16 %v4097, %v4095
  %v4200 = vpack.c.b16 %v4100, %v4098
  %v4201 = vpack.c.b16 %v4101, %v4099
  %v4202 = vpack.c.b16 %v4104, %v4102
  %v4203 = vpack.c.b16 %v4105, %v4103
  %v4204 = vpack.c.b16 %v4108, %v4106
  %v4205 = vpack.c.b16 %v4109, %v4107
  %v4206 = vpack.c.b16 %v4112, %v4110
  %v4207 = vpack.c.b16 %v4113, %v4111
  %v4208 = vpack.c.b16 %v4116, %v4114
  %v4209 = vpack.c.b16 %v4117, %v4115
  %v4210 = vpack.c.b16 %v4120, %v4118
  %v4211 = vpack.c.b16 %v4121, %v4119
  %v4212 = vpack.c.b16 %v4124, %v4122
  %v4213 = vpack.c.b16 %v4125, %v4123
  %v4214 = vpack.c.b16 %v4128, %v4126
  %v4215 = vpack.c.b16 %v4129, %v4127
  %v4216 = vpack.c.b16 %v4132, %v4130
  %v4217 = vpack.c.b16 %v4133, %v4131
  %v4218 = vpack.c.b16 %v4136, %v4134
  %v4219 = vpack.c.b16 %v4137, %v4135
  %v4220 = vpack.c.b16 %v4140, %v4138
  %v4221 = vpack.c.b16 %v4141, %v4139
  %v4222 = vpack.c.b16 %v4144, %v4142
  %v4223 = vpack.c.b16 %v4145, %v4143
  %v4224 = vpack.c.b16 %v4148, %v4146
  %v4225 = vpack.c.b16 %v4149, %v4147
  %v4226 = vpack.c.b16 %v4152, %v4150
  %v4227 = vpack.c.b16 %v4153, %v4151
  %v4228 = vpack.c.b16 %v4156, %v4154
  %v4229 = vpack.c.b16 %v4157, %v4155
  %v4230 = vpack.c.b16 %v4160, %v4158
  %v4231 = vpack.c.b16 %v4161, %v4159
  %v4232 = vpack.c.b16 %v4164, %v4162
  %v4233 = vpack.c.b16 %v4165, %v4163
  %v4234 = vpack.c.b16 %v4168, %v4166
  %v4235 = vpack.c.b16 %v4169, %v4167
  %v4236 = vpack.c.b16 %v4172, %v4170
  %v4237 = vpack.c.b16 %v4173, %v4171
  %4302 = vmatpush.bf16.msra.mxu0 %v4188
  %4303 = vmatpush.bf16.msra.mxu0 %v4186
  %4304 = vmatpush.bf16.msra.mxu0 %v4184
  %4305 = vmatpush.bf16.msra.mxu0 %v4182
  %4306 = vmatpush.bf16.msra.mxu0 %v4180
  %4307 = vmatpush.bf16.msra.mxu0 %v4178
  %4308 = vmatpush.bf16.msra.mxu0 %v4176
  %4309 = vmatpush.bf16.msra.mxu0 %v4174
  %4310 = vmatmul.bf16.gmra.mxu0 %v3880
  %v4311 = vpop.f32.mrf.mxu0
  %v4312 = vadd.f32 %v3978, %v4311
  %v4313 = vpop.f32.mrf.mxu0
  %v4314 = vadd.f32 %v3978, %v4313
  %4315 = vmatmul.bf16.gmra.mxu0 %v3884
  %v4316 = vpop.f32.mrf.mxu0
  %v4317 = vadd.f32 %v3978, %v4316
  %v4318 = vpop.f32.mrf.mxu0
  %v4319 = vadd.f32 %v3978, %v4318
  %4320 = vmatmul.bf16.gmra.mxu0 %v3888
  %v4321 = vpop.f32.mrf.mxu0
  %v4322 = vadd.f32 %v3978, %v4321
  %v4323 = vpop.f32.mrf.mxu0
  %v4324 = vadd.f32 %v3978, %v4323
  %4325 = vmatmul.bf16.gmra.mxu0 %v3892
  %v4326 = vpop.f32.mrf.mxu0
  %v4327 = vadd.f32 %v3978, %v4326
  %v4328 = vpop.f32.mrf.mxu0
  %v4329 = vadd.f32 %v3978, %v4328
  %4330 = vmatmul.bf16.gmra.mxu0 %v3896
  %v4331 = vpop.f32.mrf.mxu0
  %v4332 = vadd.f32 %v3978, %v4331
  %v4333 = vpop.f32.mrf.mxu0
  %v4334 = vadd.f32 %v3978, %v4333
  %4335 = vmatmul.bf16.gmra.mxu0 %v3900
  %v4336 = vpop.f32.mrf.mxu0
  %v4337 = vadd.f32 %v3978, %v4336
  %v4338 = vpop.f32.mrf.mxu0
  %v4339 = vadd.f32 %v3978, %v4338
  %4340 = vmatmul.bf16.gmra.mxu0 %v3904
  %v4341 = vpop.f32.mrf.mxu0
  %v4342 = vadd.f32 %v3978, %v4341
  %v4343 = vpop.f32.mrf.mxu0
  %v4344 = vadd.f32 %v3978, %v4343
  %4345 = vmatmul.bf16.gmra.mxu0 %v3908
  %v4346 = vpop.f32.mrf.mxu0
  %v4347 = vadd.f32 %v3978, %v4346
  %v4348 = vpop.f32.mrf.mxu0
  %v4349 = vadd.f32 %v3978, %v4348
  %4350 = vdwg.mxu0
  %4351 = vmatpush.bf16.msra.mxu0 %v4204
  %4352 = vmatpush.bf16.msra.mxu0 %v4202
  %4353 = vmatpush.bf16.msra.mxu0 %v4200
  %4354 = vmatpush.bf16.msra.mxu0 %v4198
  %4355 = vmatpush.bf16.msra.mxu0 %v4196
  %4356 = vmatpush.bf16.msra.mxu0 %v4194
  %4357 = vmatpush.bf16.msra.mxu0 %v4192
  %4358 = vmatpush.bf16.msra.mxu0 %v4190
  %4359 = vmatmul.bf16.gmra.mxu0 %v3881
  %v4360 = vpop.f32.mrf.mxu0
  %v4361 = vadd.f32 %v4312, %v4360
  %v4362 = vpop.f32.mrf.mxu0
  %v4363 = vadd.f32 %v4314, %v4362
  %4364 = vmatmul.bf16.gmra.mxu0 %v3885
  %v4365 = vpop.f32.mrf.mxu0
  %v4366 = vadd.f32 %v4317, %v4365
  %v4367 = vpop.f32.mrf.mxu0
  %v4368 = vadd.f32 %v4319, %v4367
  %4369 = vmatmul.bf16.gmra.mxu0 %v3889
  %v4370 = vpop.f32.mrf.mxu0
  %v4371 = vadd.f32 %v4322, %v4370
  %v4372 = vpop.f32.mrf.mxu0
  %v4373 = vadd.f32 %v4324, %v4372
  %4374 = vmatmul.bf16.gmra.mxu0 %v3893
  %v4375 = vpop.f32.mrf.mxu0
  %v4376 = vadd.f32 %v4327, %v4375
  %v4377 = vpop.f32.mrf.mxu0
  %v4378 = vadd.f32 %v4329, %v4377
  %4379 = vmatmul.bf16.gmra.mxu0 %v3897
  %v4380 = vpop.f32.mrf.mxu0
  %v4381 = vadd.f32 %v4332, %v4380
  %v4382 = vpop.f32.mrf.mxu0
  %v4383 = vadd.f32 %v4334, %v4382
  %4384 = vmatmul.bf16.gmra.mxu0 %v3901
  %v4385 = vpop.f32.mrf.mxu0
  %v4386 = vadd.f32 %v4337, %v4385
  %v4387 = vpop.f32.mrf.mxu0
  %v4388 = vadd.f32 %v4339, %v4387
  %4389 = vmatmul.bf16.gmra.mxu0 %v3905
  %v4390 = vpop.f32.mrf.mxu0
  %v4391 = vadd.f32 %v4342, %v4390
  %v4392 = vpop.f32.mrf.mxu0
  %v4393 = vadd.f32 %v4344, %v4392
  %4394 = vmatmul.bf16.gmra.mxu0 %v3909
  %v4395 = vpop.f32.mrf.mxu0
  %v4396 = vadd.f32 %v4347, %v4395
  %v4397 = vpop.f32.mrf.mxu0
  %v4398 = vadd.f32 %v4349, %v4397
  %4399 = vdwg.mxu0
  %4400 = vmatpush.bf16.msra.mxu0 %v4220
  %4401 = vmatpush.bf16.msra.mxu0 %v4218
  %4402 = vmatpush.bf16.msra.mxu0 %v4216
  %4403 = vmatpush.bf16.msra.mxu0 %v4214
  %4404 = vmatpush.bf16.msra.mxu0 %v4212
  %4405 = vmatpush.bf16.msra.mxu0 %v4210
  %4406 = vmatpush.bf16.msra.mxu0 %v4208
  %4407 = vmatpush.bf16.msra.mxu0 %v4206
  %4408 = vmatmul.bf16.gmra.mxu0 %v3882
  %v4409 = vpop.f32.mrf.mxu0
  %v4410 = vadd.f32 %v4361, %v4409
  %v4411 = vpop.f32.mrf.mxu0
  %v4412 = vadd.f32 %v4363, %v4411
  %4413 = vmatmul.bf16.gmra.mxu0 %v3886
  %v4414 = vpop.f32.mrf.mxu0
  %v4415 = vadd.f32 %v4366, %v4414
  %v4416 = vpop.f32.mrf.mxu0
  %v4417 = vadd.f32 %v4368, %v4416
  %4418 = vmatmul.bf16.gmra.mxu0 %v3890
  %v4419 = vpop.f32.mrf.mxu0
  %v4420 = vadd.f32 %v4371, %v4419
  %v4421 = vpop.f32.mrf.mxu0
  %v4422 = vadd.f32 %v4373, %v4421
  %4423 = vmatmul.bf16.gmra.mxu0 %v3894
  %v4424 = vpop.f32.mrf.mxu0
  %v4425 = vadd.f32 %v4376, %v4424
  %v4426 = vpop.f32.mrf.mxu0
  %v4427 = vadd.f32 %v4378, %v4426
  %4428 = vmatmul.bf16.gmra.mxu0 %v3898
  %v4429 = vpop.f32.mrf.mxu0
  %v4430 = vadd.f32 %v4381, %v4429
  %v4431 = vpop.f32.mrf.mxu0
  %v4432 = vadd.f32 %v4383, %v4431
  %4433 = vmatmul.bf16.gmra.mxu0 %v3902
  %v4434 = vpop.f32.mrf.mxu0
  %v4435 = vadd.f32 %v4386, %v4434
  %v4436 = vpop.f32.mrf.mxu0
  %v4437 = vadd.f32 %v4388, %v4436
  %4438 = vmatmul.bf16.gmra.mxu0 %v3906
  %v4439 = vpop.f32.mrf.mxu0
  %v4440 = vadd.f32 %v4391, %v4439
  %v4441 = vpop.f32.mrf.mxu0
  %v4442 = vadd.f32 %v4393, %v4441
  %4443 = vmatmul.bf16.gmra.mxu0 %v3910
  %v4444 = vpop.f32.mrf.mxu0
  %v4445 = vadd.f32 %v4396, %v4444
  %v4446 = vpop.f32.mrf.mxu0
  %v4447 = vadd.f32 %v4398, %v4446
  %4448 = vdwg.mxu0
  %4449 = vmatpush.bf16.msra.mxu0 %v4236
  %4450 = vmatpush.bf16.msra.mxu0 %v4234
  %4451 = vmatpush.bf16.msra.mxu0 %v4232
  %4452 = vmatpush.bf16.msra.mxu0 %v4230
  %4453 = vmatpush.bf16.msra.mxu0 %v4228
  %4454 = vmatpush.bf16.msra.mxu0 %v4226
  %4455 = vmatpush.bf16.msra.mxu0 %v4224
  %4456 = vmatpush.bf16.msra.mxu0 %v4222
  %4457 = vmatmul.bf16.gmra.mxu0 %v3883
  %v4458 = vpop.f32.mrf.mxu0
  %v4459 = vadd.f32 %v4410, %v4458
  %v4460 = vpop.f32.mrf.mxu0
  %v4461 = vadd.f32 %v4412, %v4460
  %4462 = vmatmul.bf16.gmra.mxu0 %v3887
  %v4463 = vpop.f32.mrf.mxu0
  %v4464 = vadd.f32 %v4415, %v4463
  %v4465 = vpop.f32.mrf.mxu0
  %v4466 = vadd.f32 %v4417, %v4465
  %4467 = vmatmul.bf16.gmra.mxu0 %v3891
  %v4468 = vpop.f32.mrf.mxu0
  %v4469 = vadd.f32 %v4420, %v4468
  %v4470 = vpop.f32.mrf.mxu0
  %v4471 = vadd.f32 %v4422, %v4470
  %4472 = vmatmul.bf16.gmra.mxu0 %v3895
  %v4473 = vpop.f32.mrf.mxu0
  %v4474 = vadd.f32 %v4425, %v4473
  %v4475 = vpop.f32.mrf.mxu0
  %v4476 = vadd.f32 %v4427, %v4475
  %4477 = vmatmul.bf16.gmra.mxu0 %v3899
  %v4478 = vpop.f32.mrf.mxu0
  %v4479 = vadd.f32 %v4430, %v4478
  %v4480 = vpop.f32.mrf.mxu0
  %v4481 = vadd.f32 %v4432, %v4480
  %4482 = vmatmul.bf16.gmra.mxu0 %v3903
  %v4483 = vpop.f32.mrf.mxu0
  %v4484 = vadd.f32 %v4435, %v4483
  %v4485 = vpop.f32.mrf.mxu0
  %v4486 = vadd.f32 %v4437, %v4485
  %4487 = vmatmul.bf16.gmra.mxu0 %v3907
  %v4488 = vpop.f32.mrf.mxu0
  %v4489 = vadd.f32 %v4440, %v4488
  %v4490 = vpop.f32.mrf.mxu0
  %v4491 = vadd.f32 %v4442, %v4490
  %4492 = vmatmul.bf16.gmra.mxu0 %v3911
  %v4493 = vpop.f32.mrf.mxu0
  %v4494 = vadd.f32 %v4445, %v4493
  %v4495 = vpop.f32.mrf.mxu0
  %v4496 = vadd.f32 %v4447, %v4495
  %4497 = vdwg.mxu0
  %4498 = vmatpush.bf16.msra.mxu0 %v4189
  %4499 = vmatpush.bf16.msra.mxu0 %v4187
  %4500 = vmatpush.bf16.msra.mxu0 %v4185
  %4501 = vmatpush.bf16.msra.mxu0 %v4183
  %4502 = vmatpush.bf16.msra.mxu0 %v4181
  %4503 = vmatpush.bf16.msra.mxu0 %v4179
  %4504 = vmatpush.bf16.msra.mxu0 %v4177
  %4505 = vmatpush.bf16.msra.mxu0 %v4175
  %4506 = vmatmul.bf16.gmra.mxu0 %v3880
  %v4507 = vpop.f32.mrf.mxu0
  %v4508 = vadd.f32 %v3979, %v4507
  %v4509 = vpop.f32.mrf.mxu0
  %v4510 = vadd.f32 %v3979, %v4509
  %4511 = vmatmul.bf16.gmra.mxu0 %v3884
  %v4512 = vpop.f32.mrf.mxu0
  %v4513 = vadd.f32 %v3979, %v4512
  %v4514 = vpop.f32.mrf.mxu0
  %v4515 = vadd.f32 %v3979, %v4514
  %4516 = vmatmul.bf16.gmra.mxu0 %v3888
  %v4517 = vpop.f32.mrf.mxu0
  %v4518 = vadd.f32 %v3979, %v4517
  %v4519 = vpop.f32.mrf.mxu0
  %v4520 = vadd.f32 %v3979, %v4519
  %4521 = vmatmul.bf16.gmra.mxu0 %v3892
  %v4522 = vpop.f32.mrf.mxu0
  %v4523 = vadd.f32 %v3979, %v4522
  %v4524 = vpop.f32.mrf.mxu0
  %v4525 = vadd.f32 %v3979, %v4524
  %4526 = vmatmul.bf16.gmra.mxu0 %v3896
  %v4527 = vpop.f32.mrf.mxu0
  %v4528 = vadd.f32 %v3979, %v4527
  %v4529 = vpop.f32.mrf.mxu0
  %v4530 = vadd.f32 %v3979, %v4529
  %4531 = vmatmul.bf16.gmra.mxu0 %v3900
  %v4532 = vpop.f32.mrf.mxu0
  %v4533 = vadd.f32 %v3979, %v4532
  %v4534 = vpop.f32.mrf.mxu0
  %v4535 = vadd.f32 %v3979, %v4534
  %4536 = vmatmul.bf16.gmra.mxu0 %v3904
  %v4537 = vpop.f32.mrf.mxu0
  %v4538 = vadd.f32 %v3979, %v4537
  %v4539 = vpop.f32.mrf.mxu0
  %v4540 = vadd.f32 %v3979, %v4539
  %4541 = vmatmul.bf16.gmra.mxu0 %v3908
  %v4542 = vpop.f32.mrf.mxu0
  %v4543 = vadd.f32 %v3979, %v4542
  %v4544 = vpop.f32.mrf.mxu0
  %v4545 = vadd.f32 %v3979, %v4544
  %4546 = vdwg.mxu0
  %4547 = vmatpush.bf16.msra.mxu0 %v4205
  %4548 = vmatpush.bf16.msra.mxu0 %v4203
  %4549 = vmatpush.bf16.msra.mxu0 %v4201
  %4550 = vmatpush.bf16.msra.mxu0 %v4199
  %4551 = vmatpush.bf16.msra.mxu0 %v4197
  %4552 = vmatpush.bf16.msra.mxu0 %v4195
  %4553 = vmatpush.bf16.msra.mxu0 %v4193
  %4554 = vmatpush.bf16.msra.mxu0 %v4191
  %4555 = vmatmul.bf16.gmra.mxu0 %v3881
  %v4556 = vpop.f32.mrf.mxu0
  %v4557 = vadd.f32 %v4508, %v4556
  %v4558 = vpop.f32.mrf.mxu0
  %v4559 = vadd.f32 %v4510, %v4558
  %4560 = vmatmul.bf16.gmra.mxu0 %v3885
  %v4561 = vpop.f32.mrf.mxu0
  %v4562 = vadd.f32 %v4513, %v4561
  %v4563 = vpop.f32.mrf.mxu0
  %v4564 = vadd.f32 %v4515, %v4563
  %4565 = vmatmul.bf16.gmra.mxu0 %v3889
  %v4566 = vpop.f32.mrf.mxu0
  %v4567 = vadd.f32 %v4518, %v4566
  %v4568 = vpop.f32.mrf.mxu0
  %v4569 = vadd.f32 %v4520, %v4568
  %4570 = vmatmul.bf16.gmra.mxu0 %v3893
  %v4571 = vpop.f32.mrf.mxu0
  %v4572 = vadd.f32 %v4523, %v4571
  %v4573 = vpop.f32.mrf.mxu0
  %v4574 = vadd.f32 %v4525, %v4573
  %4575 = vmatmul.bf16.gmra.mxu0 %v3897
  %v4576 = vpop.f32.mrf.mxu0
  %v4577 = vadd.f32 %v4528, %v4576
  %v4578 = vpop.f32.mrf.mxu0
  %v4579 = vadd.f32 %v4530, %v4578
  %4580 = vmatmul.bf16.gmra.mxu0 %v3901
  %v4581 = vpop.f32.mrf.mxu0
  %v4582 = vadd.f32 %v4533, %v4581
  %v4583 = vpop.f32.mrf.mxu0
  %v4584 = vadd.f32 %v4535, %v4583
  %4585 = vmatmul.bf16.gmra.mxu0 %v3905
  %v4586 = vpop.f32.mrf.mxu0
  %v4587 = vadd.f32 %v4538, %v4586
  %v4588 = vpop.f32.mrf.mxu0
  %v4589 = vadd.f32 %v4540, %v4588
  %4590 = vmatmul.bf16.gmra.mxu0 %v3909
  %v4591 = vpop.f32.mrf.mxu0
  %v4592 = vadd.f32 %v4543, %v4591
  %v4593 = vpop.f32.mrf.mxu0
  %v4594 = vadd.f32 %v4545, %v4593
  %4595 = vdwg.mxu0
  %4596 = vmatpush.bf16.msra.mxu0 %v4221
  %4597 = vmatpush.bf16.msra.mxu0 %v4219
  %4598 = vmatpush.bf16.msra.mxu0 %v4217
  %4599 = vmatpush.bf16.msra.mxu0 %v4215
  %4600 = vmatpush.bf16.msra.mxu0 %v4213
  %4601 = vmatpush.bf16.msra.mxu0 %v4211
  %4602 = vmatpush.bf16.msra.mxu0 %v4209
  %4603 = vmatpush.bf16.msra.mxu0 %v4207
  %4604 = vmatmul.bf16.gmra.mxu0 %v3882
  %v4605 = vpop.f32.mrf.mxu0
  %v4606 = vadd.f32 %v4557, %v4605
  %v4607 = vpop.f32.mrf.mxu0
  %v4608 = vadd.f32 %v4559, %v4607
  %4609 = vmatmul.bf16.gmra.mxu0 %v3886
  %v4610 = vpop.f32.mrf.mxu0
  %v4611 = vadd.f32 %v4562, %v4610
  %v4612 = vpop.f32.mrf.mxu0
  %v4613 = vadd.f32 %v4564, %v4612
  %4614 = vmatmul.bf16.gmra.mxu0 %v3890
  %v4615 = vpop.f32.mrf.mxu0
  %v4616 = vadd.f32 %v4567, %v4615
  %v4617 = vpop.f32.mrf.mxu0
  %v4618 = vadd.f32 %v4569, %v4617
  %4619 = vmatmul.bf16.gmra.mxu0 %v3894
  %v4620 = vpop.f32.mrf.mxu0
  %v4621 = vadd.f32 %v4572, %v4620
  %v4622 = vpop.f32.mrf.mxu0
  %v4623 = vadd.f32 %v4574, %v4622
  %4624 = vmatmul.bf16.gmra.mxu0 %v3898
  %v4625 = vpop.f32.mrf.mxu0
  %v4626 = vadd.f32 %v4577, %v4625
  %v4627 = vpop.f32.mrf.mxu0
  %v4628 = vadd.f32 %v4579, %v4627
  %4629 = vmatmul.bf16.gmra.mxu0 %v3902
  %v4630 = vpop.f32.mrf.mxu0
  %v4631 = vadd.f32 %v4582, %v4630
  %v4632 = vpop.f32.mrf.mxu0
  %v4633 = vadd.f32 %v4584, %v4632
  %4634 = vmatmul.bf16.gmra.mxu0 %v3906
  %v4635 = vpop.f32.mrf.mxu0
  %v4636 = vadd.f32 %v4587, %v4635
  %v4637 = vpop.f32.mrf.mxu0
  %v4638 = vadd.f32 %v4589, %v4637
  %4639 = vmatmul.bf16.gmra.mxu0 %v3910
  %v4640 = vpop.f32.mrf.mxu0
  %v4641 = vadd.f32 %v4592, %v4640
  %v4642 = vpop.f32.mrf.mxu0
  %v4643 = vadd.f32 %v4594, %v4642
  %4644 = vdwg.mxu0
  %4645 = vmatpush.bf16.msra.mxu0 %v4237
  %4646 = vmatpush.bf16.msra.mxu0 %v4235
  %4647 = vmatpush.bf16.msra.mxu0 %v4233
  %4648 = vmatpush.bf16.msra.mxu0 %v4231
  %4649 = vmatpush.bf16.msra.mxu0 %v4229
  %4650 = vmatpush.bf16.msra.mxu0 %v4227
  %4651 = vmatpush.bf16.msra.mxu0 %v4225
  %4652 = vmatpush.bf16.msra.mxu0 %v4223
  %4653 = vmatmul.bf16.gmra.mxu0 %v3883
  %v4654 = vpop.f32.mrf.mxu0
  %v4655 = vadd.f32 %v4606, %v4654
  %v4656 = vpop.f32.mrf.mxu0
  %v4657 = vadd.f32 %v4608, %v4656
  %4658 = vmatmul.bf16.gmra.mxu0 %v3887
  %v4659 = vpop.f32.mrf.mxu0
  %v4660 = vadd.f32 %v4611, %v4659
  %v4661 = vpop.f32.mrf.mxu0
  %v4662 = vadd.f32 %v4613, %v4661
  %4663 = vmatmul.bf16.gmra.mxu0 %v3891
  %v4664 = vpop.f32.mrf.mxu0
  %v4665 = vadd.f32 %v4616, %v4664
  %v4666 = vpop.f32.mrf.mxu0
  %v4667 = vadd.f32 %v4618, %v4666
  %4668 = vmatmul.bf16.gmra.mxu0 %v3895
  %v4669 = vpop.f32.mrf.mxu0
  %v4670 = vadd.f32 %v4621, %v4669
  %v4671 = vpop.f32.mrf.mxu0
  %v4672 = vadd.f32 %v4623, %v4671
  %4673 = vmatmul.bf16.gmra.mxu0 %v3899
  %v4674 = vpop.f32.mrf.mxu0
  %v4675 = vadd.f32 %v4626, %v4674
  %v4676 = vpop.f32.mrf.mxu0
  %v4677 = vadd.f32 %v4628, %v4676
  %4678 = vmatmul.bf16.gmra.mxu0 %v3903
  %v4679 = vpop.f32.mrf.mxu0
  %v4680 = vadd.f32 %v4631, %v4679
  %v4681 = vpop.f32.mrf.mxu0
  %v4682 = vadd.f32 %v4633, %v4681
  %4683 = vmatmul.bf16.gmra.mxu0 %v3907
  %v4684 = vpop.f32.mrf.mxu0
  %v4685 = vadd.f32 %v4636, %v4684
  %v4686 = vpop.f32.mrf.mxu0
  %v4687 = vadd.f32 %v4638, %v4686
  %4688 = vmatmul.bf16.gmra.mxu0 %v3911
  %v4689 = vpop.f32.mrf.mxu0
  %v4690 = vadd.f32 %v4641, %v4689
  %v4691 = vpop.f32.mrf.mxu0
  %v4692 = vadd.f32 %v4643, %v4691
  %4693 = vdwg.mxu0
  %v4694 = vmax.f32 %v4459, 0.0
  %v4695 = vmax.f32 %v4655, 0.0
  %v4696 = vmax.f32 %v4461, 0.0
  %v4697 = vmax.f32 %v4657, 0.0
  %v4698 = vmax.f32 %v4464, 0.0
  %v4699 = vmax.f32 %v4660, 0.0
  %v4700 = vmax.f32 %v4466, 0.0
  %v4701 = vmax.f32 %v4662, 0.0
  %v4702 = vmax.f32 %v4469, 0.0
  %v4703 = vmax.f32 %v4665, 0.0
  %v4704 = vmax.f32 %v4471, 0.0
  %v4705 = vmax.f32 %v4667, 0.0
  %v4706 = vmax.f32 %v4474, 0.0
  %v4707 = vmax.f32 %v4670, 0.0
  %v4708 = vmax.f32 %v4476, 0.0
  %v4709 = vmax.f32 %v4672, 0.0
  %v4710 = vmax.f32 %v4479, 0.0
  %v4711 = vmax.f32 %v4675, 0.0
  %v4712 = vmax.f32 %v4481, 0.0
  %v4713 = vmax.f32 %v4677, 0.0
  %v4714 = vmax.f32 %v4484, 0.0
  %v4715 = vmax.f32 %v4680, 0.0
  %v4716 = vmax.f32 %v4486, 0.0
  %v4717 = vmax.f32 %v4682, 0.0
  %v4718 = vmax.f32 %v4489, 0.0
  %v4719 = vmax.f32 %v4685, 0.0
  %v4720 = vmax.f32 %v4491, 0.0
  %v4721 = vmax.f32 %v4687, 0.0
  %v4722 = vmax.f32 %v4494, 0.0
  %v4723 = vmax.f32 %v4690, 0.0
  %v4724 = vmax.f32 %v4496, 0.0
  %v4725 = vmax.f32 %v4692, 0.0
  %v4726 = vpack.c.bf16 %v4696, %v4694
  %v4727 = vpack.c.bf16 %v4697, %v4695
  %v4728 = vpack.c.bf16 %v4700, %v4698
  %v4729 = vpack.c.bf16 %v4701, %v4699
  %v4730 = vpack.c.bf16 %v4704, %v4702
  %v4731 = vpack.c.bf16 %v4705, %v4703
  %v4732 = vpack.c.bf16 %v4708, %v4706
  %v4733 = vpack.c.bf16 %v4709, %v4707
  %v4734 = vpack.c.bf16 %v4712, %v4710
  %v4735 = vpack.c.bf16 %v4713, %v4711
  %v4736 = vpack.c.bf16 %v4716, %v4714
  %v4737 = vpack.c.bf16 %v4717, %v4715
  %v4738 = vpack.c.bf16 %v4720, %v4718
  %v4739 = vpack.c.bf16 %v4721, %v4719
  %v4740 = vpack.c.bf16 %v4724, %v4722
  %v4741 = vpack.c.bf16 %v4725, %v4723
  %v4742 = vld [vmem:[%s9] sm:$0xf]
  %v4743 = vld [vmem:[%s9 + $0x4] sm:$0xf]
  %v4744 = vld [vmem:[%s9 + $0x8] sm:$0xf]
  %v4745 = vld [vmem:[%s9 + $0xc] sm:$0xf]
  %v4746 = vld [vmem:[%s9 + $0x10] sm:$0xf]
  %v4747 = vld [vmem:[%s9 + $0x14] sm:$0xf]
  %v4748 = vld [vmem:[%s9 + $0x18] sm:$0xf]
  %v4749 = vld [vmem:[%s9 + $0x1c] sm:$0xf]
  %v4750 = vld [vmem:[%s9 + $0x20] sm:$0xf]
  %v4751 = vld [vmem:[%s9 + $0x24] sm:$0xf]
  %v4752 = vld [vmem:[%s9 + $0x28] sm:$0xf]
  %v4753 = vld [vmem:[%s9 + $0x2c] sm:$0xf]
  %v4754 = vld [vmem:[%s9 + $0x30] sm:$0xf]
  %v4755 = vld [vmem:[%s9 + $0x34] sm:$0xf]
  %v4756 = vld [vmem:[%s9 + $0x38] sm:$0xf]
  %v4757 = vld [vmem:[%s9 + $0x3c] sm:$0xf]
  %v4758 = vld [vmem:[%s9 + $0x40] sm:$0xf]
  %v4759 = vld [vmem:[%s9 + $0x44] sm:$0xf]
  %v4760 = vld [vmem:[%s9 + $0x48] sm:$0xf]
  %v4761 = vld [vmem:[%s9 + $0x4c] sm:$0xf]
  %v4762 = vld [vmem:[%s9 + $0x50] sm:$0xf]
  %v4763 = vld [vmem:[%s9 + $0x54] sm:$0xf]
  %v4764 = vld [vmem:[%s9 + $0x58] sm:$0xf]
  %v4765 = vld [vmem:[%s9 + $0x5c] sm:$0xf]
  %v4766 = vld [vmem:[%s9 + $0x60] sm:$0xf]
  %v4767 = vld [vmem:[%s9 + $0x64] sm:$0xf]
  %v4768 = vld [vmem:[%s9 + $0x68] sm:$0xf]
  %v4769 = vld [vmem:[%s9 + $0x6c] sm:$0xf]
  %v4770 = vld [vmem:[%s9 + $0x70] sm:$0xf]
  %v4771 = vld [vmem:[%s9 + $0x74] sm:$0xf]
  %v4772 = vld [vmem:[%s9 + $0x78] sm:$0xf]
  %v4773 = vld [vmem:[%s9 + $0x7c] sm:$0xf]
  %v4774 = vld [vmem:[%s10] sm:$0x1]
  %v4776 = vperm.slane %v4774, 0
  %v4810 = vunpack.c.l.b16 %v4742
  %v4811 = vunpack.c.l.b16 %v4743
  %v4812 = vunpack.c.l.b16 %v4744
  %v4813 = vunpack.c.l.b16 %v4745
  %v4814 = vunpack.c.l.b16 %v4746
  %v4815 = vunpack.c.l.b16 %v4747
  %v4816 = vunpack.c.l.b16 %v4748
  %v4817 = vunpack.c.l.b16 %v4749
  %v4818 = vunpack.c.l.b16 %v4750
  %v4819 = vunpack.c.l.b16 %v4751
  %v4820 = vunpack.c.l.b16 %v4752
  %v4821 = vunpack.c.l.b16 %v4753
  %v4822 = vunpack.c.l.b16 %v4754
  %v4823 = vunpack.c.l.b16 %v4755
  %v4824 = vunpack.c.l.b16 %v4756
  %v4825 = vunpack.c.l.b16 %v4757
  %v4826 = vunpack.c.l.b16 %v4758
  %v4827 = vunpack.c.l.b16 %v4759
  %v4828 = vunpack.c.l.b16 %v4760
  %v4829 = vunpack.c.l.b16 %v4761
  %v4830 = vunpack.c.l.b16 %v4762
  %v4831 = vunpack.c.l.b16 %v4763
  %v4832 = vunpack.c.l.b16 %v4764
  %v4833 = vunpack.c.l.b16 %v4765
  %v4834 = vunpack.c.l.b16 %v4766
  %v4835 = vunpack.c.l.b16 %v4767
  %v4836 = vunpack.c.l.b16 %v4768
  %v4837 = vunpack.c.l.b16 %v4769
  %v4838 = vunpack.c.l.b16 %v4770
  %v4839 = vunpack.c.l.b16 %v4771
  %v4840 = vunpack.c.l.b16 %v4772
  %v4841 = vunpack.c.l.b16 %v4773
  %v4842 = vpack.c.b16 %v4811, %v4810
  %v4843 = vpack.c.b16 %v4813, %v4812
  %v4844 = vpack.c.b16 %v4815, %v4814
  %v4845 = vpack.c.b16 %v4817, %v4816
  %v4846 = vpack.c.b16 %v4819, %v4818
  %v4847 = vpack.c.b16 %v4821, %v4820
  %v4848 = vpack.c.b16 %v4823, %v4822
  %v4849 = vpack.c.b16 %v4825, %v4824
  %v4850 = vpack.c.b16 %v4827, %v4826
  %v4851 = vpack.c.b16 %v4829, %v4828
  %v4852 = vpack.c.b16 %v4831, %v4830
  %v4853 = vpack.c.b16 %v4833, %v4832
  %v4854 = vpack.c.b16 %v4835, %v4834
  %v4855 = vpack.c.b16 %v4837, %v4836
  %v4856 = vpack.c.b16 %v4839, %v4838
  %v4857 = vpack.c.b16 %v4841, %v4840
  %4874 = vmatpush.bf16.msra.mxu0 %v4849
  %4875 = vmatpush.bf16.msra.mxu0 %v4848
  %4876 = vmatpush.bf16.msra.mxu0 %v4847
  %4877 = vmatpush.bf16.msra.mxu0 %v4846
  %4878 = vmatpush.bf16.msra.mxu0 %v4845
  %4879 = vmatpush.bf16.msra.mxu0 %v4844
  %4880 = vmatpush.bf16.msra.mxu0 %v4843
  %4881 = vmatpush.bf16.msra.mxu0 %v4842
  %4882 = vmatmul.bf16.gmra.mxu0 %v4726
  %v4883 = vpop.f32.mrf.mxu0
  %v4884 = vadd.f32 %v4776, %v4883
  %v4885 = vpop.f32.mrf.mxu0
  %v4886 = vadd.f32 %v4776, %v4885
  %4887 = vmatmul.bf16.gmra.mxu0 %v4728
  %v4888 = vpop.f32.mrf.mxu0
  %v4889 = vadd.f32 %v4776, %v4888
  %v4890 = vpop.f32.mrf.mxu0
  %v4891 = vadd.f32 %v4776, %v4890
  %4892 = vmatmul.bf16.gmra.mxu0 %v4730
  %v4893 = vpop.f32.mrf.mxu0
  %v4894 = vadd.f32 %v4776, %v4893
  %v4895 = vpop.f32.mrf.mxu0
  %v4896 = vadd.f32 %v4776, %v4895
  %4897 = vmatmul.bf16.gmra.mxu0 %v4732
  %v4898 = vpop.f32.mrf.mxu0
  %v4899 = vadd.f32 %v4776, %v4898
  %v4900 = vpop.f32.mrf.mxu0
  %v4901 = vadd.f32 %v4776, %v4900
  %4902 = vmatmul.bf16.gmra.mxu0 %v4734
  %v4903 = vpop.f32.mrf.mxu0
  %v4904 = vadd.f32 %v4776, %v4903
  %v4905 = vpop.f32.mrf.mxu0
  %v4906 = vadd.f32 %v4776, %v4905
  %4907 = vmatmul.bf16.gmra.mxu0 %v4736
  %v4908 = vpop.f32.mrf.mxu0
  %v4909 = vadd.f32 %v4776, %v4908
  %v4910 = vpop.f32.mrf.mxu0
  %v4911 = vadd.f32 %v4776, %v4910
  %4912 = vmatmul.bf16.gmra.mxu0 %v4738
  %v4913 = vpop.f32.mrf.mxu0
  %v4914 = vadd.f32 %v4776, %v4913
  %v4915 = vpop.f32.mrf.mxu0
  %v4916 = vadd.f32 %v4776, %v4915
  %4917 = vmatmul.bf16.gmra.mxu0 %v4740
  %v4918 = vpop.f32.mrf.mxu0
  %v4919 = vadd.f32 %v4776, %v4918
  %v4920 = vpop.f32.mrf.mxu0
  %v4921 = vadd.f32 %v4776, %v4920
  %4922 = vdwg.mxu0
  %4923 = vmatpush.bf16.msra.mxu0 %v4857
  %4924 = vmatpush.bf16.msra.mxu0 %v4856
  %4925 = vmatpush.bf16.msra.mxu0 %v4855
  %4926 = vmatpush.bf16.msra.mxu0 %v4854
  %4927 = vmatpush.bf16.msra.mxu0 %v4853
  %4928 = vmatpush.bf16.msra.mxu0 %v4852
  %4929 = vmatpush.bf16.msra.mxu0 %v4851
  %4930 = vmatpush.bf16.msra.mxu0 %v4850
  %4931 = vmatmul.bf16.gmra.mxu0 %v4727
  %v4932 = vpop.f32.mrf.mxu0
  %v4933 = vadd.f32 %v4884, %v4932
  %v4934 = vpop.f32.mrf.mxu0
  %v4935 = vadd.f32 %v4886, %v4934
  %4936 = vmatmul.bf16.gmra.mxu0 %v4729
  %v4937 = vpop.f32.mrf.mxu0
  %v4938 = vadd.f32 %v4889, %v4937
  %v4939 = vpop.f32.mrf.mxu0
  %v4940 = vadd.f32 %v4891, %v4939
  %4941 = vmatmul.bf16.gmra.mxu0 %v4731
  %v4942 = vpop.f32.mrf.mxu0
  %v4943 = vadd.f32 %v4894, %v4942
  %v4944 = vpop.f32.mrf.mxu0
  %v4945 = vadd.f32 %v4896, %v4944
  %4946 = vmatmul.bf16.gmra.mxu0 %v4733
  %v4947 = vpop.f32.mrf.mxu0
  %v4948 = vadd.f32 %v4899, %v4947
  %v4949 = vpop.f32.mrf.mxu0
  %v4950 = vadd.f32 %v4901, %v4949
  %4951 = vmatmul.bf16.gmra.mxu0 %v4735
  %v4952 = vpop.f32.mrf.mxu0
  %v4953 = vadd.f32 %v4904, %v4952
  %v4954 = vpop.f32.mrf.mxu0
  %v4955 = vadd.f32 %v4906, %v4954
  %4956 = vmatmul.bf16.gmra.mxu0 %v4737
  %v4957 = vpop.f32.mrf.mxu0
  %v4958 = vadd.f32 %v4909, %v4957
  %v4959 = vpop.f32.mrf.mxu0
  %v4960 = vadd.f32 %v4911, %v4959
  %4961 = vmatmul.bf16.gmra.mxu0 %v4739
  %v4962 = vpop.f32.mrf.mxu0
  %v4963 = vadd.f32 %v4914, %v4962
  %v4964 = vpop.f32.mrf.mxu0
  %v4965 = vadd.f32 %v4916, %v4964
  %4966 = vmatmul.bf16.gmra.mxu0 %v4741
  %v4967 = vpop.f32.mrf.mxu0
  %v4968 = vadd.f32 %v4919, %v4967
  %v4969 = vpop.f32.mrf.mxu0
  %v4970 = vadd.f32 %v4921, %v4969
  %4971 = vdwg.mxu0
  %4972 = vst [vmem:[%s11] sm:$0xff] %v4933
  %4973 = vst [vmem:[%s11 + $0x8] sm:$0xff] %v4935
  %4974 = vst [vmem:[%s11 + $0x10] sm:$0xff] %v4938
  %4975 = vst [vmem:[%s11 + $0x18] sm:$0xff] %v4940
  %4976 = vst [vmem:[%s11 + $0x20] sm:$0xff] %v4943
  %4977 = vst [vmem:[%s11 + $0x28] sm:$0xff] %v4945
  %4978 = vst [vmem:[%s11 + $0x30] sm:$0xff] %v4948
  %4979 = vst [vmem:[%s11 + $0x38] sm:$0xff] %v4950
  %4980 = vst [vmem:[%s11 + $0x40] sm:$0xff] %v4953
  %4981 = vst [vmem:[%s11 + $0x48] sm:$0xff] %v4955
  %4982 = vst [vmem:[%s11 + $0x50] sm:$0xff] %v4958
  %4983 = vst [vmem:[%s11 + $0x58] sm:$0xff] %v4960
  %4984 = vst [vmem:[%s11 + $0x60] sm:$0xff] %v4963
  %4985 = vst [vmem:[%s11 + $0x68] sm:$0xff] %v4965
  %4986 = vst [vmem:[%s11 + $0x70] sm:$0xff] %v4968
  %4987 = vst [vmem:[%s11 + $0x78] sm:$0xff] %v4970
  // Predicated region
  $region46: #{qnet_forward.1} parent=0 // pred_check
    _
  $region47: #{qnet_forward.1} parent=0 // pred_check_branch
    %4989 = sbr.rel (0) target = $region49
  $region48: #{qnet_forward.1} parent=0 // pred_region
    _
  $region49: #{qnet_forward.1} parent=0 // pred_fallthru
    _
  // Predicated region
  $region50: #{qnet_forward.1} parent=0 // pred_check
    _
  $region51: #{qnet_forward.1} parent=0 // pred_check_branch
    %4991 = sbr.rel (0) target = $region53
  $region52: #{qnet_forward.1} parent=0 // pred_region
    _
  $region53: #{qnet_forward.1} parent=0 // pred_fallthru
    _

</llo_original>
